<compile_context>
chip_gen: v6e
topology: v6e:2x2x1
jax: 0.10.0
libtpu: 0.0.40
codegen_flags: <defaults>
</compile_context>

<pallas_src>
import jax
import jax.numpy as jnp
from jax.experimental import pallas as pl
from jax.experimental.pallas import tpu as pltpu

# ---- module-consistent config (small shapes) ---------------------------------
IMG = 32            # image_size
PS = 8              # patch_size
EMB = 48            # emb_dim
HEADS = 3           # num_head
LAYERS = 2          # num_layer
MASK = 0.75         # mask_ratio
B = 2               # batch

HP = IMG // PS                 # patches per side (4)
T = HP * HP                    # number of patches (16)
P = PS * PS                    # flattened patch size, 1 input channel (64)
DH = EMB // HEADS              # per-head dim (16)
REMAIN = int(T * (1 - MASK))   # kept tokens (4)
SEQ = REMAIN + 1               # +1 cls token (5)
HID = 4 * EMB                  # MLP hidden (192), mlp_ratio = 4
EPS = 1e-5                     # nn.LayerNorm default eps


# ---- in-kernel helpers -------------------------------------------------------
def _layernorm(x, w, b):
    """Exact LayerNorm over the (un-padded) last axis of width EMB."""
    inv_n = jnp.float32(1.0 / EMB)
    mu = jnp.sum(x, axis=-1, keepdims=True) * inv_n
    c = x - mu
    var = jnp.sum(c * c, axis=-1, keepdims=True) * inv_n
    return c * jax.lax.rsqrt(var + EPS) * w + b


def _gelu_tanh(x):
    # TODO(synk): timm Block uses exact erf-GELU; tanh approximation kept for robust
    # Mosaic lowering (numerically very close).
    c = jnp.float32(0.7978845608028654)  # sqrt(2/pi)
    return 0.5 * x * (1.0 + jnp.tanh(c * (x + 0.044715 * x * x * x)))


# ---- fused encoder kernel (single invocation, whole batch) --------------------
def encoder_kernel(xp_ref,        # (B*T, P)       flattened patches, rows (b, t)
                   sel_ref,       # (B*SEQ, B*T+1) one-hot gather + cls-prepend matrix
                   bias_pos_ref,  # (B*T, EMB)     conv bias + positional embedding
                   cls_ref,       # (1, EMB)
                   pw_ref,        # (P, EMB)       Conv2d(1,EMB,PS,PS) as matmul
                   ln1w_ref, ln1b_ref,             # (LAYERS, 1, EMB)
                   wqkv_ref, bqkv_ref,             # (LAYERS, EMB, 3*EMB) / (LAYERS,1,3*EMB)
                   wp_ref, bp_ref,                 # (LAYERS, EMB, EMB) / (LAYERS,1,EMB)
                   ln2w_ref, ln2b_ref,             # (LAYERS, 1, EMB)
                   w1_ref, b1_ref,                 # (LAYERS, EMB, HID) / (LAYERS,1,HID)
                   w2_ref, b2_ref,                 # (LAYERS, HID, EMB) / (LAYERS,1,EMB)
                   lnfw_ref, lnfb_ref,             # (1, EMB)
                   o_ref):                         # (SEQ, B*EMB)
    # ---- patchify: Conv2d(1, EMB, PS, PS) == (B*T, P) @ (P, EMB) + (bias + pos) ----
    tok = jnp.dot(xp_ref[...], pw_ref[...],
                  preferred_element_type=jnp.float32) + bias_pos_ref[...]   # (B*T, EMB)

    # ---- PatchShuffle gather + cls prepend as ONE one-hot MXU matmul ----
    src = jnp.concatenate([tok, cls_ref[...]], axis=0)                      # (B*T+1, EMB)
    x = jnp.dot(sel_ref[...], src, preferred_element_type=jnp.float32)      # (B*SEQ, EMB)

    scale = jnp.float32(DH ** -0.5)
    for l in range(LAYERS):                                 # static unroll over layers
        # --- attention branch (pre-LN), packed QKV projection: 1 matmul ---
        h = _layernorm(x, ln1w_ref[l], ln1b_ref[l])
        qkv = jnp.dot(h, wqkv_ref[l],
                      preferred_element_type=jnp.float32) + bqkv_ref[l]     # (B*SEQ, 3*EMB)

        img_outs = []
        for b in range(B):                                  # static unroll over images
            r0 = b * SEQ
            head_outs = []
            for hd in range(HEADS):                         # static unroll over heads
                c0 = hd * DH
                q = qkv[r0:r0 + SEQ, c0:c0 + DH]                            # (SEQ, DH)
                k = qkv[r0:r0 + SEQ, EMB + c0:EMB + c0 + DH]
                v = qkv[r0:r0 + SEQ, 2 * EMB + c0:2 * EMB + c0 + DH]
                s = jnp.einsum('qd,kd->qk', q, k,
                               preferred_element_type=jnp.float32) * scale  # (SEQ, SEQ)
                s = s - jnp.max(s, axis=-1, keepdims=True)
                p = jnp.exp(s)
                p = p / jnp.sum(p, axis=-1, keepdims=True)                  # exact softmax
                head_outs.append(jnp.dot(p, v, preferred_element_type=jnp.float32))
            img_outs.append(jnp.concatenate(head_outs, axis=1))             # (SEQ, EMB)
        attn = jnp.concatenate(img_outs, axis=0)                            # (B*SEQ, EMB)

        # head recombine + output projection fused into a single matmul
        x = x + jnp.dot(attn, wp_ref[l],
                        preferred_element_type=jnp.float32) + bp_ref[l]

        # --- MLP branch ---
        h2 = _layernorm(x, ln2w_ref[l], ln2b_ref[l])
        m = jnp.dot(h2, w1_ref[l], preferred_element_type=jnp.float32) + b1_ref[l]
        m = _gelu_tanh(m)
        x = x + jnp.dot(m, w2_ref[l], preferred_element_type=jnp.float32) + b2_ref[l]

    # ---- final LayerNorm ----
    x = _layernorm(x, lnfw_ref[...], lnfb_ref[...])

    # Emit (SEQ, B*EMB): image b occupies lanes [b*EMB, (b+1)*EMB). The wrapper's
    # reshape to (SEQ, B, EMB) is then a free row-major view (no output transpose).
    o_ref[...] = jnp.concatenate([x[b * SEQ:(b + 1) * SEQ, :] for b in range(B)],
                                 axis=1)


# ---- parameter init (deterministic, synthetic, REAL un-padded shapes) ---------
def init_params(key):
    ks = iter(jax.random.split(key, 4 + 4 * LAYERS))

    def rnd(shape, std=0.02):
        return jax.random.normal(next(ks), shape, jnp.float32) * std

    params = {
        "cls": rnd((1, EMB)),                       # trunc_normal(std=.02) analogue
        "pos": rnd((T, EMB)),                       # pos_embedding (T,1,C) squeezed
        # TODO(synk): when loading real torch weights, flatten Conv2d(1,EMB,PS,PS) as
        # patch_w[pi*PS + pj, e] = conv_w[e, 0, pi, pj] (matches the (0,1,3,2,4)
        # patch-extraction transpose in the wrapper).
        "patch_w": rnd((P, EMB), std=1.0 / P ** 0.5),
        "patch_b": rnd((1, EMB)),
        "lnf_w": jnp.ones((1, EMB), jnp.float32),
        "lnf_b": jnp.zeros((1, EMB), jnp.float32),
        "ln1w": jnp.ones((LAYERS, 1, EMB), jnp.float32),
        "ln1b": jnp.zeros((LAYERS, 1, EMB), jnp.float32),
        "ln2w": jnp.ones((LAYERS, 1, EMB), jnp.float32),
        "ln2b": jnp.zeros((LAYERS, 1, EMB), jnp.float32),
        "b_qkv": jnp.zeros((LAYERS, 1, 3 * EMB), jnp.float32),
        "b_proj": jnp.zeros((LAYERS, 1, EMB), jnp.float32),
        "b1": jnp.zeros((LAYERS, 1, HID), jnp.float32),
        "b2": jnp.zeros((LAYERS, 1, EMB), jnp.float32),
    }
    # Packed QKV weight, columns = [q | k | v], each EMB wide, heads-major within
    # (col = part*EMB + head*DH + d) -- matches timm's qkv.reshape(3, H, DH) split.
    params["w_qkv"] = jnp.stack([rnd((EMB, 3 * EMB)) for _ in range(LAYERS)])
    params["w_proj"] = jnp.stack([rnd((EMB, EMB)) for _ in range(LAYERS)])
    params["w1"] = jnp.stack([rnd((EMB, HID)) for _ in range(LAYERS)])
    params["w2"] = jnp.stack([rnd((HID, EMB)) for _ in range(LAYERS)])
    return params


# ---- pallas_call wrapper + XLA glue -------------------------------------------
def mae_encoder_forward(img, params, shuffle_key):
    b_ = img.shape[0]
    assert b_ == B, "kernel is specialized for the configured batch size"

    # Patch extraction: (B,1,H,W) -> (B*T, P); token t = patch_row*HP + patch_col.
    xp = img[:, 0].reshape(b_, HP, PS, HP, PS)
    xp = jnp.transpose(xp, (0, 1, 3, 2, 4)).reshape(b_ * T, P)

    # PatchShuffle: per-image random permutation (host-side numpy shuffle replaced
    # by jax.random; indexes consumed via a one-hot selection matrix below).
    keys = jax.random.split(shuffle_key, b_)
    fwd = jax.vmap(lambda k: jax.random.permutation(k, T))(keys).astype(jnp.int32)   # (B, T)
    backward_indexes = jnp.argsort(fwd, axis=-1).T                                   # (T, B)
    fwd_kept = fwd[:, :REMAIN]                                                       # (B, REMAIN)

    # One-hot gather + cls-prepend selection matrix: row b*SEQ picks the cls row
    # (last column), row b*SEQ+1+r picks column b*T + fwd[b, r].
    offs = (jnp.arange(b_, dtype=jnp.int32) * T)[:, None]
    cls_col = jnp.full((b_, 1), b_ * T, dtype=jnp.int32)
    col_idx = jnp.concatenate([cls_col, fwd_kept + offs], axis=1).reshape(-1)        # (B*SEQ,)
    sel = jax.nn.one_hot(col_idx, b_ * T + 1, dtype=jnp.float32)                     # (B*SEQ, B*T+1)

    # Fold conv bias + positional embedding into a single per-token additive term.
    bias_pos = jnp.tile(params["pos"] + params["patch_b"], (b_, 1))                  # (B*T, EMB)

    weights = [params["cls"], params["patch_w"],
               params["ln1w"], params["ln1b"], params["w_qkv"], params["b_qkv"],
               params["w_proj"], params["b_proj"],
               params["ln2w"], params["ln2b"], params["w1"], params["b1"],
               params["w2"], params["b2"], params["lnf_w"], params["lnf_b"]]
    inputs = [xp, sel, bias_pos] + weights

    # Advisory cost estimate so XLA can schedule the tiny surrounding ops around us.
    rows = b_ * SEQ
    flops = (2 * b_ * T * P * EMB                          # patchify
             + 2 * rows * (b_ * T + 1) * EMB               # one-hot gather
             + LAYERS * (2 * rows * EMB * 3 * EMB          # packed qkv
                         + 2 * b_ * HEADS * SEQ * SEQ * DH * 2   # scores + pv
                         + 2 * rows * EMB * EMB            # out proj
                         + 2 * rows * EMB * HID * 2))      # mlp
    transcendentals = LAYERS * (b_ * HEADS * SEQ * SEQ + rows * HID) + 3 * rows
    bytes_accessed = sum(a.size * a.dtype.itemsize for a in inputs) + rows * EMB * 4

    vmem = pl.BlockSpec(memory_space=pltpu.MemorySpace.VMEM)
    out = pl.pallas_call(
        encoder_kernel,
        out_shape=jax.ShapeDtypeStruct((SEQ, b_ * EMB), jnp.float32),
        in_specs=[vmem] * len(inputs),
        out_specs=vmem,
        cost_estimate=pl.CostEstimate(flops=int(flops),
                                      transcendentals=int(transcendentals),
                                      bytes_accessed=int(bytes_accessed)),
    )(*inputs)

    features = out.reshape(SEQ, b_, EMB)     # free row-major view -> (t, b, c)
    return features, backward_indexes


# ---- main ---------------------------------------------------------------------
if __name__ == "__main__":
    root = jax.random.PRNGKey(0)
    k_img, k_params, k_shuffle = jax.random.split(root, 3)

    img = jax.random.normal(k_img, (B, 1, IMG, IMG), jnp.float32)   # NCHW, 1 channel
    params = init_params(k_params)

    fwd_fn = jax.jit(mae_encoder_forward)
    features, backward_indexes = fwd_fn(img, params, k_shuffle)
    features = jax.block_until_ready(features)
    backward_indexes = jax.block_until_ready(backward_indexes)

    assert features.shape == (SEQ, B, EMB), features.shape
    assert backward_indexes.shape == (T, B), backward_indexes.shape
    assert bool(jnp.all(jnp.isfinite(features)))

    print("KERNEL_OK")
</pallas_src>

<mosaic_0001>
module attributes {stable_mosaic.version = 11 : i64} {
  func.func @encoder_kernel(%arg0: memref<32x64xf32, #tpu.memory_space<vmem>>, %arg1: memref<10x33xf32, #tpu.memory_space<vmem>>, %arg2: memref<32x48xf32, #tpu.memory_space<vmem>>, %arg3: memref<1x48xf32, #tpu.memory_space<vmem>>, %arg4: memref<64x48xf32, #tpu.memory_space<vmem>>, %arg5: memref<2x1x48xf32, #tpu.memory_space<vmem>>, %arg6: memref<2x1x48xf32, #tpu.memory_space<vmem>>, %arg7: memref<2x48x144xf32, #tpu.memory_space<vmem>>, %arg8: memref<2x1x144xf32, #tpu.memory_space<vmem>>, %arg9: memref<2x48x48xf32, #tpu.memory_space<vmem>>, %arg10: memref<2x1x48xf32, #tpu.memory_space<vmem>>, %arg11: memref<2x1x48xf32, #tpu.memory_space<vmem>>, %arg12: memref<2x1x48xf32, #tpu.memory_space<vmem>>, %arg13: memref<2x48x192xf32, #tpu.memory_space<vmem>>, %arg14: memref<2x1x192xf32, #tpu.memory_space<vmem>>, %arg15: memref<2x192x48xf32, #tpu.memory_space<vmem>>, %arg16: memref<2x1x48xf32, #tpu.memory_space<vmem>>, %arg17: memref<1x48xf32, #tpu.memory_space<vmem>>, %arg18: memref<1x48xf32, #tpu.memory_space<vmem>>, %arg19: memref<5x96xf32, #tpu.memory_space<vmem>>) attributes {dimension_semantics = [], scalar_prefetch = 0 : i64, scratch_operands = 0 : i64, tpu.core_type = #tpu.core_type<tc>} {
    %c0 = arith.constant 0 : index
    %c0_0 = arith.constant 0 : index
    %0 = vector.load %arg0[%c0, %c0_0] : memref<32x64xf32, #tpu.memory_space<vmem>>, vector<32x64xf32>
    %c0_1 = arith.constant 0 : index
    %c0_2 = arith.constant 0 : index
    %1 = vector.load %arg4[%c0_1, %c0_2] : memref<64x48xf32, #tpu.memory_space<vmem>>, vector<64x48xf32>
    %cst = arith.constant dense<0.000000e+00> : vector<32x48xf32>
    %2 = tpu.matmul %0, %1, %cst {dimension_numbers = #tpu.dot_dimension_numbers<[1], [0], [0], [1], [0, 0, 1, 1], [], []>} : vector<32x64xf32>, vector<64x48xf32>, vector<32x48xf32> -> vector<32x48xf32>
    %c0_3 = arith.constant 0 : index
    %c0_4 = arith.constant 0 : index
    %3 = vector.load %arg2[%c0_3, %c0_4] : memref<32x48xf32, #tpu.memory_space<vmem>>, vector<32x48xf32>
    %4 = arith.addf %2, %3 : vector<32x48xf32>
    %c0_5 = arith.constant 0 : index
    %c0_6 = arith.constant 0 : index
    %5 = vector.load %arg3[%c0_5, %c0_6] : memref<1x48xf32, #tpu.memory_space<vmem>>, vector<1x48xf32>
    %6 = tpu.concatenate %4, %5 in 0 : vector<32x48xf32>, vector<1x48xf32> -> vector<33x48xf32>
    %c0_7 = arith.constant 0 : index
    %c0_8 = arith.constant 0 : index
    %7 = vector.load %arg1[%c0_7, %c0_8] : memref<10x33xf32, #tpu.memory_space<vmem>>, vector<10x33xf32>
    %cst_9 = arith.constant dense<0.000000e+00> : vector<10x48xf32>
    %8 = tpu.matmul %7, %6, %cst_9 {dimension_numbers = #tpu.dot_dimension_numbers<[1], [0], [0], [1], [0, 0, 1, 1], [], []>} : vector<10x33xf32>, vector<33x48xf32>, vector<10x48xf32> -> vector<10x48xf32>
    %c0_10 = arith.constant 0 : index
    %c0_11 = arith.constant 0 : index
    %c0_12 = arith.constant 0 : index
    %9 = vector.load %arg5[%c0_10, %c0_11, %c0_12] : memref<2x1x48xf32, #tpu.memory_space<vmem>>, vector<1x1x48xf32>
    %10 = vector.shape_cast %9 : vector<1x1x48xf32> to vector<1x48xf32>
    %c0_13 = arith.constant 0 : index
    %c0_14 = arith.constant 0 : index
    %c0_15 = arith.constant 0 : index
    %11 = vector.load %arg6[%c0_13, %c0_14, %c0_15] : memref<2x1x48xf32, #tpu.memory_space<vmem>>, vector<1x1x48xf32>
    %12 = vector.shape_cast %11 : vector<1x1x48xf32> to vector<1x48xf32>
    %cst_16 = arith.constant dense<0.000000e+00> : vector<10xf32>
    %13 = vector.multi_reduction <add>, %8, %cst_16 [1] : vector<10x48xf32> to vector<10xf32>
    %14 = vector.shape_cast %13 : vector<10xf32> to vector<10x1xf32>
    %cst_17 = arith.constant 0.020833334 : f32
    %15 = vector.broadcast %cst_17 : f32 to vector<10x1xf32>
    %16 = arith.mulf %14, %15 : vector<10x1xf32>
    %17 = vector.broadcast %16 : vector<10x1xf32> to vector<10x48xf32>
    %18 = arith.subf %8, %17 : vector<10x48xf32>
    %19 = arith.mulf %18, %18 : vector<10x48xf32>
    %cst_18 = arith.constant dense<0.000000e+00> : vector<10xf32>
    %20 = vector.multi_reduction <add>, %19, %cst_18 [1] : vector<10x48xf32> to vector<10xf32>
    %21 = vector.shape_cast %20 : vector<10xf32> to vector<10x1xf32>
    %cst_19 = arith.constant 0.020833334 : f32
    %22 = vector.broadcast %cst_19 : f32 to vector<10x1xf32>
    %23 = arith.mulf %21, %22 : vector<10x1xf32>
    %cst_20 = arith.constant 9.99999974E-6 : f32
    %24 = vector.broadcast %cst_20 : f32 to vector<10x1xf32>
    %25 = arith.addf %23, %24 : vector<10x1xf32>
    %26 = math.rsqrt %25 : vector<10x1xf32>
    %27 = vector.broadcast %26 : vector<10x1xf32> to vector<10x48xf32>
    %28 = arith.mulf %18, %27 : vector<10x48xf32>
    %29 = vector.broadcast %10 : vector<1x48xf32> to vector<10x48xf32>
    %30 = arith.mulf %28, %29 : vector<10x48xf32>
    %31 = vector.broadcast %12 : vector<1x48xf32> to vector<10x48xf32>
    %32 = arith.addf %30, %31 : vector<10x48xf32>
    %c0_21 = arith.constant 0 : index
    %c0_22 = arith.constant 0 : index
    %c0_23 = arith.constant 0 : index
    %33 = vector.load %arg7[%c0_21, %c0_22, %c0_23] : memref<2x48x144xf32, #tpu.memory_space<vmem>>, vector<1x48x144xf32>
    %34 = vector.shape_cast %33 : vector<1x48x144xf32> to vector<48x144xf32>
    %cst_24 = arith.constant dense<0.000000e+00> : vector<10x144xf32>
    %35 = tpu.matmul %32, %34, %cst_24 {dimension_numbers = #tpu.dot_dimension_numbers<[1], [0], [0], [1], [0, 0, 1, 1], [], []>} : vector<10x48xf32>, vector<48x144xf32>, vector<10x144xf32> -> vector<10x144xf32>
    %c0_25 = arith.constant 0 : index
    %c0_26 = arith.constant 0 : index
    %c0_27 = arith.constant 0 : index
    %36 = vector.load %arg8[%c0_25, %c0_26, %c0_27] : memref<2x1x144xf32, #tpu.memory_space<vmem>>, vector<1x1x144xf32>
    %37 = vector.shape_cast %36 : vector<1x1x144xf32> to vector<1x144xf32>
    %38 = vector.broadcast %37 : vector<1x144xf32> to vector<10x144xf32>
    %39 = arith.addf %35, %38 : vector<10x144xf32>
    %40 = vector.extract_strided_slice %39 {offsets = [0, 0], sizes = [5, 16], strides = [1, 1]} : vector<10x144xf32> to vector<5x16xf32>
    %41 = vector.extract_strided_slice %39 {offsets = [0, 48], sizes = [5, 16], strides = [1, 1]} : vector<10x144xf32> to vector<5x16xf32>
    %42 = vector.extract_strided_slice %39 {offsets = [0, 96], sizes = [5, 16], strides = [1, 1]} : vector<10x144xf32> to vector<5x16xf32>
    "tpu.trace_start"() <{level = 10 : i32, message = "qd,kd->qk"}> : () -> ()
    %cst_28 = arith.constant dense<0.000000e+00> : vector<5x5xf32>
    %43 = tpu.matmul %40, %41, %cst_28 {dimension_numbers = #tpu.dot_dimension_numbers<[1], [1], [0], [0], [0, 0, 1, 0], [], []>} : vector<5x16xf32>, vector<5x16xf32>, vector<5x5xf32> -> vector<5x5xf32>
    "tpu.trace_stop"() : () -> ()
    %cst_29 = arith.constant 2.500000e-01 : f32
    %44 = vector.broadcast %cst_29 : f32 to vector<5x5xf32>
    %45 = arith.mulf %43, %44 : vector<5x5xf32>
    %cst_30 = arith.constant dense<0xFF800000> : vector<5xf32>
    %46 = vector.multi_reduction <maximumf>, %45, %cst_30 [1] : vector<5x5xf32> to vector<5xf32>
    %47 = vector.shape_cast %46 : vector<5xf32> to vector<5x1xf32>
    %48 = vector.broadcast %47 : vector<5x1xf32> to vector<5x5xf32>
    %49 = arith.subf %45, %48 : vector<5x5xf32>
    %50 = math.exp %49 : vector<5x5xf32>
    %cst_31 = arith.constant dense<0.000000e+00> : vector<5xf32>
    %51 = vector.multi_reduction <add>, %50, %cst_31 [1] : vector<5x5xf32> to vector<5xf32>
    %52 = vector.shape_cast %51 : vector<5xf32> to vector<5x1xf32>
    %53 = vector.broadcast %52 : vector<5x1xf32> to vector<5x5xf32>
    %54 = arith.divf %50, %53 : vector<5x5xf32>
    %cst_32 = arith.constant dense<0.000000e+00> : vector<5x16xf32>
    %55 = tpu.matmul %54, %42, %cst_32 {dimension_numbers = #tpu.dot_dimension_numbers<[1], [0], [0], [1], [0, 0, 1, 1], [], []>} : vector<5x5xf32>, vector<5x16xf32>, vector<5x16xf32> -> vector<5x16xf32>
    %56 = vector.extract_strided_slice %39 {offsets = [0, 16], sizes = [5, 16], strides = [1, 1]} : vector<10x144xf32> to vector<5x16xf32>
    %57 = vector.extract_strided_slice %39 {offsets = [0, 64], sizes = [5, 16], strides = [1, 1]} : vector<10x144xf32> to vector<5x16xf32>
    %58 = vector.extract_strided_slice %39 {offsets = [0, 112], sizes = [5, 16], strides = [1, 1]} : vector<10x144xf32> to vector<5x16xf32>
    "tpu.trace_start"() <{level = 10 : i32, message = "qd,kd->qk"}> : () -> ()
    %cst_33 = arith.constant dense<0.000000e+00> : vector<5x5xf32>
    %59 = tpu.matmul %56, %57, %cst_33 {dimension_numbers = #tpu.dot_dimension_numbers<[1], [1], [0], [0], [0, 0, 1, 0], [], []>} : vector<5x16xf32>, vector<5x16xf32>, vector<5x5xf32> -> vector<5x5xf32>
    "tpu.trace_stop"() : () -> ()
    %cst_34 = arith.constant 2.500000e-01 : f32
    %60 = vector.broadcast %cst_34 : f32 to vector<5x5xf32>
    %61 = arith.mulf %59, %60 : vector<5x5xf32>
    %cst_35 = arith.constant dense<0xFF800000> : vector<5xf32>
    %62 = vector.multi_reduction <maximumf>, %61, %cst_35 [1] : vector<5x5xf32> to vector<5xf32>
    %63 = vector.shape_cast %62 : vector<5xf32> to vector<5x1xf32>
    %64 = vector.broadcast %63 : vector<5x1xf32> to vector<5x5xf32>
    %65 = arith.subf %61, %64 : vector<5x5xf32>
    %66 = math.exp %65 : vector<5x5xf32>
    %cst_36 = arith.constant dense<0.000000e+00> : vector<5xf32>
    %67 = vector.multi_reduction <add>, %66, %cst_36 [1] : vector<5x5xf32> to vector<5xf32>
    %68 = vector.shape_cast %67 : vector<5xf32> to vector<5x1xf32>
    %69 = vector.broadcast %68 : vector<5x1xf32> to vector<5x5xf32>
    %70 = arith.divf %66, %69 : vector<5x5xf32>
    %cst_37 = arith.constant dense<0.000000e+00> : vector<5x16xf32>
    %71 = tpu.matmul %70, %58, %cst_37 {dimension_numbers = #tpu.dot_dimension_numbers<[1], [0], [0], [1], [0, 0, 1, 1], [], []>} : vector<5x5xf32>, vector<5x16xf32>, vector<5x16xf32> -> vector<5x16xf32>
    %72 = vector.extract_strided_slice %39 {offsets = [0, 32], sizes = [5, 16], strides = [1, 1]} : vector<10x144xf32> to vector<5x16xf32>
    %73 = vector.extract_strided_slice %39 {offsets = [0, 80], sizes = [5, 16], strides = [1, 1]} : vector<10x144xf32> to vector<5x16xf32>
    %74 = vector.extract_strided_slice %39 {offsets = [0, 128], sizes = [5, 16], strides = [1, 1]} : vector<10x144xf32> to vector<5x16xf32>
    "tpu.trace_start"() <{level = 10 : i32, message = "qd,kd->qk"}> : () -> ()
    %cst_38 = arith.constant dense<0.000000e+00> : vector<5x5xf32>
    %75 = tpu.matmul %72, %73, %cst_38 {dimension_numbers = #tpu.dot_dimension_numbers<[1], [1], [0], [0], [0, 0, 1, 0], [], []>} : vector<5x16xf32>, vector<5x16xf32>, vector<5x5xf32> -> vector<5x5xf32>
    "tpu.trace_stop"() : () -> ()
    %cst_39 = arith.constant 2.500000e-01 : f32
    %76 = vector.broadcast %cst_39 : f32 to vector<5x5xf32>
    %77 = arith.mulf %75, %76 : vector<5x5xf32>
    %cst_40 = arith.constant dense<0xFF800000> : vector<5xf32>
    %78 = vector.multi_reduction <maximumf>, %77, %cst_40 [1] : vector<5x5xf32> to vector<5xf32>
    %79 = vector.shape_cast %78 : vector<5xf32> to vector<5x1xf32>
    %80 = vector.broadcast %79 : vector<5x1xf32> to vector<5x5xf32>
    %81 = arith.subf %77, %80 : vector<5x5xf32>
    %82 = math.exp %81 : vector<5x5xf32>
    %cst_41 = arith.constant dense<0.000000e+00> : vector<5xf32>
    %83 = vector.multi_reduction <add>, %82, %cst_41 [1] : vector<5x5xf32> to vector<5xf32>
    %84 = vector.shape_cast %83 : vector<5xf32> to vector<5x1xf32>
    %85 = vector.broadcast %84 : vector<5x1xf32> to vector<5x5xf32>
    %86 = arith.divf %82, %85 : vector<5x5xf32>
    %cst_42 = arith.constant dense<0.000000e+00> : vector<5x16xf32>
    %87 = tpu.matmul %86, %74, %cst_42 {dimension_numbers = #tpu.dot_dimension_numbers<[1], [0], [0], [1], [0, 0, 1, 1], [], []>} : vector<5x5xf32>, vector<5x16xf32>, vector<5x16xf32> -> vector<5x16xf32>
    %88 = tpu.concatenate %55, %71, %87 in 1 : vector<5x16xf32>, vector<5x16xf32>, vector<5x16xf32> -> vector<5x48xf32>
    %89 = vector.extract_strided_slice %39 {offsets = [5, 0], sizes = [5, 16], strides = [1, 1]} : vector<10x144xf32> to vector<5x16xf32>
    %90 = vector.extract_strided_slice %39 {offsets = [5, 48], sizes = [5, 16], strides = [1, 1]} : vector<10x144xf32> to vector<5x16xf32>
    %91 = vector.extract_strided_slice %39 {offsets = [5, 96], sizes = [5, 16], strides = [1, 1]} : vector<10x144xf32> to vector<5x16xf32>
    "tpu.trace_start"() <{level = 10 : i32, message = "qd,kd->qk"}> : () -> ()
    %cst_43 = arith.constant dense<0.000000e+00> : vector<5x5xf32>
    %92 = tpu.matmul %89, %90, %cst_43 {dimension_numbers = #tpu.dot_dimension_numbers<[1], [1], [0], [0], [0, 0, 1, 0], [], []>} : vector<5x16xf32>, vector<5x16xf32>, vector<5x5xf32> -> vector<5x5xf32>
    "tpu.trace_stop"() : () -> ()
    %cst_44 = arith.constant 2.500000e-01 : f32
    %93 = vector.broadcast %cst_44 : f32 to vector<5x5xf32>
    %94 = arith.mulf %92, %93 : vector<5x5xf32>
    %cst_45 = arith.constant dense<0xFF800000> : vector<5xf32>
    %95 = vector.multi_reduction <maximumf>, %94, %cst_45 [1] : vector<5x5xf32> to vector<5xf32>
    %96 = vector.shape_cast %95 : vector<5xf32> to vector<5x1xf32>
    %97 = vector.broadcast %96 : vector<5x1xf32> to vector<5x5xf32>
    %98 = arith.subf %94, %97 : vector<5x5xf32>
    %99 = math.exp %98 : vector<5x5xf32>
    %cst_46 = arith.constant dense<0.000000e+00> : vector<5xf32>
    %100 = vector.multi_reduction <add>, %99, %cst_46 [1] : vector<5x5xf32> to vector<5xf32>
    %101 = vector.shape_cast %100 : vector<5xf32> to vector<5x1xf32>
    %102 = vector.broadcast %101 : vector<5x1xf32> to vector<5x5xf32>
    %103 = arith.divf %99, %102 : vector<5x5xf32>
    %cst_47 = arith.constant dense<0.000000e+00> : vector<5x16xf32>
    %104 = tpu.matmul %103, %91, %cst_47 {dimension_numbers = #tpu.dot_dimension_numbers<[1], [0], [0], [1], [0, 0, 1, 1], [], []>} : vector<5x5xf32>, vector<5x16xf32>, vector<5x16xf32> -> vector<5x16xf32>
    %105 = vector.extract_strided_slice %39 {offsets = [5, 16], sizes = [5, 16], strides = [1, 1]} : vector<10x144xf32> to vector<5x16xf32>
    %106 = vector.extract_strided_slice %39 {offsets = [5, 64], sizes = [5, 16], strides = [1, 1]} : vector<10x144xf32> to vector<5x16xf32>
    %107 = vector.extract_strided_slice %39 {offsets = [5, 112], sizes = [5, 16], strides = [1, 1]} : vector<10x144xf32> to vector<5x16xf32>
    "tpu.trace_start"() <{level = 10 : i32, message = "qd,kd->qk"}> : () -> ()
    %cst_48 = arith.constant dense<0.000000e+00> : vector<5x5xf32>
    %108 = tpu.matmul %105, %106, %cst_48 {dimension_numbers = #tpu.dot_dimension_numbers<[1], [1], [0], [0], [0, 0, 1, 0], [], []>} : vector<5x16xf32>, vector<5x16xf32>, vector<5x5xf32> -> vector<5x5xf32>
    "tpu.trace_stop"() : () -> ()
    %cst_49 = arith.constant 2.500000e-01 : f32
    %109 = vector.broadcast %cst_49 : f32 to vector<5x5xf32>
    %110 = arith.mulf %108, %109 : vector<5x5xf32>
    %cst_50 = arith.constant dense<0xFF800000> : vector<5xf32>
    %111 = vector.multi_reduction <maximumf>, %110, %cst_50 [1] : vector<5x5xf32> to vector<5xf32>
    %112 = vector.shape_cast %111 : vector<5xf32> to vector<5x1xf32>
    %113 = vector.broadcast %112 : vector<5x1xf32> to vector<5x5xf32>
    %114 = arith.subf %110, %113 : vector<5x5xf32>
    %115 = math.exp %114 : vector<5x5xf32>
    %cst_51 = arith.constant dense<0.000000e+00> : vector<5xf32>
    %116 = vector.multi_reduction <add>, %115, %cst_51 [1] : vector<5x5xf32> to vector<5xf32>
    %117 = vector.shape_cast %116 : vector<5xf32> to vector<5x1xf32>
    %118 = vector.broadcast %117 : vector<5x1xf32> to vector<5x5xf32>
    %119 = arith.divf %115, %118 : vector<5x5xf32>
    %cst_52 = arith.constant dense<0.000000e+00> : vector<5x16xf32>
    %120 = tpu.matmul %119, %107, %cst_52 {dimension_numbers = #tpu.dot_dimension_numbers<[1], [0], [0], [1], [0, 0, 1, 1], [], []>} : vector<5x5xf32>, vector<5x16xf32>, vector<5x16xf32> -> vector<5x16xf32>
    %121 = vector.extract_strided_slice %39 {offsets = [5, 32], sizes = [5, 16], strides = [1, 1]} : vector<10x144xf32> to vector<5x16xf32>
    %122 = vector.extract_strided_slice %39 {offsets = [5, 80], sizes = [5, 16], strides = [1, 1]} : vector<10x144xf32> to vector<5x16xf32>
    %123 = vector.extract_strided_slice %39 {offsets = [5, 128], sizes = [5, 16], strides = [1, 1]} : vector<10x144xf32> to vector<5x16xf32>
    "tpu.trace_start"() <{level = 10 : i32, message = "qd,kd->qk"}> : () -> ()
    %cst_53 = arith.constant dense<0.000000e+00> : vector<5x5xf32>
    %124 = tpu.matmul %121, %122, %cst_53 {dimension_numbers = #tpu.dot_dimension_numbers<[1], [1], [0], [0], [0, 0, 1, 0], [], []>} : vector<5x16xf32>, vector<5x16xf32>, vector<5x5xf32> -> vector<5x5xf32>
    "tpu.trace_stop"() : () -> ()
    %cst_54 = arith.constant 2.500000e-01 : f32
    %125 = vector.broadcast %cst_54 : f32 to vector<5x5xf32>
    %126 = arith.mulf %124, %125 : vector<5x5xf32>
    %cst_55 = arith.constant dense<0xFF800000> : vector<5xf32>
    %127 = vector.multi_reduction <maximumf>, %126, %cst_55 [1] : vector<5x5xf32> to vector<5xf32>
    %128 = vector.shape_cast %127 : vector<5xf32> to vector<5x1xf32>
    %129 = vector.broadcast %128 : vector<5x1xf32> to vector<5x5xf32>
    %130 = arith.subf %126, %129 : vector<5x5xf32>
    %131 = math.exp %130 : vector<5x5xf32>
    %cst_56 = arith.constant dense<0.000000e+00> : vector<5xf32>
    %132 = vector.multi_reduction <add>, %131, %cst_56 [1] : vector<5x5xf32> to vector<5xf32>
    %133 = vector.shape_cast %132 : vector<5xf32> to vector<5x1xf32>
    %134 = vector.broadcast %133 : vector<5x1xf32> to vector<5x5xf32>
    %135 = arith.divf %131, %134 : vector<5x5xf32>
    %cst_57 = arith.constant dense<0.000000e+00> : vector<5x16xf32>
    %136 = tpu.matmul %135, %123, %cst_57 {dimension_numbers = #tpu.dot_dimension_numbers<[1], [0], [0], [1], [0, 0, 1, 1], [], []>} : vector<5x5xf32>, vector<5x16xf32>, vector<5x16xf32> -> vector<5x16xf32>
    %137 = tpu.concatenate %104, %120, %136 in 1 : vector<5x16xf32>, vector<5x16xf32>, vector<5x16xf32> -> vector<5x48xf32>
    %138 = tpu.concatenate %88, %137 in 0 : vector<5x48xf32>, vector<5x48xf32> -> vector<10x48xf32>
    %c0_58 = arith.constant 0 : index
    %c0_59 = arith.constant 0 : index
    %c0_60 = arith.constant 0 : index
    %139 = vector.load %arg9[%c0_58, %c0_59, %c0_60] : memref<2x48x48xf32, #tpu.memory_space<vmem>>, vector<1x48x48xf32>
    %140 = vector.shape_cast %139 : vector<1x48x48xf32> to vector<48x48xf32>
    %cst_61 = arith.constant dense<0.000000e+00> : vector<10x48xf32>
    %141 = tpu.matmul %138, %140, %cst_61 {dimension_numbers = #tpu.dot_dimension_numbers<[1], [0], [0], [1], [0, 0, 1, 1], [], []>} : vector<10x48xf32>, vector<48x48xf32>, vector<10x48xf32> -> vector<10x48xf32>
    %142 = arith.addf %8, %141 : vector<10x48xf32>
    %c0_62 = arith.constant 0 : index
    %c0_63 = arith.constant 0 : index
    %c0_64 = arith.constant 0 : index
    %143 = vector.load %arg10[%c0_62, %c0_63, %c0_64] : memref<2x1x48xf32, #tpu.memory_space<vmem>>, vector<1x1x48xf32>
    %144 = vector.shape_cast %143 : vector<1x1x48xf32> to vector<1x48xf32>
    %145 = vector.broadcast %144 : vector<1x48xf32> to vector<10x48xf32>
    %146 = arith.addf %142, %145 : vector<10x48xf32>
    %c0_65 = arith.constant 0 : index
    %c0_66 = arith.constant 0 : index
    %c0_67 = arith.constant 0 : index
    %147 = vector.load %arg11[%c0_65, %c0_66, %c0_67] : memref<2x1x48xf32, #tpu.memory_space<vmem>>, vector<1x1x48xf32>
    %148 = vector.shape_cast %147 : vector<1x1x48xf32> to vector<1x48xf32>
    %c0_68 = arith.constant 0 : index
    %c0_69 = arith.constant 0 : index
    %c0_70 = arith.constant 0 : index
    %149 = vector.load %arg12[%c0_68, %c0_69, %c0_70] : memref<2x1x48xf32, #tpu.memory_space<vmem>>, vector<1x1x48xf32>
    %150 = vector.shape_cast %149 : vector<1x1x48xf32> to vector<1x48xf32>
    %cst_71 = arith.constant dense<0.000000e+00> : vector<10xf32>
    %151 = vector.multi_reduction <add>, %146, %cst_71 [1] : vector<10x48xf32> to vector<10xf32>
    %152 = vector.shape_cast %151 : vector<10xf32> to vector<10x1xf32>
    %cst_72 = arith.constant 0.020833334 : f32
    %153 = vector.broadcast %cst_72 : f32 to vector<10x1xf32>
    %154 = arith.mulf %152, %153 : vector<10x1xf32>
    %155 = vector.broadcast %154 : vector<10x1xf32> to vector<10x48xf32>
    %156 = arith.subf %146, %155 : vector<10x48xf32>
    %157 = arith.mulf %156, %156 : vector<10x48xf32>
    %cst_73 = arith.constant dense<0.000000e+00> : vector<10xf32>
    %158 = vector.multi_reduction <add>, %157, %cst_73 [1] : vector<10x48xf32> to vector<10xf32>
    %159 = vector.shape_cast %158 : vector<10xf32> to vector<10x1xf32>
    %cst_74 = arith.constant 0.020833334 : f32
    %160 = vector.broadcast %cst_74 : f32 to vector<10x1xf32>
    %161 = arith.mulf %159, %160 : vector<10x1xf32>
    %cst_75 = arith.constant 9.99999974E-6 : f32
    %162 = vector.broadcast %cst_75 : f32 to vector<10x1xf32>
    %163 = arith.addf %161, %162 : vector<10x1xf32>
    %164 = math.rsqrt %163 : vector<10x1xf32>
    %165 = vector.broadcast %164 : vector<10x1xf32> to vector<10x48xf32>
    %166 = arith.mulf %156, %165 : vector<10x48xf32>
    %167 = vector.broadcast %148 : vector<1x48xf32> to vector<10x48xf32>
    %168 = arith.mulf %166, %167 : vector<10x48xf32>
    %169 = vector.broadcast %150 : vector<1x48xf32> to vector<10x48xf32>
    %170 = arith.addf %168, %169 : vector<10x48xf32>
    %c0_76 = arith.constant 0 : index
    %c0_77 = arith.constant 0 : index
    %c0_78 = arith.constant 0 : index
    %171 = vector.load %arg13[%c0_76, %c0_77, %c0_78] : memref<2x48x192xf32, #tpu.memory_space<vmem>>, vector<1x48x192xf32>
    %172 = vector.shape_cast %171 : vector<1x48x192xf32> to vector<48x192xf32>
    %cst_79 = arith.constant dense<0.000000e+00> : vector<10x192xf32>
    %173 = tpu.matmul %170, %172, %cst_79 {dimension_numbers = #tpu.dot_dimension_numbers<[1], [0], [0], [1], [0, 0, 1, 1], [], []>} : vector<10x48xf32>, vector<48x192xf32>, vector<10x192xf32> -> vector<10x192xf32>
    %c0_80 = arith.constant 0 : index
    %c0_81 = arith.constant 0 : index
    %c0_82 = arith.constant 0 : index
    %174 = vector.load %arg14[%c0_80, %c0_81, %c0_82] : memref<2x1x192xf32, #tpu.memory_space<vmem>>, vector<1x1x192xf32>
    %175 = vector.shape_cast %174 : vector<1x1x192xf32> to vector<1x192xf32>
    %176 = vector.broadcast %175 : vector<1x192xf32> to vector<10x192xf32>
    %177 = arith.addf %173, %176 : vector<10x192xf32>
    %cst_83 = arith.constant 5.000000e-01 : f32
    %178 = vector.broadcast %cst_83 : f32 to vector<10x192xf32>
    %179 = arith.mulf %178, %177 : vector<10x192xf32>
    %cst_84 = arith.constant 4.471500e-02 : f32
    %180 = vector.broadcast %cst_84 : f32 to vector<10x192xf32>
    %181 = arith.mulf %180, %177 : vector<10x192xf32>
    %182 = arith.mulf %181, %177 : vector<10x192xf32>
    %183 = arith.mulf %182, %177 : vector<10x192xf32>
    %184 = arith.addf %177, %183 : vector<10x192xf32>
    %cst_85 = arith.constant 0.797884583 : f32
    %185 = vector.broadcast %cst_85 : f32 to vector<10x192xf32>
    %186 = arith.mulf %185, %184 : vector<10x192xf32>
    %187 = math.tanh %186 : vector<10x192xf32>
    %cst_86 = arith.constant 1.000000e+00 : f32
    %188 = vector.broadcast %cst_86 : f32 to vector<10x192xf32>
    %189 = arith.addf %188, %187 : vector<10x192xf32>
    %190 = arith.mulf %179, %189 : vector<10x192xf32>
    %c0_87 = arith.constant 0 : index
    %c0_88 = arith.constant 0 : index
    %c0_89 = arith.constant 0 : index
    %191 = vector.load %arg15[%c0_87, %c0_88, %c0_89] : memref<2x192x48xf32, #tpu.memory_space<vmem>>, vector<1x192x48xf32>
    %192 = vector.shape_cast %191 : vector<1x192x48xf32> to vector<192x48xf32>
    %cst_90 = arith.constant dense<0.000000e+00> : vector<10x48xf32>
    %193 = tpu.matmul %190, %192, %cst_90 {dimension_numbers = #tpu.dot_dimension_numbers<[1], [0], [0], [1], [0, 0, 1, 1], [], []>} : vector<10x192xf32>, vector<192x48xf32>, vector<10x48xf32> -> vector<10x48xf32>
    %194 = arith.addf %146, %193 : vector<10x48xf32>
    %c0_91 = arith.constant 0 : index
    %c0_92 = arith.constant 0 : index
    %c0_93 = arith.constant 0 : index
    %195 = vector.load %arg16[%c0_91, %c0_92, %c0_93] : memref<2x1x48xf32, #tpu.memory_space<vmem>>, vector<1x1x48xf32>
    %196 = vector.shape_cast %195 : vector<1x1x48xf32> to vector<1x48xf32>
    %197 = vector.broadcast %196 : vector<1x48xf32> to vector<10x48xf32>
    %198 = arith.addf %194, %197 : vector<10x48xf32>
    %c1 = arith.constant 1 : index
    %c0_94 = arith.constant 0 : index
    %c0_95 = arith.constant 0 : index
    %199 = vector.load %arg5[%c1, %c0_94, %c0_95] : memref<2x1x48xf32, #tpu.memory_space<vmem>>, vector<1x1x48xf32>
    %200 = vector.shape_cast %199 : vector<1x1x48xf32> to vector<1x48xf32>
    %c1_96 = arith.constant 1 : index
    %c0_97 = arith.constant 0 : index
    %c0_98 = arith.constant 0 : index
    %201 = vector.load %arg6[%c1_96, %c0_97, %c0_98] : memref<2x1x48xf32, #tpu.memory_space<vmem>>, vector<1x1x48xf32>
    %202 = vector.shape_cast %201 : vector<1x1x48xf32> to vector<1x48xf32>
    %cst_99 = arith.constant dense<0.000000e+00> : vector<10xf32>
    %203 = vector.multi_reduction <add>, %198, %cst_99 [1] : vector<10x48xf32> to vector<10xf32>
    %204 = vector.shape_cast %203 : vector<10xf32> to vector<10x1xf32>
    %cst_100 = arith.constant 0.020833334 : f32
    %205 = vector.broadcast %cst_100 : f32 to vector<10x1xf32>
    %206 = arith.mulf %204, %205 : vector<10x1xf32>
    %207 = vector.broadcast %206 : vector<10x1xf32> to vector<10x48xf32>
    %208 = arith.subf %198, %207 : vector<10x48xf32>
    %209 = arith.mulf %208, %208 : vector<10x48xf32>
    %cst_101 = arith.constant dense<0.000000e+00> : vector<10xf32>
    %210 = vector.multi_reduction <add>, %209, %cst_101 [1] : vector<10x48xf32> to vector<10xf32>
    %211 = vector.shape_cast %210 : vector<10xf32> to vector<10x1xf32>
    %cst_102 = arith.constant 0.020833334 : f32
    %212 = vector.broadcast %cst_102 : f32 to vector<10x1xf32>
    %213 = arith.mulf %211, %212 : vector<10x1xf32>
    %cst_103 = arith.constant 9.99999974E-6 : f32
    %214 = vector.broadcast %cst_103 : f32 to vector<10x1xf32>
    %215 = arith.addf %213, %214 : vector<10x1xf32>
    %216 = math.rsqrt %215 : vector<10x1xf32>
    %217 = vector.broadcast %216 : vector<10x1xf32> to vector<10x48xf32>
    %218 = arith.mulf %208, %217 : vector<10x48xf32>
    %219 = vector.broadcast %200 : vector<1x48xf32> to vector<10x48xf32>
    %220 = arith.mulf %218, %219 : vector<10x48xf32>
    %221 = vector.broadcast %202 : vector<1x48xf32> to vector<10x48xf32>
    %222 = arith.addf %220, %221 : vector<10x48xf32>
    %c1_104 = arith.constant 1 : index
    %c0_105 = arith.constant 0 : index
    %c0_106 = arith.constant 0 : index
    %223 = vector.load %arg7[%c1_104, %c0_105, %c0_106] : memref<2x48x144xf32, #tpu.memory_space<vmem>>, vector<1x48x144xf32>
    %224 = vector.shape_cast %223 : vector<1x48x144xf32> to vector<48x144xf32>
    %cst_107 = arith.constant dense<0.000000e+00> : vector<10x144xf32>
    %225 = tpu.matmul %222, %224, %cst_107 {dimension_numbers = #tpu.dot_dimension_numbers<[1], [0], [0], [1], [0, 0, 1, 1], [], []>} : vector<10x48xf32>, vector<48x144xf32>, vector<10x144xf32> -> vector<10x144xf32>
    %c1_108 = arith.constant 1 : index
    %c0_109 = arith.constant 0 : index
    %c0_110 = arith.constant 0 : index
    %226 = vector.load %arg8[%c1_108, %c0_109, %c0_110] : memref<2x1x144xf32, #tpu.memory_space<vmem>>, vector<1x1x144xf32>
    %227 = vector.shape_cast %226 : vector<1x1x144xf32> to vector<1x144xf32>
    %228 = vector.broadcast %227 : vector<1x144xf32> to vector<10x144xf32>
    %229 = arith.addf %225, %228 : vector<10x144xf32>
    %230 = vector.extract_strided_slice %229 {offsets = [0, 0], sizes = [5, 16], strides = [1, 1]} : vector<10x144xf32> to vector<5x16xf32>
    %231 = vector.extract_strided_slice %229 {offsets = [0, 48], sizes = [5, 16], strides = [1, 1]} : vector<10x144xf32> to vector<5x16xf32>
    %232 = vector.extract_strided_slice %229 {offsets = [0, 96], sizes = [5, 16], strides = [1, 1]} : vector<10x144xf32> to vector<5x16xf32>
    "tpu.trace_start"() <{level = 10 : i32, message = "qd,kd->qk"}> : () -> ()
    %cst_111 = arith.constant dense<0.000000e+00> : vector<5x5xf32>
    %233 = tpu.matmul %230, %231, %cst_111 {dimension_numbers = #tpu.dot_dimension_numbers<[1], [1], [0], [0], [0, 0, 1, 0], [], []>} : vector<5x16xf32>, vector<5x16xf32>, vector<5x5xf32> -> vector<5x5xf32>
    "tpu.trace_stop"() : () -> ()
    %cst_112 = arith.constant 2.500000e-01 : f32
    %234 = vector.broadcast %cst_112 : f32 to vector<5x5xf32>
    %235 = arith.mulf %233, %234 : vector<5x5xf32>
    %cst_113 = arith.constant dense<0xFF800000> : vector<5xf32>
    %236 = vector.multi_reduction <maximumf>, %235, %cst_113 [1] : vector<5x5xf32> to vector<5xf32>
    %237 = vector.shape_cast %236 : vector<5xf32> to vector<5x1xf32>
    %238 = vector.broadcast %237 : vector<5x1xf32> to vector<5x5xf32>
    %239 = arith.subf %235, %238 : vector<5x5xf32>
    %240 = math.exp %239 : vector<5x5xf32>
    %cst_114 = arith.constant dense<0.000000e+00> : vector<5xf32>
    %241 = vector.multi_reduction <add>, %240, %cst_114 [1] : vector<5x5xf32> to vector<5xf32>
    %242 = vector.shape_cast %241 : vector<5xf32> to vector<5x1xf32>
    %243 = vector.broadcast %242 : vector<5x1xf32> to vector<5x5xf32>
    %244 = arith.divf %240, %243 : vector<5x5xf32>
    %cst_115 = arith.constant dense<0.000000e+00> : vector<5x16xf32>
    %245 = tpu.matmul %244, %232, %cst_115 {dimension_numbers = #tpu.dot_dimension_numbers<[1], [0], [0], [1], [0, 0, 1, 1], [], []>} : vector<5x5xf32>, vector<5x16xf32>, vector<5x16xf32> -> vector<5x16xf32>
    %246 = vector.extract_strided_slice %229 {offsets = [0, 16], sizes = [5, 16], strides = [1, 1]} : vector<10x144xf32> to vector<5x16xf32>
    %247 = vector.extract_strided_slice %229 {offsets = [0, 64], sizes = [5, 16], strides = [1, 1]} : vector<10x144xf32> to vector<5x16xf32>
    %248 = vector.extract_strided_slice %229 {offsets = [0, 112], sizes = [5, 16], strides = [1, 1]} : vector<10x144xf32> to vector<5x16xf32>
    "tpu.trace_start"() <{level = 10 : i32, message = "qd,kd->qk"}> : () -> ()
    %cst_116 = arith.constant dense<0.000000e+00> : vector<5x5xf32>
    %249 = tpu.matmul %246, %247, %cst_116 {dimension_numbers = #tpu.dot_dimension_numbers<[1], [1], [0], [0], [0, 0, 1, 0], [], []>} : vector<5x16xf32>, vector<5x16xf32>, vector<5x5xf32> -> vector<5x5xf32>
    "tpu.trace_stop"() : () -> ()
    %cst_117 = arith.constant 2.500000e-01 : f32
    %250 = vector.broadcast %cst_117 : f32 to vector<5x5xf32>
    %251 = arith.mulf %249, %250 : vector<5x5xf32>
    %cst_118 = arith.constant dense<0xFF800000> : vector<5xf32>
    %252 = vector.multi_reduction <maximumf>, %251, %cst_118 [1] : vector<5x5xf32> to vector<5xf32>
    %253 = vector.shape_cast %252 : vector<5xf32> to vector<5x1xf32>
    %254 = vector.broadcast %253 : vector<5x1xf32> to vector<5x5xf32>
    %255 = arith.subf %251, %254 : vector<5x5xf32>
    %256 = math.exp %255 : vector<5x5xf32>
    %cst_119 = arith.constant dense<0.000000e+00> : vector<5xf32>
    %257 = vector.multi_reduction <add>, %256, %cst_119 [1] : vector<5x5xf32> to vector<5xf32>
    %258 = vector.shape_cast %257 : vector<5xf32> to vector<5x1xf32>
    %259 = vector.broadcast %258 : vector<5x1xf32> to vector<5x5xf32>
    %260 = arith.divf %256, %259 : vector<5x5xf32>
    %cst_120 = arith.constant dense<0.000000e+00> : vector<5x16xf32>
    %261 = tpu.matmul %260, %248, %cst_120 {dimension_numbers = #tpu.dot_dimension_numbers<[1], [0], [0], [1], [0, 0, 1, 1], [], []>} : vector<5x5xf32>, vector<5x16xf32>, vector<5x16xf32> -> vector<5x16xf32>
    %262 = vector.extract_strided_slice %229 {offsets = [0, 32], sizes = [5, 16], strides = [1, 1]} : vector<10x144xf32> to vector<5x16xf32>
    %263 = vector.extract_strided_slice %229 {offsets = [0, 80], sizes = [5, 16], strides = [1, 1]} : vector<10x144xf32> to vector<5x16xf32>
    %264 = vector.extract_strided_slice %229 {offsets = [0, 128], sizes = [5, 16], strides = [1, 1]} : vector<10x144xf32> to vector<5x16xf32>
    "tpu.trace_start"() <{level = 10 : i32, message = "qd,kd->qk"}> : () -> ()
    %cst_121 = arith.constant dense<0.000000e+00> : vector<5x5xf32>
    %265 = tpu.matmul %262, %263, %cst_121 {dimension_numbers = #tpu.dot_dimension_numbers<[1], [1], [0], [0], [0, 0, 1, 0], [], []>} : vector<5x16xf32>, vector<5x16xf32>, vector<5x5xf32> -> vector<5x5xf32>
    "tpu.trace_stop"() : () -> ()
    %cst_122 = arith.constant 2.500000e-01 : f32
    %266 = vector.broadcast %cst_122 : f32 to vector<5x5xf32>
    %267 = arith.mulf %265, %266 : vector<5x5xf32>
    %cst_123 = arith.constant dense<0xFF800000> : vector<5xf32>
    %268 = vector.multi_reduction <maximumf>, %267, %cst_123 [1] : vector<5x5xf32> to vector<5xf32>
    %269 = vector.shape_cast %268 : vector<5xf32> to vector<5x1xf32>
    %270 = vector.broadcast %269 : vector<5x1xf32> to vector<5x5xf32>
    %271 = arith.subf %267, %270 : vector<5x5xf32>
    %272 = math.exp %271 : vector<5x5xf32>
    %cst_124 = arith.constant dense<0.000000e+00> : vector<5xf32>
    %273 = vector.multi_reduction <add>, %272, %cst_124 [1] : vector<5x5xf32> to vector<5xf32>
    %274 = vector.shape_cast %273 : vector<5xf32> to vector<5x1xf32>
    %275 = vector.broadcast %274 : vector<5x1xf32> to vector<5x5xf32>
    %276 = arith.divf %272, %275 : vector<5x5xf32>
    %cst_125 = arith.constant dense<0.000000e+00> : vector<5x16xf32>
    %277 = tpu.matmul %276, %264, %cst_125 {dimension_numbers = #tpu.dot_dimension_numbers<[1], [0], [0], [1], [0, 0, 1, 1], [], []>} : vector<5x5xf32>, vector<5x16xf32>, vector<5x16xf32> -> vector<5x16xf32>
    %278 = tpu.concatenate %245, %261, %277 in 1 : vector<5x16xf32>, vector<5x16xf32>, vector<5x16xf32> -> vector<5x48xf32>
    %279 = vector.extract_strided_slice %229 {offsets = [5, 0], sizes = [5, 16], strides = [1, 1]} : vector<10x144xf32> to vector<5x16xf32>
    %280 = vector.extract_strided_slice %229 {offsets = [5, 48], sizes = [5, 16], strides = [1, 1]} : vector<10x144xf32> to vector<5x16xf32>
    %281 = vector.extract_strided_slice %229 {offsets = [5, 96], sizes = [5, 16], strides = [1, 1]} : vector<10x144xf32> to vector<5x16xf32>
    "tpu.trace_start"() <{level = 10 : i32, message = "qd,kd->qk"}> : () -> ()
    %cst_126 = arith.constant dense<0.000000e+00> : vector<5x5xf32>
    %282 = tpu.matmul %279, %280, %cst_126 {dimension_numbers = #tpu.dot_dimension_numbers<[1], [1], [0], [0], [0, 0, 1, 0], [], []>} : vector<5x16xf32>, vector<5x16xf32>, vector<5x5xf32> -> vector<5x5xf32>
    "tpu.trace_stop"() : () -> ()
    %cst_127 = arith.constant 2.500000e-01 : f32
    %283 = vector.broadcast %cst_127 : f32 to vector<5x5xf32>
    %284 = arith.mulf %282, %283 : vector<5x5xf32>
    %cst_128 = arith.constant dense<0xFF800000> : vector<5xf32>
    %285 = vector.multi_reduction <maximumf>, %284, %cst_128 [1] : vector<5x5xf32> to vector<5xf32>
    %286 = vector.shape_cast %285 : vector<5xf32> to vector<5x1xf32>
    %287 = vector.broadcast %286 : vector<5x1xf32> to vector<5x5xf32>
    %288 = arith.subf %284, %287 : vector<5x5xf32>
    %289 = math.exp %288 : vector<5x5xf32>
    %cst_129 = arith.constant dense<0.000000e+00> : vector<5xf32>
    %290 = vector.multi_reduction <add>, %289, %cst_129 [1] : vector<5x5xf32> to vector<5xf32>
    %291 = vector.shape_cast %290 : vector<5xf32> to vector<5x1xf32>
    %292 = vector.broadcast %291 : vector<5x1xf32> to vector<5x5xf32>
    %293 = arith.divf %289, %292 : vector<5x5xf32>
    %cst_130 = arith.constant dense<0.000000e+00> : vector<5x16xf32>
    %294 = tpu.matmul %293, %281, %cst_130 {dimension_numbers = #tpu.dot_dimension_numbers<[1], [0], [0], [1], [0, 0, 1, 1], [], []>} : vector<5x5xf32>, vector<5x16xf32>, vector<5x16xf32> -> vector<5x16xf32>
    %295 = vector.extract_strided_slice %229 {offsets = [5, 16], sizes = [5, 16], strides = [1, 1]} : vector<10x144xf32> to vector<5x16xf32>
    %296 = vector.extract_strided_slice %229 {offsets = [5, 64], sizes = [5, 16], strides = [1, 1]} : vector<10x144xf32> to vector<5x16xf32>
    %297 = vector.extract_strided_slice %229 {offsets = [5, 112], sizes = [5, 16], strides = [1, 1]} : vector<10x144xf32> to vector<5x16xf32>
    "tpu.trace_start"() <{level = 10 : i32, message = "qd,kd->qk"}> : () -> ()
    %cst_131 = arith.constant dense<0.000000e+00> : vector<5x5xf32>
    %298 = tpu.matmul %295, %296, %cst_131 {dimension_numbers = #tpu.dot_dimension_numbers<[1], [1], [0], [0], [0, 0, 1, 0], [], []>} : vector<5x16xf32>, vector<5x16xf32>, vector<5x5xf32> -> vector<5x5xf32>
    "tpu.trace_stop"() : () -> ()
    %cst_132 = arith.constant 2.500000e-01 : f32
    %299 = vector.broadcast %cst_132 : f32 to vector<5x5xf32>
    %300 = arith.mulf %298, %299 : vector<5x5xf32>
    %cst_133 = arith.constant dense<0xFF800000> : vector<5xf32>
    %301 = vector.multi_reduction <maximumf>, %300, %cst_133 [1] : vector<5x5xf32> to vector<5xf32>
    %302 = vector.shape_cast %301 : vector<5xf32> to vector<5x1xf32>
    %303 = vector.broadcast %302 : vector<5x1xf32> to vector<5x5xf32>
    %304 = arith.subf %300, %303 : vector<5x5xf32>
    %305 = math.exp %304 : vector<5x5xf32>
    %cst_134 = arith.constant dense<0.000000e+00> : vector<5xf32>
    %306 = vector.multi_reduction <add>, %305, %cst_134 [1] : vector<5x5xf32> to vector<5xf32>
    %307 = vector.shape_cast %306 : vector<5xf32> to vector<5x1xf32>
    %308 = vector.broadcast %307 : vector<5x1xf32> to vector<5x5xf32>
    %309 = arith.divf %305, %308 : vector<5x5xf32>
    %cst_135 = arith.constant dense<0.000000e+00> : vector<5x16xf32>
    %310 = tpu.matmul %309, %297, %cst_135 {dimension_numbers = #tpu.dot_dimension_numbers<[1], [0], [0], [1], [0, 0, 1, 1], [], []>} : vector<5x5xf32>, vector<5x16xf32>, vector<5x16xf32> -> vector<5x16xf32>
    %311 = vector.extract_strided_slice %229 {offsets = [5, 32], sizes = [5, 16], strides = [1, 1]} : vector<10x144xf32> to vector<5x16xf32>
    %312 = vector.extract_strided_slice %229 {offsets = [5, 80], sizes = [5, 16], strides = [1, 1]} : vector<10x144xf32> to vector<5x16xf32>
    %313 = vector.extract_strided_slice %229 {offsets = [5, 128], sizes = [5, 16], strides = [1, 1]} : vector<10x144xf32> to vector<5x16xf32>
    "tpu.trace_start"() <{level = 10 : i32, message = "qd,kd->qk"}> : () -> ()
    %cst_136 = arith.constant dense<0.000000e+00> : vector<5x5xf32>
    %314 = tpu.matmul %311, %312, %cst_136 {dimension_numbers = #tpu.dot_dimension_numbers<[1], [1], [0], [0], [0, 0, 1, 0], [], []>} : vector<5x16xf32>, vector<5x16xf32>, vector<5x5xf32> -> vector<5x5xf32>
    "tpu.trace_stop"() : () -> ()
    %cst_137 = arith.constant 2.500000e-01 : f32
    %315 = vector.broadcast %cst_137 : f32 to vector<5x5xf32>
    %316 = arith.mulf %314, %315 : vector<5x5xf32>
    %cst_138 = arith.constant dense<0xFF800000> : vector<5xf32>
    %317 = vector.multi_reduction <maximumf>, %316, %cst_138 [1] : vector<5x5xf32> to vector<5xf32>
    %318 = vector.shape_cast %317 : vector<5xf32> to vector<5x1xf32>
    %319 = vector.broadcast %318 : vector<5x1xf32> to vector<5x5xf32>
    %320 = arith.subf %316, %319 : vector<5x5xf32>
    %321 = math.exp %320 : vector<5x5xf32>
    %cst_139 = arith.constant dense<0.000000e+00> : vector<5xf32>
    %322 = vector.multi_reduction <add>, %321, %cst_139 [1] : vector<5x5xf32> to vector<5xf32>
    %323 = vector.shape_cast %322 : vector<5xf32> to vector<5x1xf32>
    %324 = vector.broadcast %323 : vector<5x1xf32> to vector<5x5xf32>
    %325 = arith.divf %321, %324 : vector<5x5xf32>
    %cst_140 = arith.constant dense<0.000000e+00> : vector<5x16xf32>
    %326 = tpu.matmul %325, %313, %cst_140 {dimension_numbers = #tpu.dot_dimension_numbers<[1], [0], [0], [1], [0, 0, 1, 1], [], []>} : vector<5x5xf32>, vector<5x16xf32>, vector<5x16xf32> -> vector<5x16xf32>
    %327 = tpu.concatenate %294, %310, %326 in 1 : vector<5x16xf32>, vector<5x16xf32>, vector<5x16xf32> -> vector<5x48xf32>
    %328 = tpu.concatenate %278, %327 in 0 : vector<5x48xf32>, vector<5x48xf32> -> vector<10x48xf32>
    %c1_141 = arith.constant 1 : index
    %c0_142 = arith.constant 0 : index
    %c0_143 = arith.constant 0 : index
    %329 = vector.load %arg9[%c1_141, %c0_142, %c0_143] : memref<2x48x48xf32, #tpu.memory_space<vmem>>, vector<1x48x48xf32>
    %330 = vector.shape_cast %329 : vector<1x48x48xf32> to vector<48x48xf32>
    %cst_144 = arith.constant dense<0.000000e+00> : vector<10x48xf32>
    %331 = tpu.matmul %328, %330, %cst_144 {dimension_numbers = #tpu.dot_dimension_numbers<[1], [0], [0], [1], [0, 0, 1, 1], [], []>} : vector<10x48xf32>, vector<48x48xf32>, vector<10x48xf32> -> vector<10x48xf32>
    %332 = arith.addf %198, %331 : vector<10x48xf32>
    %c1_145 = arith.constant 1 : index
    %c0_146 = arith.constant 0 : index
    %c0_147 = arith.constant 0 : index
    %333 = vector.load %arg10[%c1_145, %c0_146, %c0_147] : memref<2x1x48xf32, #tpu.memory_space<vmem>>, vector<1x1x48xf32>
    %334 = vector.shape_cast %333 : vector<1x1x48xf32> to vector<1x48xf32>
    %335 = vector.broadcast %334 : vector<1x48xf32> to vector<10x48xf32>
    %336 = arith.addf %332, %335 : vector<10x48xf32>
    %c1_148 = arith.constant 1 : index
    %c0_149 = arith.constant 0 : index
    %c0_150 = arith.constant 0 : index
    %337 = vector.load %arg11[%c1_148, %c0_149, %c0_150] : memref<2x1x48xf32, #tpu.memory_space<vmem>>, vector<1x1x48xf32>
    %338 = vector.shape_cast %337 : vector<1x1x48xf32> to vector<1x48xf32>
    %c1_151 = arith.constant 1 : index
    %c0_152 = arith.constant 0 : index
    %c0_153 = arith.constant 0 : index
    %339 = vector.load %arg12[%c1_151, %c0_152, %c0_153] : memref<2x1x48xf32, #tpu.memory_space<vmem>>, vector<1x1x48xf32>
    %340 = vector.shape_cast %339 : vector<1x1x48xf32> to vector<1x48xf32>
    %cst_154 = arith.constant dense<0.000000e+00> : vector<10xf32>
    %341 = vector.multi_reduction <add>, %336, %cst_154 [1] : vector<10x48xf32> to vector<10xf32>
    %342 = vector.shape_cast %341 : vector<10xf32> to vector<10x1xf32>
    %cst_155 = arith.constant 0.020833334 : f32
    %343 = vector.broadcast %cst_155 : f32 to vector<10x1xf32>
    %344 = arith.mulf %342, %343 : vector<10x1xf32>
    %345 = vector.broadcast %344 : vector<10x1xf32> to vector<10x48xf32>
    %346 = arith.subf %336, %345 : vector<10x48xf32>
    %347 = arith.mulf %346, %346 : vector<10x48xf32>
    %cst_156 = arith.constant dense<0.000000e+00> : vector<10xf32>
    %348 = vector.multi_reduction <add>, %347, %cst_156 [1] : vector<10x48xf32> to vector<10xf32>
    %349 = vector.shape_cast %348 : vector<10xf32> to vector<10x1xf32>
    %cst_157 = arith.constant 0.020833334 : f32
    %350 = vector.broadcast %cst_157 : f32 to vector<10x1xf32>
    %351 = arith.mulf %349, %350 : vector<10x1xf32>
    %cst_158 = arith.constant 9.99999974E-6 : f32
    %352 = vector.broadcast %cst_158 : f32 to vector<10x1xf32>
    %353 = arith.addf %351, %352 : vector<10x1xf32>
    %354 = math.rsqrt %353 : vector<10x1xf32>
    %355 = vector.broadcast %354 : vector<10x1xf32> to vector<10x48xf32>
    %356 = arith.mulf %346, %355 : vector<10x48xf32>
    %357 = vector.broadcast %338 : vector<1x48xf32> to vector<10x48xf32>
    %358 = arith.mulf %356, %357 : vector<10x48xf32>
    %359 = vector.broadcast %340 : vector<1x48xf32> to vector<10x48xf32>
    %360 = arith.addf %358, %359 : vector<10x48xf32>
    %c1_159 = arith.constant 1 : index
    %c0_160 = arith.constant 0 : index
    %c0_161 = arith.constant 0 : index
    %361 = vector.load %arg13[%c1_159, %c0_160, %c0_161] : memref<2x48x192xf32, #tpu.memory_space<vmem>>, vector<1x48x192xf32>
    %362 = vector.shape_cast %361 : vector<1x48x192xf32> to vector<48x192xf32>
    %cst_162 = arith.constant dense<0.000000e+00> : vector<10x192xf32>
    %363 = tpu.matmul %360, %362, %cst_162 {dimension_numbers = #tpu.dot_dimension_numbers<[1], [0], [0], [1], [0, 0, 1, 1], [], []>} : vector<10x48xf32>, vector<48x192xf32>, vector<10x192xf32> -> vector<10x192xf32>
    %c1_163 = arith.constant 1 : index
    %c0_164 = arith.constant 0 : index
    %c0_165 = arith.constant 0 : index
    %364 = vector.load %arg14[%c1_163, %c0_164, %c0_165] : memref<2x1x192xf32, #tpu.memory_space<vmem>>, vector<1x1x192xf32>
    %365 = vector.shape_cast %364 : vector<1x1x192xf32> to vector<1x192xf32>
    %366 = vector.broadcast %365 : vector<1x192xf32> to vector<10x192xf32>
    %367 = arith.addf %363, %366 : vector<10x192xf32>
    %cst_166 = arith.constant 5.000000e-01 : f32
    %368 = vector.broadcast %cst_166 : f32 to vector<10x192xf32>
    %369 = arith.mulf %368, %367 : vector<10x192xf32>
    %cst_167 = arith.constant 4.471500e-02 : f32
    %370 = vector.broadcast %cst_167 : f32 to vector<10x192xf32>
    %371 = arith.mulf %370, %367 : vector<10x192xf32>
    %372 = arith.mulf %371, %367 : vector<10x192xf32>
    %373 = arith.mulf %372, %367 : vector<10x192xf32>
    %374 = arith.addf %367, %373 : vector<10x192xf32>
    %cst_168 = arith.constant 0.797884583 : f32
    %375 = vector.broadcast %cst_168 : f32 to vector<10x192xf32>
    %376 = arith.mulf %375, %374 : vector<10x192xf32>
    %377 = math.tanh %376 : vector<10x192xf32>
    %cst_169 = arith.constant 1.000000e+00 : f32
    %378 = vector.broadcast %cst_169 : f32 to vector<10x192xf32>
    %379 = arith.addf %378, %377 : vector<10x192xf32>
    %380 = arith.mulf %369, %379 : vector<10x192xf32>
    %c1_170 = arith.constant 1 : index
    %c0_171 = arith.constant 0 : index
    %c0_172 = arith.constant 0 : index
    %381 = vector.load %arg15[%c1_170, %c0_171, %c0_172] : memref<2x192x48xf32, #tpu.memory_space<vmem>>, vector<1x192x48xf32>
    %382 = vector.shape_cast %381 : vector<1x192x48xf32> to vector<192x48xf32>
    %cst_173 = arith.constant dense<0.000000e+00> : vector<10x48xf32>
    %383 = tpu.matmul %380, %382, %cst_173 {dimension_numbers = #tpu.dot_dimension_numbers<[1], [0], [0], [1], [0, 0, 1, 1], [], []>} : vector<10x192xf32>, vector<192x48xf32>, vector<10x48xf32> -> vector<10x48xf32>
    %384 = arith.addf %336, %383 : vector<10x48xf32>
    %c1_174 = arith.constant 1 : index
    %c0_175 = arith.constant 0 : index
    %c0_176 = arith.constant 0 : index
    %385 = vector.load %arg16[%c1_174, %c0_175, %c0_176] : memref<2x1x48xf32, #tpu.memory_space<vmem>>, vector<1x1x48xf32>
    %386 = vector.shape_cast %385 : vector<1x1x48xf32> to vector<1x48xf32>
    %387 = vector.broadcast %386 : vector<1x48xf32> to vector<10x48xf32>
    %388 = arith.addf %384, %387 : vector<10x48xf32>
    %c0_177 = arith.constant 0 : index
    %c0_178 = arith.constant 0 : index
    %389 = vector.load %arg17[%c0_177, %c0_178] : memref<1x48xf32, #tpu.memory_space<vmem>>, vector<1x48xf32>
    %c0_179 = arith.constant 0 : index
    %c0_180 = arith.constant 0 : index
    %390 = vector.load %arg18[%c0_179, %c0_180] : memref<1x48xf32, #tpu.memory_space<vmem>>, vector<1x48xf32>
    %cst_181 = arith.constant dense<0.000000e+00> : vector<10xf32>
    %391 = vector.multi_reduction <add>, %388, %cst_181 [1] : vector<10x48xf32> to vector<10xf32>
    %392 = vector.shape_cast %391 : vector<10xf32> to vector<10x1xf32>
    %cst_182 = arith.constant 0.020833334 : f32
    %393 = vector.broadcast %cst_182 : f32 to vector<10x1xf32>
    %394 = arith.mulf %392, %393 : vector<10x1xf32>
    %395 = vector.broadcast %394 : vector<10x1xf32> to vector<10x48xf32>
    %396 = arith.subf %388, %395 : vector<10x48xf32>
    %397 = arith.mulf %396, %396 : vector<10x48xf32>
    %cst_183 = arith.constant dense<0.000000e+00> : vector<10xf32>
    %398 = vector.multi_reduction <add>, %397, %cst_183 [1] : vector<10x48xf32> to vector<10xf32>
    %399 = vector.shape_cast %398 : vector<10xf32> to vector<10x1xf32>
    %cst_184 = arith.constant 0.020833334 : f32
    %400 = vector.broadcast %cst_184 : f32 to vector<10x1xf32>
    %401 = arith.mulf %399, %400 : vector<10x1xf32>
    %cst_185 = arith.constant 9.99999974E-6 : f32
    %402 = vector.broadcast %cst_185 : f32 to vector<10x1xf32>
    %403 = arith.addf %401, %402 : vector<10x1xf32>
    %404 = math.rsqrt %403 : vector<10x1xf32>
    %405 = vector.broadcast %404 : vector<10x1xf32> to vector<10x48xf32>
    %406 = arith.mulf %396, %405 : vector<10x48xf32>
    %407 = vector.broadcast %389 : vector<1x48xf32> to vector<10x48xf32>
    %408 = arith.mulf %406, %407 : vector<10x48xf32>
    %409 = vector.broadcast %390 : vector<1x48xf32> to vector<10x48xf32>
    %410 = arith.addf %408, %409 : vector<10x48xf32>
    %411 = vector.extract_strided_slice %410 {offsets = [0, 0], sizes = [5, 48], strides = [1, 1]} : vector<10x48xf32> to vector<5x48xf32>
    %412 = vector.extract_strided_slice %410 {offsets = [5, 0], sizes = [5, 48], strides = [1, 1]} : vector<10x48xf32> to vector<5x48xf32>
    %413 = tpu.concatenate %411, %412 in 1 : vector<5x48xf32>, vector<5x48xf32> -> vector<5x96xf32>
    %c0_186 = arith.constant 0 : index
    %c0_187 = arith.constant 0 : index
    %414 = vector.load %arg19[%c0_186, %c0_187] : memref<5x96xf32, #tpu.memory_space<vmem>>, vector<5x96xf32>
    tpu.vector_store %arg19[%c0_186, %c0_187], %413 {strides = array<i32>} : memref<5x96xf32, #tpu.memory_space<vmem>>, vector<5x96xf32>,
    return
  }
}

</mosaic_0001>

<llo_original>
// kernel: squeeze.7
$region0: #{squeeze.7}
  %s0 = inlined_call_operand.hbm [shape: f32[2,1,32,32], index: 0, kind: input, shape index: {}]
  %s1 = inlined_call_operand.vmem [shape: f32[2,4,8,4,8], index: 1, kind: output, shape index: {}]
  $region1: #{squeeze.7} parent=0
    #allocation0 [shape = 'u8[32768]{0}', space=vmem, size = 0x8000, scoped, tag = 'operand span for operand 0']
    #allocation1 [shape = 's32[1]{0}', space=sflag, size = 0x4, scoped, tag = 'scoped memory for squeeze.7']
    #allocation2 [shape = 'u8[262144]{0}', space=vmem, size = 0x40000, scoped, tag = 'scoped mem for output reshape']
    %2 = vsyncpa [#allocation1], 0
    %s4 = ssub.s32 1024, 1024
    %5 = vsyncadd [#allocation1], %s4
    %s7 = sshll.u32 [#allocation0], 4
    %s8 = int_to_ptr.vmem [resolvable:$true] %s7
    %10 = dma.hbm_to_vmem [thread:$0]  %s0, 1024, %s8, [#allocation1]
    %11 = dma.done [#allocation1], 1024
    %v12 = vld [vmem:[#allocation0] sm:$0xff]
    %vm13 = vcmask 64512
    %14 = vst.msk [vmem:[#allocation2] ss:$8 sm:$0xf] %vm13, %v12
    %15 = vst.msk [vmem:[#allocation2] ss:$8 sm:$0xf0] %vm13, %v12
    %s16 = scalar_lea.vmem [#allocation0], 8
    %v17 = vld [vmem:[%s16] sm:$0xff]
    %vm18 = vcmask 64512
    %s19 = scalar_lea.vmem [#allocation2], 64
    %20 = vst.msk [vmem:[%s19] ss:$8 sm:$0xf] %vm18, %v17
    %s21 = scalar_lea.vmem [#allocation2], 64
    %22 = vst.msk [vmem:[%s21] ss:$8 sm:$0xf0] %vm18, %v17
    %s23 = scalar_lea.vmem [#allocation0], 16
    %v24 = vld [vmem:[%s23] sm:$0xff]
    %vm25 = vcmask 64512
    %s26 = scalar_lea.vmem [#allocation2], 128
    %27 = vst.msk [vmem:[%s26] ss:$8 sm:$0xf] %vm25, %v24
    %s28 = scalar_lea.vmem [#allocation2], 128
    %29 = vst.msk [vmem:[%s28] ss:$8 sm:$0xf0] %vm25, %v24
    %s30 = scalar_lea.vmem [#allocation0], 24
    %v31 = vld [vmem:[%s30] sm:$0xff]
    %vm32 = vcmask 64512
    %s33 = scalar_lea.vmem [#allocation2], 192
    %34 = vst.msk [vmem:[%s33] ss:$8 sm:$0xf] %vm32, %v31
    %s35 = scalar_lea.vmem [#allocation2], 192
    %36 = vst.msk [vmem:[%s35] ss:$8 sm:$0xf0] %vm32, %v31
    %s37 = scalar_lea.vmem [#allocation0], 32
    %v38 = vld [vmem:[%s37] sm:$0xff]
    %vm39 = vcmask 64512
    %s40 = scalar_lea.vmem [#allocation2], 256
    %41 = vst.msk [vmem:[%s40] ss:$8 sm:$0xf] %vm39, %v38
    %s42 = scalar_lea.vmem [#allocation2], 256
    %43 = vst.msk [vmem:[%s42] ss:$8 sm:$0xf0] %vm39, %v38
    %s44 = scalar_lea.vmem [#allocation0], 40
    %v45 = vld [vmem:[%s44] sm:$0xff]
    %vm46 = vcmask 64512
    %s47 = scalar_lea.vmem [#allocation2], 320
    %48 = vst.msk [vmem:[%s47] ss:$8 sm:$0xf] %vm46, %v45
    %s49 = scalar_lea.vmem [#allocation2], 320
    %50 = vst.msk [vmem:[%s49] ss:$8 sm:$0xf0] %vm46, %v45
    %s51 = scalar_lea.vmem [#allocation0], 48
    %v52 = vld [vmem:[%s51] sm:$0xff]
    %vm53 = vcmask 64512
    %s54 = scalar_lea.vmem [#allocation2], 384
    %55 = vst.msk [vmem:[%s54] ss:$8 sm:$0xf] %vm53, %v52
    %s56 = scalar_lea.vmem [#allocation2], 384
    %57 = vst.msk [vmem:[%s56] ss:$8 sm:$0xf0] %vm53, %v52
    %s58 = scalar_lea.vmem [#allocation0], 56
    %v59 = vld [vmem:[%s58] sm:$0xff]
    %vm60 = vcmask 64512
    %s61 = scalar_lea.vmem [#allocation2], 448
    %62 = vst.msk [vmem:[%s61] ss:$8 sm:$0xf] %vm60, %v59
    %s63 = scalar_lea.vmem [#allocation2], 448
    %64 = vst.msk [vmem:[%s63] ss:$8 sm:$0xf0] %vm60, %v59
    %v65 = vld [vmem:[#allocation0] sm:$0xff]
    %66 = vrot.lane.b32.xlu0 %v65, 120
    %v67 = vpop.permute.xlu0 %66
    %vm68 = vcmask 64512
    %s69 = scalar_lea.vmem [#allocation2], 1
    %70 = vst.msk [vmem:[%s69] ss:$8 sm:$0xf] %vm68, %v67
    %s71 = scalar_lea.vmem [#allocation2], 1
    %72 = vst.msk [vmem:[%s71] ss:$8 sm:$0xf0] %vm68, %v67
    %s73 = scalar_lea.vmem [#allocation0], 8
    %v74 = vld [vmem:[%s73] sm:$0xff]
    %75 = vrot.lane.b32.xlu0 %v74, 120
    %v76 = vpop.permute.xlu0 %75
    %vm77 = vcmask 64512
    %s78 = scalar_lea.vmem [#allocation2], 65
    %79 = vst.msk [vmem:[%s78] ss:$8 sm:$0xf] %vm77, %v76
    %s80 = scalar_lea.vmem [#allocation2], 65
    %81 = vst.msk [vmem:[%s80] ss:$8 sm:$0xf0] %vm77, %v76
    %s82 = scalar_lea.vmem [#allocation0], 16
    %v83 = vld [vmem:[%s82] sm:$0xff]
    %84 = vrot.lane.b32.xlu0 %v83, 120
    %v85 = vpop.permute.xlu0 %84
    %vm86 = vcmask 64512
    %s87 = scalar_lea.vmem [#allocation2], 129
    %88 = vst.msk [vmem:[%s87] ss:$8 sm:$0xf] %vm86, %v85
    %s89 = scalar_lea.vmem [#allocation2], 129
    %90 = vst.msk [vmem:[%s89] ss:$8 sm:$0xf0] %vm86, %v85
    %s91 = scalar_lea.vmem [#allocation0], 24
    %v92 = vld [vmem:[%s91] sm:$0xff]
    %93 = vrot.lane.b32.xlu0 %v92, 120
    %v94 = vpop.permute.xlu0 %93
    %vm95 = vcmask 64512
    %s96 = scalar_lea.vmem [#allocation2], 193
    %97 = vst.msk [vmem:[%s96] ss:$8 sm:$0xf] %vm95, %v94
    %s98 = scalar_lea.vmem [#allocation2], 193
    %99 = vst.msk [vmem:[%s98] ss:$8 sm:$0xf0] %vm95, %v94
    %s100 = scalar_lea.vmem [#allocation0], 32
    %v101 = vld [vmem:[%s100] sm:$0xff]
    %102 = vrot.lane.b32.xlu0 %v101, 120
    %v103 = vpop.permute.xlu0 %102
    %vm104 = vcmask 64512
    %s105 = scalar_lea.vmem [#allocation2], 257
    %106 = vst.msk [vmem:[%s105] ss:$8 sm:$0xf] %vm104, %v103
    %s107 = scalar_lea.vmem [#allocation2], 257
    %108 = vst.msk [vmem:[%s107] ss:$8 sm:$0xf0] %vm104, %v103
    %s109 = scalar_lea.vmem [#allocation0], 40
    %v110 = vld [vmem:[%s109] sm:$0xff]
    %111 = vrot.lane.b32.xlu0 %v110, 120
    %v112 = vpop.permute.xlu0 %111
    %vm113 = vcmask 64512
    %s114 = scalar_lea.vmem [#allocation2], 321
    %115 = vst.msk [vmem:[%s114] ss:$8 sm:$0xf] %vm113, %v112
    %s116 = scalar_lea.vmem [#allocation2], 321
    %117 = vst.msk [vmem:[%s116] ss:$8 sm:$0xf0] %vm113, %v112
    %s118 = scalar_lea.vmem [#allocation0], 48
    %v119 = vld [vmem:[%s118] sm:$0xff]
    %120 = vrot.lane.b32.xlu0 %v119, 120
    %v121 = vpop.permute.xlu0 %120
    %vm122 = vcmask 64512
    %s123 = scalar_lea.vmem [#allocation2], 385
    %124 = vst.msk [vmem:[%s123] ss:$8 sm:$0xf] %vm122, %v121
    %s125 = scalar_lea.vmem [#allocation2], 385
    %126 = vst.msk [vmem:[%s125] ss:$8 sm:$0xf0] %vm122, %v121
    %s127 = scalar_lea.vmem [#allocation0], 56
    %v128 = vld [vmem:[%s127] sm:$0xff]
    %129 = vrot.lane.b32.xlu0 %v128, 120
    %v130 = vpop.permute.xlu0 %129
    %vm131 = vcmask 64512
    %s132 = scalar_lea.vmem [#allocation2], 449
    %133 = vst.msk [vmem:[%s132] ss:$8 sm:$0xf] %vm131, %v130
    %s134 = scalar_lea.vmem [#allocation2], 449
    %135 = vst.msk [vmem:[%s134] ss:$8 sm:$0xf0] %vm131, %v130
    %v136 = vld [vmem:[#allocation0] sm:$0xff]
    %137 = vrot.lane.b32.xlu0 %v136, 112
    %v138 = vpop.permute.xlu0 %137
    %vm139 = vcmask 64512
    %s140 = scalar_lea.vmem [#allocation2], 2
    %141 = vst.msk [vmem:[%s140] ss:$8 sm:$0xf] %vm139, %v138
    %s142 = scalar_lea.vmem [#allocation2], 2
    %143 = vst.msk [vmem:[%s142] ss:$8 sm:$0xf0] %vm139, %v138
    %s144 = scalar_lea.vmem [#allocation0], 8
    %v145 = vld [vmem:[%s144] sm:$0xff]
    %146 = vrot.lane.b32.xlu0 %v145, 112
    %v147 = vpop.permute.xlu0 %146
    %vm148 = vcmask 64512
    %s149 = scalar_lea.vmem [#allocation2], 66
    %150 = vst.msk [vmem:[%s149] ss:$8 sm:$0xf] %vm148, %v147
    %s151 = scalar_lea.vmem [#allocation2], 66
    %152 = vst.msk [vmem:[%s151] ss:$8 sm:$0xf0] %vm148, %v147
    %s153 = scalar_lea.vmem [#allocation0], 16
    %v154 = vld [vmem:[%s153] sm:$0xff]
    %155 = vrot.lane.b32.xlu0 %v154, 112
    %v156 = vpop.permute.xlu0 %155
    %vm157 = vcmask 64512
    %s158 = scalar_lea.vmem [#allocation2], 130
    %159 = vst.msk [vmem:[%s158] ss:$8 sm:$0xf] %vm157, %v156
    %s160 = scalar_lea.vmem [#allocation2], 130
    %161 = vst.msk [vmem:[%s160] ss:$8 sm:$0xf0] %vm157, %v156
    %s162 = scalar_lea.vmem [#allocation0], 24
    %v163 = vld [vmem:[%s162] sm:$0xff]
    %164 = vrot.lane.b32.xlu0 %v163, 112
    %v165 = vpop.permute.xlu0 %164
    %vm166 = vcmask 64512
    %s167 = scalar_lea.vmem [#allocation2], 194
    %168 = vst.msk [vmem:[%s167] ss:$8 sm:$0xf] %vm166, %v165
    %s169 = scalar_lea.vmem [#allocation2], 194
    %170 = vst.msk [vmem:[%s169] ss:$8 sm:$0xf0] %vm166, %v165
    %s171 = scalar_lea.vmem [#allocation0], 32
    %v172 = vld [vmem:[%s171] sm:$0xff]
    %173 = vrot.lane.b32.xlu0 %v172, 112
    %v174 = vpop.permute.xlu0 %173
    %vm175 = vcmask 64512
    %s176 = scalar_lea.vmem [#allocation2], 258
    %177 = vst.msk [vmem:[%s176] ss:$8 sm:$0xf] %vm175, %v174
    %s178 = scalar_lea.vmem [#allocation2], 258
    %179 = vst.msk [vmem:[%s178] ss:$8 sm:$0xf0] %vm175, %v174
    %s180 = scalar_lea.vmem [#allocation0], 40
    %v181 = vld [vmem:[%s180] sm:$0xff]
    %182 = vrot.lane.b32.xlu0 %v181, 112
    %v183 = vpop.permute.xlu0 %182
    %vm184 = vcmask 64512
    %s185 = scalar_lea.vmem [#allocation2], 322
    %186 = vst.msk [vmem:[%s185] ss:$8 sm:$0xf] %vm184, %v183
    %s187 = scalar_lea.vmem [#allocation2], 322
    %188 = vst.msk [vmem:[%s187] ss:$8 sm:$0xf0] %vm184, %v183
    %s189 = scalar_lea.vmem [#allocation0], 48
    %v190 = vld [vmem:[%s189] sm:$0xff]
    %191 = vrot.lane.b32.xlu0 %v190, 112
    %v192 = vpop.permute.xlu0 %191
    %vm193 = vcmask 64512
    %s194 = scalar_lea.vmem [#allocation2], 386
    %195 = vst.msk [vmem:[%s194] ss:$8 sm:$0xf] %vm193, %v192
    %s196 = scalar_lea.vmem [#allocation2], 386
    %197 = vst.msk [vmem:[%s196] ss:$8 sm:$0xf0] %vm193, %v192
    %s198 = scalar_lea.vmem [#allocation0], 56
    %v199 = vld [vmem:[%s198] sm:$0xff]
    %200 = vrot.lane.b32.xlu0 %v199, 112
    %v201 = vpop.permute.xlu0 %200
    %vm202 = vcmask 64512
    %s203 = scalar_lea.vmem [#allocation2], 450
    %204 = vst.msk [vmem:[%s203] ss:$8 sm:$0xf] %vm202, %v201
    %s205 = scalar_lea.vmem [#allocation2], 450
    %206 = vst.msk [vmem:[%s205] ss:$8 sm:$0xf0] %vm202, %v201
    %v207 = vld [vmem:[#allocation0] sm:$0xff]
    %208 = vrot.lane.b32.xlu0 %v207, 104
    %v209 = vpop.permute.xlu0 %208
    %vm210 = vcmask 64512
    %s211 = scalar_lea.vmem [#allocation2], 3
    %212 = vst.msk [vmem:[%s211] ss:$8 sm:$0xf] %vm210, %v209
    %s213 = scalar_lea.vmem [#allocation2], 3
    %214 = vst.msk [vmem:[%s213] ss:$8 sm:$0xf0] %vm210, %v209
    %s215 = scalar_lea.vmem [#allocation0], 8
    %v216 = vld [vmem:[%s215] sm:$0xff]
    %217 = vrot.lane.b32.xlu0 %v216, 104
    %v218 = vpop.permute.xlu0 %217
    %vm219 = vcmask 64512
    %s220 = scalar_lea.vmem [#allocation2], 67
    %221 = vst.msk [vmem:[%s220] ss:$8 sm:$0xf] %vm219, %v218
    %s222 = scalar_lea.vmem [#allocation2], 67
    %223 = vst.msk [vmem:[%s222] ss:$8 sm:$0xf0] %vm219, %v218
    %s224 = scalar_lea.vmem [#allocation0], 16
    %v225 = vld [vmem:[%s224] sm:$0xff]
    %226 = vrot.lane.b32.xlu0 %v225, 104
    %v227 = vpop.permute.xlu0 %226
    %vm228 = vcmask 64512
    %s229 = scalar_lea.vmem [#allocation2], 131
    %230 = vst.msk [vmem:[%s229] ss:$8 sm:$0xf] %vm228, %v227
    %s231 = scalar_lea.vmem [#allocation2], 131
    %232 = vst.msk [vmem:[%s231] ss:$8 sm:$0xf0] %vm228, %v227
    %s233 = scalar_lea.vmem [#allocation0], 24
    %v234 = vld [vmem:[%s233] sm:$0xff]
    %235 = vrot.lane.b32.xlu0 %v234, 104
    %v236 = vpop.permute.xlu0 %235
    %vm237 = vcmask 64512
    %s238 = scalar_lea.vmem [#allocation2], 195
    %239 = vst.msk [vmem:[%s238] ss:$8 sm:$0xf] %vm237, %v236
    %s240 = scalar_lea.vmem [#allocation2], 195
    %241 = vst.msk [vmem:[%s240] ss:$8 sm:$0xf0] %vm237, %v236
    %s242 = scalar_lea.vmem [#allocation0], 32
    %v243 = vld [vmem:[%s242] sm:$0xff]
    %244 = vrot.lane.b32.xlu0 %v243, 104
    %v245 = vpop.permute.xlu0 %244
    %vm246 = vcmask 64512
    %s247 = scalar_lea.vmem [#allocation2], 259
    %248 = vst.msk [vmem:[%s247] ss:$8 sm:$0xf] %vm246, %v245
    %s249 = scalar_lea.vmem [#allocation2], 259
    %250 = vst.msk [vmem:[%s249] ss:$8 sm:$0xf0] %vm246, %v245
    %s251 = scalar_lea.vmem [#allocation0], 40
    %v252 = vld [vmem:[%s251] sm:$0xff]
    %253 = vrot.lane.b32.xlu0 %v252, 104
    %v254 = vpop.permute.xlu0 %253
    %vm255 = vcmask 64512
    %s256 = scalar_lea.vmem [#allocation2], 323
    %257 = vst.msk [vmem:[%s256] ss:$8 sm:$0xf] %vm255, %v254
    %s258 = scalar_lea.vmem [#allocation2], 323
    %259 = vst.msk [vmem:[%s258] ss:$8 sm:$0xf0] %vm255, %v254
    %s260 = scalar_lea.vmem [#allocation0], 48
    %v261 = vld [vmem:[%s260] sm:$0xff]
    %262 = vrot.lane.b32.xlu0 %v261, 104
    %v263 = vpop.permute.xlu0 %262
    %vm264 = vcmask 64512
    %s265 = scalar_lea.vmem [#allocation2], 387
    %266 = vst.msk [vmem:[%s265] ss:$8 sm:$0xf] %vm264, %v263
    %s267 = scalar_lea.vmem [#allocation2], 387
    %268 = vst.msk [vmem:[%s267] ss:$8 sm:$0xf0] %vm264, %v263
    %s269 = scalar_lea.vmem [#allocation0], 56
    %v270 = vld [vmem:[%s269] sm:$0xff]
    %271 = vrot.lane.b32.xlu0 %v270, 104
    %v272 = vpop.permute.xlu0 %271
    %vm273 = vcmask 64512
    %s274 = scalar_lea.vmem [#allocation2], 451
    %275 = vst.msk [vmem:[%s274] ss:$8 sm:$0xf] %vm273, %v272
    %s276 = scalar_lea.vmem [#allocation2], 451
    %277 = vst.msk [vmem:[%s276] ss:$8 sm:$0xf0] %vm273, %v272
    %s279 = sshll.u32 1, 4
    %s280 = ssub.s32 %s279, 1
    %v282 = vld [vmem:[#allocation2] sm:%s280]
    %s283 = sshll.u32 1, 4
    %s284 = ssub.s32 %s283, 1
    %285 = vst [vmem:[%s1] sm:%s284] %v282
    %s286 = scalar_lea.vmem [#allocation2], 8
    %v287 = vld [vmem:[%s286] sm:%s280]
    %s288 = sshll.u32 1, 4
    %s289 = ssub.s32 %s288, 1
    %s290 = scalar_lea.vmem %s1, 4
    %291 = vst [vmem:[%s290] sm:%s289] %v287
    %s292 = scalar_lea.vmem [#allocation2], 16
    %v293 = vld [vmem:[%s292] sm:%s280]
    %s294 = sshll.u32 1, 4
    %s295 = ssub.s32 %s294, 1
    %s296 = smul.addr 4, 2
    %s297 = scalar_lea.vmem %s1, %s296
    %298 = vst [vmem:[%s297] sm:%s295] %v293
    %s299 = scalar_lea.vmem [#allocation2], 24
    %v300 = vld [vmem:[%s299] sm:%s280]
    %s301 = sshll.u32 1, 4
    %s302 = ssub.s32 %s301, 1
    %s303 = smul.addr 4, 3
    %s304 = scalar_lea.vmem %s1, %s303
    %305 = vst [vmem:[%s304] sm:%s302] %v300
    %s306 = scalar_lea.vmem [#allocation2], 32
    %v307 = vld [vmem:[%s306] sm:%s280]
    %s308 = sshll.u32 1, 4
    %s309 = ssub.s32 %s308, 1
    %s310 = smul.addr 4, 4
    %s311 = scalar_lea.vmem %s1, %s310
    %312 = vst [vmem:[%s311] sm:%s309] %v307
    %s313 = scalar_lea.vmem [#allocation2], 40
    %v314 = vld [vmem:[%s313] sm:%s280]
    %s315 = sshll.u32 1, 4
    %s316 = ssub.s32 %s315, 1
    %s317 = smul.addr 4, 5
    %s318 = scalar_lea.vmem %s1, %s317
    %319 = vst [vmem:[%s318] sm:%s316] %v314
    %s320 = scalar_lea.vmem [#allocation2], 48
    %v321 = vld [vmem:[%s320] sm:%s280]
    %s322 = sshll.u32 1, 4
    %s323 = ssub.s32 %s322, 1
    %s324 = smul.addr 4, 6
    %s325 = scalar_lea.vmem %s1, %s324
    %326 = vst [vmem:[%s325] sm:%s323] %v321
    %s327 = scalar_lea.vmem [#allocation2], 56
    %v328 = vld [vmem:[%s327] sm:%s280]
    %s329 = sshll.u32 1, 4
    %s330 = ssub.s32 %s329, 1
    %s331 = smul.addr 4, 7
    %s332 = scalar_lea.vmem %s1, %s331
    %333 = vst [vmem:[%s332] sm:%s330] %v328
    %s334 = scalar_lea.vmem [#allocation2], 64
    %v335 = vld [vmem:[%s334] sm:%s280]
    %s336 = sshll.u32 1, 4
    %s337 = ssub.s32 %s336, 1
    %s338 = smul.addr 4, 8
    %s339 = scalar_lea.vmem %s1, %s338
    %340 = vst [vmem:[%s339] sm:%s337] %v335
    %s341 = scalar_lea.vmem [#allocation2], 72
    %v342 = vld [vmem:[%s341] sm:%s280]
    %s343 = sshll.u32 1, 4
    %s344 = ssub.s32 %s343, 1
    %s345 = smul.addr 4, 9
    %s346 = scalar_lea.vmem %s1, %s345
    %347 = vst [vmem:[%s346] sm:%s344] %v342
    %s348 = scalar_lea.vmem [#allocation2], 80
    %v349 = vld [vmem:[%s348] sm:%s280]
    %s350 = sshll.u32 1, 4
    %s351 = ssub.s32 %s350, 1
    %s352 = smul.addr 4, 10
    %s353 = scalar_lea.vmem %s1, %s352
    %354 = vst [vmem:[%s353] sm:%s351] %v349
    %s355 = scalar_lea.vmem [#allocation2], 88
    %v356 = vld [vmem:[%s355] sm:%s280]
    %s357 = sshll.u32 1, 4
    %s358 = ssub.s32 %s357, 1
    %s359 = smul.addr 4, 11
    %s360 = scalar_lea.vmem %s1, %s359
    %361 = vst [vmem:[%s360] sm:%s358] %v356
    %s362 = scalar_lea.vmem [#allocation2], 96
    %v363 = vld [vmem:[%s362] sm:%s280]
    %s364 = sshll.u32 1, 4
    %s365 = ssub.s32 %s364, 1
    %s366 = smul.addr 4, 12
    %s367 = scalar_lea.vmem %s1, %s366
    %368 = vst [vmem:[%s367] sm:%s365] %v363
    %s369 = scalar_lea.vmem [#allocation2], 104
    %v370 = vld [vmem:[%s369] sm:%s280]
    %s371 = sshll.u32 1, 4
    %s372 = ssub.s32 %s371, 1
    %s373 = smul.addr 4, 13
    %s374 = scalar_lea.vmem %s1, %s373
    %375 = vst [vmem:[%s374] sm:%s372] %v370
    %s376 = scalar_lea.vmem [#allocation2], 112
    %v377 = vld [vmem:[%s376] sm:%s280]
    %s378 = sshll.u32 1, 4
    %s379 = ssub.s32 %s378, 1
    %s380 = smul.addr 4, 14
    %s381 = scalar_lea.vmem %s1, %s380
    %382 = vst [vmem:[%s381] sm:%s379] %v377
    %s383 = scalar_lea.vmem [#allocation2], 120
    %v384 = vld [vmem:[%s383] sm:%s280]
    %s385 = sshll.u32 1, 4
    %s386 = ssub.s32 %s385, 1
    %s387 = smul.addr 4, 15
    %s388 = scalar_lea.vmem %s1, %s387
    %389 = vst [vmem:[%s388] sm:%s386] %v384
    %s390 = scalar_lea.vmem [#allocation2], 128
    %v391 = vld [vmem:[%s390] sm:%s280]
    %s392 = sshll.u32 1, 4
    %s393 = ssub.s32 %s392, 1
    %s394 = smul.addr 4, 16
    %s395 = scalar_lea.vmem %s1, %s394
    %396 = vst [vmem:[%s395] sm:%s393] %v391
    %s397 = scalar_lea.vmem [#allocation2], 136
    %v398 = vld [vmem:[%s397] sm:%s280]
    %s399 = sshll.u32 1, 4
    %s400 = ssub.s32 %s399, 1
    %s401 = smul.addr 4, 17
    %s402 = scalar_lea.vmem %s1, %s401
    %403 = vst [vmem:[%s402] sm:%s400] %v398
    %s404 = scalar_lea.vmem [#allocation2], 144
    %v405 = vld [vmem:[%s404] sm:%s280]
    %s406 = sshll.u32 1, 4
    %s407 = ssub.s32 %s406, 1
    %s408 = smul.addr 4, 18
    %s409 = scalar_lea.vmem %s1, %s408
    %410 = vst [vmem:[%s409] sm:%s407] %v405
    %s411 = scalar_lea.vmem [#allocation2], 152
    %v412 = vld [vmem:[%s411] sm:%s280]
    %s413 = sshll.u32 1, 4
    %s414 = ssub.s32 %s413, 1
    %s415 = smul.addr 4, 19
    %s416 = scalar_lea.vmem %s1, %s415
    %417 = vst [vmem:[%s416] sm:%s414] %v412
    %s418 = scalar_lea.vmem [#allocation2], 160
    %v419 = vld [vmem:[%s418] sm:%s280]
    %s420 = sshll.u32 1, 4
    %s421 = ssub.s32 %s420, 1
    %s422 = smul.addr 4, 20
    %s423 = scalar_lea.vmem %s1, %s422
    %424 = vst [vmem:[%s423] sm:%s421] %v419
    %s425 = scalar_lea.vmem [#allocation2], 168
    %v426 = vld [vmem:[%s425] sm:%s280]
    %s427 = sshll.u32 1, 4
    %s428 = ssub.s32 %s427, 1
    %s429 = smul.addr 4, 21
    %s430 = scalar_lea.vmem %s1, %s429
    %431 = vst [vmem:[%s430] sm:%s428] %v426
    %s432 = scalar_lea.vmem [#allocation2], 176
    %v433 = vld [vmem:[%s432] sm:%s280]
    %s434 = sshll.u32 1, 4
    %s435 = ssub.s32 %s434, 1
    %s436 = smul.addr 4, 22
    %s437 = scalar_lea.vmem %s1, %s436
    %438 = vst [vmem:[%s437] sm:%s435] %v433
    %s439 = scalar_lea.vmem [#allocation2], 184
    %v440 = vld [vmem:[%s439] sm:%s280]
    %s441 = sshll.u32 1, 4
    %s442 = ssub.s32 %s441, 1
    %s443 = smul.addr 4, 23
    %s444 = scalar_lea.vmem %s1, %s443
    %445 = vst [vmem:[%s444] sm:%s442] %v440
    %s446 = scalar_lea.vmem [#allocation2], 192
    %v447 = vld [vmem:[%s446] sm:%s280]
    %s448 = sshll.u32 1, 4
    %s449 = ssub.s32 %s448, 1
    %s450 = smul.addr 4, 24
    %s451 = scalar_lea.vmem %s1, %s450
    %452 = vst [vmem:[%s451] sm:%s449] %v447
    %s453 = scalar_lea.vmem [#allocation2], 200
    %v454 = vld [vmem:[%s453] sm:%s280]
    %s455 = sshll.u32 1, 4
    %s456 = ssub.s32 %s455, 1
    %s457 = smul.addr 4, 25
    %s458 = scalar_lea.vmem %s1, %s457
    %459 = vst [vmem:[%s458] sm:%s456] %v454
    %s460 = scalar_lea.vmem [#allocation2], 208
    %v461 = vld [vmem:[%s460] sm:%s280]
    %s462 = sshll.u32 1, 4
    %s463 = ssub.s32 %s462, 1
    %s464 = smul.addr 4, 26
    %s465 = scalar_lea.vmem %s1, %s464
    %466 = vst [vmem:[%s465] sm:%s463] %v461
    %s467 = scalar_lea.vmem [#allocation2], 216
    %v468 = vld [vmem:[%s467] sm:%s280]
    %s469 = sshll.u32 1, 4
    %s470 = ssub.s32 %s469, 1
    %s471 = smul.addr 4, 27
    %s472 = scalar_lea.vmem %s1, %s471
    %473 = vst [vmem:[%s472] sm:%s470] %v468
    %s474 = scalar_lea.vmem [#allocation2], 224
    %v475 = vld [vmem:[%s474] sm:%s280]
    %s476 = sshll.u32 1, 4
    %s477 = ssub.s32 %s476, 1
    %s478 = smul.addr 4, 28
    %s479 = scalar_lea.vmem %s1, %s478
    %480 = vst [vmem:[%s479] sm:%s477] %v475
    %s481 = scalar_lea.vmem [#allocation2], 232
    %v482 = vld [vmem:[%s481] sm:%s280]
    %s483 = sshll.u32 1, 4
    %s484 = ssub.s32 %s483, 1
    %s485 = smul.addr 4, 29
    %s486 = scalar_lea.vmem %s1, %s485
    %487 = vst [vmem:[%s486] sm:%s484] %v482
    %s488 = scalar_lea.vmem [#allocation2], 240
    %v489 = vld [vmem:[%s488] sm:%s280]
    %s490 = sshll.u32 1, 4
    %s491 = ssub.s32 %s490, 1
    %s492 = smul.addr 4, 30
    %s493 = scalar_lea.vmem %s1, %s492
    %494 = vst [vmem:[%s493] sm:%s491] %v489
    %s495 = scalar_lea.vmem [#allocation2], 248
    %v496 = vld [vmem:[%s495] sm:%s280]
    %s497 = sshll.u32 1, 4
    %s498 = ssub.s32 %s497, 1
    %s499 = smul.addr 4, 31
    %s500 = scalar_lea.vmem %s1, %s499
    %501 = vst [vmem:[%s500] sm:%s498] %v496
    %s502 = scalar_lea.vmem [#allocation2], 256
    %v503 = vld [vmem:[%s502] sm:%s280]
    %s504 = sshll.u32 1, 4
    %s505 = ssub.s32 %s504, 1
    %s506 = smul.addr 4, 32
    %s507 = scalar_lea.vmem %s1, %s506
    %508 = vst [vmem:[%s507] sm:%s505] %v503
    %s509 = scalar_lea.vmem [#allocation2], 264
    %v510 = vld [vmem:[%s509] sm:%s280]
    %s511 = sshll.u32 1, 4
    %s512 = ssub.s32 %s511, 1
    %s513 = smul.addr 4, 33
    %s514 = scalar_lea.vmem %s1, %s513
    %515 = vst [vmem:[%s514] sm:%s512] %v510
    %s516 = scalar_lea.vmem [#allocation2], 272
    %v517 = vld [vmem:[%s516] sm:%s280]
    %s518 = sshll.u32 1, 4
    %s519 = ssub.s32 %s518, 1
    %s520 = smul.addr 4, 34
    %s521 = scalar_lea.vmem %s1, %s520
    %522 = vst [vmem:[%s521] sm:%s519] %v517
    %s523 = scalar_lea.vmem [#allocation2], 280
    %v524 = vld [vmem:[%s523] sm:%s280]
    %s525 = sshll.u32 1, 4
    %s526 = ssub.s32 %s525, 1
    %s527 = smul.addr 4, 35
    %s528 = scalar_lea.vmem %s1, %s527
    %529 = vst [vmem:[%s528] sm:%s526] %v524
    %s530 = scalar_lea.vmem [#allocation2], 288
    %v531 = vld [vmem:[%s530] sm:%s280]
    %s532 = sshll.u32 1, 4
    %s533 = ssub.s32 %s532, 1
    %s534 = smul.addr 4, 36
    %s535 = scalar_lea.vmem %s1, %s534
    %536 = vst [vmem:[%s535] sm:%s533] %v531
    %s537 = scalar_lea.vmem [#allocation2], 296
    %v538 = vld [vmem:[%s537] sm:%s280]
    %s539 = sshll.u32 1, 4
    %s540 = ssub.s32 %s539, 1
    %s541 = smul.addr 4, 37
    %s542 = scalar_lea.vmem %s1, %s541
    %543 = vst [vmem:[%s542] sm:%s540] %v538
    %s544 = scalar_lea.vmem [#allocation2], 304
    %v545 = vld [vmem:[%s544] sm:%s280]
    %s546 = sshll.u32 1, 4
    %s547 = ssub.s32 %s546, 1
    %s548 = smul.addr 4, 38
    %s549 = scalar_lea.vmem %s1, %s548
    %550 = vst [vmem:[%s549] sm:%s547] %v545
    %s551 = scalar_lea.vmem [#allocation2], 312
    %v552 = vld [vmem:[%s551] sm:%s280]
    %s553 = sshll.u32 1, 4
    %s554 = ssub.s32 %s553, 1
    %s555 = smul.addr 4, 39
    %s556 = scalar_lea.vmem %s1, %s555
    %557 = vst [vmem:[%s556] sm:%s554] %v552
    %s558 = scalar_lea.vmem [#allocation2], 320
    %v559 = vld [vmem:[%s558] sm:%s280]
    %s560 = sshll.u32 1, 4
    %s561 = ssub.s32 %s560, 1
    %s562 = smul.addr 4, 40
    %s563 = scalar_lea.vmem %s1, %s562
    %564 = vst [vmem:[%s563] sm:%s561] %v559
    %s565 = scalar_lea.vmem [#allocation2], 328
    %v566 = vld [vmem:[%s565] sm:%s280]
    %s567 = sshll.u32 1, 4
    %s568 = ssub.s32 %s567, 1
    %s569 = smul.addr 4, 41
    %s570 = scalar_lea.vmem %s1, %s569
    %571 = vst [vmem:[%s570] sm:%s568] %v566
    %s572 = scalar_lea.vmem [#allocation2], 336
    %v573 = vld [vmem:[%s572] sm:%s280]
    %s574 = sshll.u32 1, 4
    %s575 = ssub.s32 %s574, 1
    %s576 = smul.addr 4, 42
    %s577 = scalar_lea.vmem %s1, %s576
    %578 = vst [vmem:[%s577] sm:%s575] %v573
    %s579 = scalar_lea.vmem [#allocation2], 344
    %v580 = vld [vmem:[%s579] sm:%s280]
    %s581 = sshll.u32 1, 4
    %s582 = ssub.s32 %s581, 1
    %s583 = smul.addr 4, 43
    %s584 = scalar_lea.vmem %s1, %s583
    %585 = vst [vmem:[%s584] sm:%s582] %v580
    %s586 = scalar_lea.vmem [#allocation2], 352
    %v587 = vld [vmem:[%s586] sm:%s280]
    %s588 = sshll.u32 1, 4
    %s589 = ssub.s32 %s588, 1
    %s590 = smul.addr 4, 44
    %s591 = scalar_lea.vmem %s1, %s590
    %592 = vst [vmem:[%s591] sm:%s589] %v587
    %s593 = scalar_lea.vmem [#allocation2], 360
    %v594 = vld [vmem:[%s593] sm:%s280]
    %s595 = sshll.u32 1, 4
    %s596 = ssub.s32 %s595, 1
    %s597 = smul.addr 4, 45
    %s598 = scalar_lea.vmem %s1, %s597
    %599 = vst [vmem:[%s598] sm:%s596] %v594
    %s600 = scalar_lea.vmem [#allocation2], 368
    %v601 = vld [vmem:[%s600] sm:%s280]
    %s602 = sshll.u32 1, 4
    %s603 = ssub.s32 %s602, 1
    %s604 = smul.addr 4, 46
    %s605 = scalar_lea.vmem %s1, %s604
    %606 = vst [vmem:[%s605] sm:%s603] %v601
    %s607 = scalar_lea.vmem [#allocation2], 376
    %v608 = vld [vmem:[%s607] sm:%s280]
    %s609 = sshll.u32 1, 4
    %s610 = ssub.s32 %s609, 1
    %s611 = smul.addr 4, 47
    %s612 = scalar_lea.vmem %s1, %s611
    %613 = vst [vmem:[%s612] sm:%s610] %v608
    %s614 = scalar_lea.vmem [#allocation2], 384
    %v615 = vld [vmem:[%s614] sm:%s280]
    %s616 = sshll.u32 1, 4
    %s617 = ssub.s32 %s616, 1
    %s618 = smul.addr 4, 48
    %s619 = scalar_lea.vmem %s1, %s618
    %620 = vst [vmem:[%s619] sm:%s617] %v615
    %s621 = scalar_lea.vmem [#allocation2], 392
    %v622 = vld [vmem:[%s621] sm:%s280]
    %s623 = sshll.u32 1, 4
    %s624 = ssub.s32 %s623, 1
    %s625 = smul.addr 4, 49
    %s626 = scalar_lea.vmem %s1, %s625
    %627 = vst [vmem:[%s626] sm:%s624] %v622
    %s628 = scalar_lea.vmem [#allocation2], 400
    %v629 = vld [vmem:[%s628] sm:%s280]
    %s630 = sshll.u32 1, 4
    %s631 = ssub.s32 %s630, 1
    %s632 = smul.addr 4, 50
    %s633 = scalar_lea.vmem %s1, %s632
    %634 = vst [vmem:[%s633] sm:%s631] %v629
    %s635 = scalar_lea.vmem [#allocation2], 408
    %v636 = vld [vmem:[%s635] sm:%s280]
    %s637 = sshll.u32 1, 4
    %s638 = ssub.s32 %s637, 1
    %s639 = smul.addr 4, 51
    %s640 = scalar_lea.vmem %s1, %s639
    %641 = vst [vmem:[%s640] sm:%s638] %v636
    %s642 = scalar_lea.vmem [#allocation2], 416
    %v643 = vld [vmem:[%s642] sm:%s280]
    %s644 = sshll.u32 1, 4
    %s645 = ssub.s32 %s644, 1
    %s646 = smul.addr 4, 52
    %s647 = scalar_lea.vmem %s1, %s646
    %648 = vst [vmem:[%s647] sm:%s645] %v643
    %s649 = scalar_lea.vmem [#allocation2], 424
    %v650 = vld [vmem:[%s649] sm:%s280]
    %s651 = sshll.u32 1, 4
    %s652 = ssub.s32 %s651, 1
    %s653 = smul.addr 4, 53
    %s654 = scalar_lea.vmem %s1, %s653
    %655 = vst [vmem:[%s654] sm:%s652] %v650
    %s656 = scalar_lea.vmem [#allocation2], 432
    %v657 = vld [vmem:[%s656] sm:%s280]
    %s658 = sshll.u32 1, 4
    %s659 = ssub.s32 %s658, 1
    %s660 = smul.addr 4, 54
    %s661 = scalar_lea.vmem %s1, %s660
    %662 = vst [vmem:[%s661] sm:%s659] %v657
    %s663 = scalar_lea.vmem [#allocation2], 440
    %v664 = vld [vmem:[%s663] sm:%s280]
    %s665 = sshll.u32 1, 4
    %s666 = ssub.s32 %s665, 1
    %s667 = smul.addr 4, 55
    %s668 = scalar_lea.vmem %s1, %s667
    %669 = vst [vmem:[%s668] sm:%s666] %v664
    %s670 = scalar_lea.vmem [#allocation2], 448
    %v671 = vld [vmem:[%s670] sm:%s280]
    %s672 = sshll.u32 1, 4
    %s673 = ssub.s32 %s672, 1
    %s674 = smul.addr 4, 56
    %s675 = scalar_lea.vmem %s1, %s674
    %676 = vst [vmem:[%s675] sm:%s673] %v671
    %s677 = scalar_lea.vmem [#allocation2], 456
    %v678 = vld [vmem:[%s677] sm:%s280]
    %s679 = sshll.u32 1, 4
    %s680 = ssub.s32 %s679, 1
    %s681 = smul.addr 4, 57
    %s682 = scalar_lea.vmem %s1, %s681
    %683 = vst [vmem:[%s682] sm:%s680] %v678
    %s684 = scalar_lea.vmem [#allocation2], 464
    %v685 = vld [vmem:[%s684] sm:%s280]
    %s686 = sshll.u32 1, 4
    %s687 = ssub.s32 %s686, 1
    %s688 = smul.addr 4, 58
    %s689 = scalar_lea.vmem %s1, %s688
    %690 = vst [vmem:[%s689] sm:%s687] %v685
    %s691 = scalar_lea.vmem [#allocation2], 472
    %v692 = vld [vmem:[%s691] sm:%s280]
    %s693 = sshll.u32 1, 4
    %s694 = ssub.s32 %s693, 1
    %s695 = smul.addr 4, 59
    %s696 = scalar_lea.vmem %s1, %s695
    %697 = vst [vmem:[%s696] sm:%s694] %v692
    %s698 = scalar_lea.vmem [#allocation2], 480
    %v699 = vld [vmem:[%s698] sm:%s280]
    %s700 = sshll.u32 1, 4
    %s701 = ssub.s32 %s700, 1
    %s702 = smul.addr 4, 60
    %s703 = scalar_lea.vmem %s1, %s702
    %704 = vst [vmem:[%s703] sm:%s701] %v699
    %s705 = scalar_lea.vmem [#allocation2], 488
    %v706 = vld [vmem:[%s705] sm:%s280]
    %s707 = sshll.u32 1, 4
    %s708 = ssub.s32 %s707, 1
    %s709 = smul.addr 4, 61
    %s710 = scalar_lea.vmem %s1, %s709
    %711 = vst [vmem:[%s710] sm:%s708] %v706
    %s712 = scalar_lea.vmem [#allocation2], 496
    %v713 = vld [vmem:[%s712] sm:%s280]
    %s714 = sshll.u32 1, 4
    %s715 = ssub.s32 %s714, 1
    %s716 = smul.addr 4, 62
    %s717 = scalar_lea.vmem %s1, %s716
    %718 = vst [vmem:[%s717] sm:%s715] %v713
    %s719 = scalar_lea.vmem [#allocation2], 504
    %v720 = vld [vmem:[%s719] sm:%s280]
    %s721 = sshll.u32 1, 4
    %s722 = ssub.s32 %s721, 1
    %s723 = smul.addr 4, 63
    %s724 = scalar_lea.vmem %s1, %s723
    %725 = vst [vmem:[%s724] sm:%s722] %v720
    %726 = vsyncpa [#allocation1], 1

// kernel: eq.1
$region0: #{eq.1}
  %s0 = inlined_call_operand.vmem [shape: s32[2,5], index: 0, kind: input, shape index: {}]
  %s1 = inlined_call_operand.vmem [shape: s32[10], index: 1, kind: output, shape index: {}]
  $region1: #{eq.1} parent=0
    #allocation0 [shape = 'u8[4096]{0}', space=vmem, size = 0x1000, scoped, tag = 'scoped mem for output reshape']
    #allocation1 [shape = 'u8[4096]{0}', space=vmem, size = 0x1000, scoped, tag = 'scoped mem for input reshape']
    %s3 = sshll.u32 1, 2
    %s4 = ssub.s32 %s3, 1
    %v5 = vld [vmem:[%s0] sm:%s4]
    %6 = vst [vmem:[#allocation1] sm:%s4] %v5
    %v7 = vld [vmem:[#allocation1] sm:$0x1]
    %vm8 = vcmask 39936
    %9 = vst.msk [vmem:[#allocation0] sm:$0x1] %vm8, %v7
    %s10 = scalar_lea.vmem [#allocation1], 1
    %v11 = vld [vmem:[%s10] sm:$0x1]
    %12 = vrot.lane.b32.xlu0 %v11, 5
    %v13 = vpop.permute.xlu0 %12
    %vm14 = vcmask 80936
    %15 = vst.msk [vmem:[#allocation0] sm:$0x1] %vm14, %v13
    %s17 = sshll.u32 1, 1
    %s18 = ssub.s32 %s17, 1
    %v20 = vld [vmem:[#allocation0] sm:%s18]
    %s21 = sshll.u32 1, 1
    %s22 = ssub.s32 %s21, 1
    %23 = vst [vmem:[%s1] sm:%s22] %v20

// kernel: mae_encoder_forward.1
$region0: #{mae_encoder_forward.1}
  #allocation0 [shape = 'u32[]', space=smem, size = 0x4, offset = 0x4, fixed_abs, tag = 'smem constant byte address 0x4 - core index']
  #allocation1 [shape = 'u32[144,128]{1,0:T(1,128)}', space=vmem, size = 0x12000, scoped, tag = 'internal scratch']
  %s0 = inlined_call_operand.vmem [shape: f32[32,64], index: 0, kind: input, shape index: {}]
  %s1 = inlined_call_operand.vmem [shape: f32[10,33], index: 1, kind: input, shape index: {}]
  %s2 = inlined_call_operand.vmem [shape: f32[32,48], index: 2, kind: input, shape index: {}]
  %s3 = inlined_call_operand.vmem [shape: f32[1,48], index: 3, kind: input, shape index: {}]
  %s4 = inlined_call_operand.vmem [shape: f32[64,48], index: 4, kind: input, shape index: {}]
  %s5 = inlined_call_operand.vmem [shape: f32[2,1,48], index: 5, kind: input, shape index: {}]
  %s6 = inlined_call_operand.vmem [shape: f32[2,1,48], index: 6, kind: input, shape index: {}]
  %s7 = inlined_call_operand.vmem [shape: f32[2,48,144], index: 7, kind: input, shape index: {}]
  %s8 = inlined_call_operand.vmem [shape: f32[2,1,144], index: 8, kind: input, shape index: {}]
  %s9 = inlined_call_operand.vmem [shape: f32[2,48,48], index: 9, kind: input, shape index: {}]
  %s10 = inlined_call_operand.vmem [shape: f32[2,1,48], index: 10, kind: input, shape index: {}]
  %s11 = inlined_call_operand.vmem [shape: f32[2,1,48], index: 11, kind: input, shape index: {}]
  %s12 = inlined_call_operand.vmem [shape: f32[2,1,48], index: 12, kind: input, shape index: {}]
  %s13 = inlined_call_operand.vmem [shape: f32[2,48,192], index: 13, kind: input, shape index: {}]
  %s14 = inlined_call_operand.vmem [shape: f32[2,1,192], index: 14, kind: input, shape index: {}]
  %s15 = inlined_call_operand.vmem [shape: f32[2,192,48], index: 15, kind: input, shape index: {}]
  %s16 = inlined_call_operand.vmem [shape: f32[2,1,48], index: 16, kind: input, shape index: {}]
  %s17 = inlined_call_operand.vmem [shape: f32[1,48], index: 17, kind: input, shape index: {}]
  %s18 = inlined_call_operand.vmem [shape: f32[1,48], index: 18, kind: input, shape index: {}]
  %s19 = inlined_call_operand.vmem [shape: f32[5,96], index: 19, kind: output, shape index: {}]
  %s20 = sld [smem:[#allocation0]]
  $region86: #{mae_encoder_forward.1} parent=0
    _
  %s22 = ssub.s32 1, %s20
  %s23 = scalar_select 0, %s22, %s20
  // Predicated region
  $region2: #{mae_encoder_forward.1} parent=0 // pred_check
    _
  $region3: #{mae_encoder_forward.1} parent=0 // pred_check_branch
    %25 = sbr.rel (0) target = $region5
  $region4: #{mae_encoder_forward.1} parent=0 // pred_region
    _
  $region5: #{mae_encoder_forward.1} parent=0 // pred_fallthru
    _
  // Predicated region
  $region6: #{mae_encoder_forward.1} parent=0 // pred_check
    _
  $region7: #{mae_encoder_forward.1} parent=0 // pred_check_branch
    %27 = sbr.rel (0) target = $region9
  $region8: #{mae_encoder_forward.1} parent=0 // pred_region
    _
  $region9: #{mae_encoder_forward.1} parent=0 // pred_fallthru
    _
  // Predicated region
  $region10: #{mae_encoder_forward.1} parent=0 // pred_check
    _
  $region11: #{mae_encoder_forward.1} parent=0 // pred_check_branch
    %29 = sbr.rel (0) target = $region13
  $region12: #{mae_encoder_forward.1} parent=0 // pred_region
    _
  $region13: #{mae_encoder_forward.1} parent=0 // pred_fallthru
    _
  // Predicated region
  $region14: #{mae_encoder_forward.1} parent=0 // pred_check
    _
  $region15: #{mae_encoder_forward.1} parent=0 // pred_check_branch
    %31 = sbr.rel (0) target = $region17
  $region16: #{mae_encoder_forward.1} parent=0 // pred_region
    _
  $region17: #{mae_encoder_forward.1} parent=0 // pred_fallthru
    _
  // Predicated region
  $region18: #{mae_encoder_forward.1} parent=0 // pred_check
    _
  $region19: #{mae_encoder_forward.1} parent=0 // pred_check_branch
    %33 = sbr.rel (0) target = $region21
  $region20: #{mae_encoder_forward.1} parent=0 // pred_region
    _
  $region21: #{mae_encoder_forward.1} parent=0 // pred_fallthru
    _
  // Predicated region
  $region22: #{mae_encoder_forward.1} parent=0 // pred_check
    _
  $region23: #{mae_encoder_forward.1} parent=0 // pred_check_branch
    %35 = sbr.rel (0) target = $region25
  $region24: #{mae_encoder_forward.1} parent=0 // pred_region
    _
  $region25: #{mae_encoder_forward.1} parent=0 // pred_fallthru
    _
  // Predicated region
  $region26: #{mae_encoder_forward.1} parent=0 // pred_check
    _
  $region27: #{mae_encoder_forward.1} parent=0 // pred_check_branch
    %37 = sbr.rel (0) target = $region29
  $region28: #{mae_encoder_forward.1} parent=0 // pred_region
    _
  $region29: #{mae_encoder_forward.1} parent=0 // pred_fallthru
    _
  // Predicated region
  $region30: #{mae_encoder_forward.1} parent=0 // pred_check
    _
  $region31: #{mae_encoder_forward.1} parent=0 // pred_check_branch
    %39 = sbr.rel (0) target = $region33
  $region32: #{mae_encoder_forward.1} parent=0 // pred_region
    _
  $region33: #{mae_encoder_forward.1} parent=0 // pred_fallthru
    _
  // Predicated region
  $region34: #{mae_encoder_forward.1} parent=0 // pred_check
    _
  $region35: #{mae_encoder_forward.1} parent=0 // pred_check_branch
    %41 = sbr.rel (0) target = $region37
  $region36: #{mae_encoder_forward.1} parent=0 // pred_region
    _
  $region37: #{mae_encoder_forward.1} parent=0 // pred_fallthru
    _
  // Predicated region
  $region38: #{mae_encoder_forward.1} parent=0 // pred_check
    _
  $region39: #{mae_encoder_forward.1} parent=0 // pred_check_branch
    %43 = sbr.rel (0) target = $region41
  $region40: #{mae_encoder_forward.1} parent=0 // pred_region
    _
  $region41: #{mae_encoder_forward.1} parent=0 // pred_fallthru
    _
  // Predicated region
  $region42: #{mae_encoder_forward.1} parent=0 // pred_check
    _
  $region43: #{mae_encoder_forward.1} parent=0 // pred_check_branch
    %45 = sbr.rel (0) target = $region45
  $region44: #{mae_encoder_forward.1} parent=0 // pred_region
    _
  $region45: #{mae_encoder_forward.1} parent=0 // pred_fallthru
    _
  // Predicated region
  $region46: #{mae_encoder_forward.1} parent=0 // pred_check
    _
  $region47: #{mae_encoder_forward.1} parent=0 // pred_check_branch
    %47 = sbr.rel (0) target = $region49
  $region48: #{mae_encoder_forward.1} parent=0 // pred_region
    _
  $region49: #{mae_encoder_forward.1} parent=0 // pred_fallthru
    _
  // Predicated region
  $region50: #{mae_encoder_forward.1} parent=0 // pred_check
    _
  $region51: #{mae_encoder_forward.1} parent=0 // pred_check_branch
    %49 = sbr.rel (0) target = $region53
  $region52: #{mae_encoder_forward.1} parent=0 // pred_region
    _
  $region53: #{mae_encoder_forward.1} parent=0 // pred_fallthru
    _
  // Predicated region
  $region54: #{mae_encoder_forward.1} parent=0 // pred_check
    _
  $region55: #{mae_encoder_forward.1} parent=0 // pred_check_branch
    %51 = sbr.rel (0) target = $region57
  $region56: #{mae_encoder_forward.1} parent=0 // pred_region
    _
  $region57: #{mae_encoder_forward.1} parent=0 // pred_fallthru
    _
  // Predicated region
  $region58: #{mae_encoder_forward.1} parent=0 // pred_check
    _
  $region59: #{mae_encoder_forward.1} parent=0 // pred_check_branch
    %53 = sbr.rel (0) target = $region61
  $region60: #{mae_encoder_forward.1} parent=0 // pred_region
    _
  $region61: #{mae_encoder_forward.1} parent=0 // pred_fallthru
    _
  // Predicated region
  $region62: #{mae_encoder_forward.1} parent=0 // pred_check
    _
  $region63: #{mae_encoder_forward.1} parent=0 // pred_check_branch
    %55 = sbr.rel (0) target = $region65
  $region64: #{mae_encoder_forward.1} parent=0 // pred_region
    _
  $region65: #{mae_encoder_forward.1} parent=0 // pred_fallthru
    _
  // Predicated region
  $region66: #{mae_encoder_forward.1} parent=0 // pred_check
    _
  $region67: #{mae_encoder_forward.1} parent=0 // pred_check_branch
    %57 = sbr.rel (0) target = $region69
  $region68: #{mae_encoder_forward.1} parent=0 // pred_region
    _
  $region69: #{mae_encoder_forward.1} parent=0 // pred_fallthru
    _
  // Predicated region
  $region70: #{mae_encoder_forward.1} parent=0 // pred_check
    _
  $region71: #{mae_encoder_forward.1} parent=0 // pred_check_branch
    %59 = sbr.rel (0) target = $region73
  $region72: #{mae_encoder_forward.1} parent=0 // pred_region
    _
  $region73: #{mae_encoder_forward.1} parent=0 // pred_fallthru
    _
  // Predicated region
  $region74: #{mae_encoder_forward.1} parent=0 // pred_check
    _
  $region75: #{mae_encoder_forward.1} parent=0 // pred_check_branch
    %61 = sbr.rel (0) target = $region77
  $region76: #{mae_encoder_forward.1} parent=0 // pred_region
    _
  $region77: #{mae_encoder_forward.1} parent=0 // pred_fallthru
    _
  %v62 = vld [vmem:[%s0] sm:$0xff]
  %v63 = vld [vmem:[%s0 + $0x8] sm:$0xff]
  %v64 = vld [vmem:[%s0 + $0x10] sm:$0xff]
  %v65 = vld [vmem:[%s0 + $0x18] sm:$0xff]
  %v66 = vld [vmem:[%s4] sm:$0xff]
  %v67 = vld [vmem:[%s4 + $0x8] sm:$0xff]
  %v68 = vld [vmem:[%s4 + $0x10] sm:$0xff]
  %v69 = vld [vmem:[%s4 + $0x18] sm:$0xff]
  %v70 = vld [vmem:[%s4 + $0x20] sm:$0xff]
  %v71 = vld [vmem:[%s4 + $0x28] sm:$0xff]
  %v72 = vld [vmem:[%s4 + $0x30] sm:$0xff]
  %v73 = vld [vmem:[%s4 + $0x38] sm:$0xff]
  %v74 = vld [vmem:[%s2] sm:$0xff]
  %v75 = vld [vmem:[%s2 + $0x8] sm:$0xff]
  %v76 = vld [vmem:[%s2 + $0x10] sm:$0xff]
  %v77 = vld [vmem:[%s2 + $0x18] sm:$0xff]
  %vm78 = vcmask 523264
  %v80 = vsel %vm78, %v62, 0
  %v83 = vsel %vm78, %v63, 0
  %v86 = vsel %vm78, %v64, 0
  %v89 = vsel %vm78, %v65, 0
  %91 = vmatprep.subr.mxu0 0.0
  %92 = vmatpush1.msra.mxu0 0.0
  %93 = vmatprep.subr.mxu0 0.0
  %94 = vmatpush1.msra.mxu0 0.0
  %95 = vmatprep.subr.mxu0 0.0
  %96 = vmatpush1.msra.mxu0 0.0
  %97 = vmatprep.subr.mxu0 0.0
  %98 = vmatpush1.msra.mxu0 0.0
  %99 = vmatprep.subr.mxu0 0.0
  %100 = vmatpush1.msra.mxu0 0.0
  %101 = vmatprep.subr.mxu0 0.0
  %102 = vmatpush1.msra.mxu0 0.0
  %103 = vmatprep.subr.mxu0 0.0
  %104 = vmatpush1.msra.mxu0 0.0
  %105 = vmatprep.subr.mxu0 0.0
  %106 = vmatpush1.msra.mxu0 0.0
  %107 = vmatprep.subr.mxu0 0.0
  %108 = vmatpush1.msra.mxu0 %v73
  %109 = vmatprep.subr.mxu0 0.0
  %110 = vmatpush1.msra.mxu0 %v72
  %111 = vmatprep.subr.mxu0 0.0
  %112 = vmatpush1.msra.mxu0 %v71
  %113 = vmatprep.subr.mxu0 0.0
  %114 = vmatpush1.msra.mxu0 %v70
  %115 = vmatprep.subr.mxu0 0.0
  %116 = vmatpush1.msra.mxu0 %v69
  %117 = vmatprep.subr.mxu0 0.0
  %118 = vmatpush1.msra.mxu0 %v68
  %119 = vmatprep.subr.mxu0 0.0
  %120 = vmatpush1.msra.mxu0 %v67
  %121 = vmatprep.subr.mxu0 0.0
  %122 = vmatpush1.msra.mxu0 %v66
  %123 = vmatprep.subr.mxu0 0.0
  %124 = vmatpush2.msra.mxu0 0.0
  %125 = vmatprep.subr.mxu0 0.0
  %126 = vmatpush2.msra.mxu0 0.0
  %127 = vmatprep.subr.mxu0 0.0
  %128 = vmatpush2.msra.mxu0 0.0
  %129 = vmatprep.subr.mxu0 0.0
  %130 = vmatpush2.msra.mxu0 0.0
  %131 = vmatprep.subr.mxu0 0.0
  %132 = vmatpush2.msra.mxu0 0.0
  %133 = vmatprep.subr.mxu0 0.0
  %134 = vmatpush2.msra.mxu0 0.0
  %135 = vmatprep.subr.mxu0 0.0
  %136 = vmatpush2.msra.mxu0 0.0
  %137 = vmatprep.subr.mxu0 0.0
  %138 = vmatpush2.msra.mxu0 0.0
  %139 = vmatprep.subr.mxu0 0.0
  %140 = vmatpush2.msra.mxu0 0.0
  %141 = vmatprep.subr.mxu0 0.0
  %142 = vmatpush2.msra.mxu0 0.0
  %143 = vmatprep.subr.mxu0 0.0
  %144 = vmatpush2.msra.mxu0 0.0
  %145 = vmatprep.subr.mxu0 0.0
  %146 = vmatpush2.msra.mxu0 0.0
  %147 = vmatprep.subr.mxu0 0.0
  %148 = vmatpush2.msra.mxu0 0.0
  %149 = vmatprep.subr.mxu0 0.0
  %150 = vmatpush2.msra.mxu0 0.0
  %151 = vmatprep.subr.mxu0 0.0
  %152 = vmatpush2.msra.mxu0 0.0
  %153 = vmatprep.subr.mxu0 0.0
  %154 = vmatpush2.msra.mxu0 0.0
  %155 = vmatprep.mubr.f32.mxu0 0.0
  %156 = vmatmul.mubr.f32.gmra.mxu0 %v80
  %v157 = vpop.f32.mrf.mxu0
  %v158 = vadd.f32 %v74, %v157
  %v159 = vpop.f32.mrf.mxu0
  %160 = vmatprep.mubr.f32.mxu0 0.0
  %161 = vmatmul.mubr.f32.gmra.mxu0 %v83
  %v162 = vpop.f32.mrf.mxu0
  %v163 = vadd.f32 %v75, %v162
  %v164 = vpop.f32.mrf.mxu0
  %165 = vmatprep.mubr.f32.mxu0 0.0
  %166 = vmatmul.mubr.f32.gmra.mxu0 %v86
  %v167 = vpop.f32.mrf.mxu0
  %v168 = vadd.f32 %v76, %v167
  %v169 = vpop.f32.mrf.mxu0
  %170 = vmatprep.mubr.f32.mxu0 0.0
  %171 = vmatmul.mubr.f32.gmra.mxu0 %v89
  %v172 = vpop.f32.mrf.mxu0
  %v173 = vadd.f32 %v77, %v172
  %v174 = vpop.f32.mrf.mxu0
  %175 = vdwg.mxu0
  %v176 = vld [vmem:[%s3] sm:$0x1]
  %v177 = vld [vmem:[%s1] sm:$0xff]
  %v178 = vld [vmem:[%s1 + $0x8] sm:$0x3]
  %vm179 = vcmask 269312
  %v181 = vsel %vm179, %v177, 0
  %v184 = vsel %vm179, %v178, 0
  %vm186 = vcmask 1040384
  %v188 = vsel %vm186, %v176, 0
  %190 = vmatprep.subr.mxu0 0.0
  %191 = vmatpush1.msra.mxu0 0.0
  %192 = vmatprep.subr.mxu0 0.0
  %193 = vmatpush1.msra.mxu0 0.0
  %194 = vmatprep.subr.mxu0 0.0
  %195 = vmatpush1.msra.mxu0 0.0
  %196 = vmatprep.subr.mxu0 0.0
  %197 = vmatpush1.msra.mxu0 0.0
  %198 = vmatprep.subr.mxu0 0.0
  %199 = vmatpush1.msra.mxu0 0.0
  %200 = vmatprep.subr.mxu0 0.0
  %201 = vmatpush1.msra.mxu0 0.0
  %202 = vmatprep.subr.mxu0 0.0
  %203 = vmatpush1.msra.mxu0 0.0
  %204 = vmatprep.subr.mxu0 0.0
  %205 = vmatpush1.msra.mxu0 0.0
  %206 = vmatprep.subr.mxu0 0.0
  %207 = vmatpush1.msra.mxu0 0.0
  %208 = vmatprep.subr.mxu0 0.0
  %209 = vmatpush1.msra.mxu0 0.0
  %210 = vmatprep.subr.mxu0 0.0
  %211 = vmatpush1.msra.mxu0 0.0
  %212 = vmatprep.subr.mxu0 0.0
  %213 = vmatpush1.msra.mxu0 %v188
  %214 = vmatprep.subr.mxu0 0.0
  %215 = vmatpush1.msra.mxu0 %v173
  %216 = vmatprep.subr.mxu0 0.0
  %217 = vmatpush1.msra.mxu0 %v168
  %218 = vmatprep.subr.mxu0 0.0
  %219 = vmatpush1.msra.mxu0 %v163
  %220 = vmatprep.subr.mxu0 0.0
  %221 = vmatpush1.msra.mxu0 %v158
  %222 = vmatprep.subr.mxu0 0.0
  %223 = vmatpush2.msra.mxu0 0.0
  %224 = vmatprep.subr.mxu0 0.0
  %225 = vmatpush2.msra.mxu0 0.0
  %226 = vmatprep.subr.mxu0 0.0
  %227 = vmatpush2.msra.mxu0 0.0
  %228 = vmatprep.subr.mxu0 0.0
  %229 = vmatpush2.msra.mxu0 0.0
  %230 = vmatprep.subr.mxu0 0.0
  %231 = vmatpush2.msra.mxu0 0.0
  %232 = vmatprep.subr.mxu0 0.0
  %233 = vmatpush2.msra.mxu0 0.0
  %234 = vmatprep.subr.mxu0 0.0
  %235 = vmatpush2.msra.mxu0 0.0
  %236 = vmatprep.subr.mxu0 0.0
  %237 = vmatpush2.msra.mxu0 0.0
  %238 = vmatprep.subr.mxu0 0.0
  %239 = vmatpush2.msra.mxu0 0.0
  %240 = vmatprep.subr.mxu0 0.0
  %241 = vmatpush2.msra.mxu0 0.0
  %242 = vmatprep.subr.mxu0 0.0
  %243 = vmatpush2.msra.mxu0 0.0
  %244 = vmatprep.subr.mxu0 0.0
  %245 = vmatpush2.msra.mxu0 0.0
  %246 = vmatprep.subr.mxu0 0.0
  %247 = vmatpush2.msra.mxu0 0.0
  %248 = vmatprep.subr.mxu0 0.0
  %249 = vmatpush2.msra.mxu0 0.0
  %250 = vmatprep.subr.mxu0 0.0
  %251 = vmatpush2.msra.mxu0 0.0
  %252 = vmatprep.subr.mxu0 0.0
  %253 = vmatpush2.msra.mxu0 0.0
  %254 = vmatprep.mubr.f32.mxu0 0.0
  %255 = vmatmul.mubr.f32.gmra.mxu0 %v181
  %v256 = vpop.f32.mrf.mxu0
  %v257 = vadd.f32 0.0, %v256
  %v258 = vpop.f32.mrf.mxu0
  %259 = vmatprep.mubr.f32.mxu0 0.0
  %260 = vmatmul.mubr.f32.gmra.mxu0 %v184
  %v261 = vpop.f32.mrf.mxu0
  %v262 = vadd.f32 0.0, %v261
  %v263 = vpop.f32.mrf.mxu0
  %264 = vdwg.mxu0
  %v265 = vld [vmem:[%s5] sm:$0x1]
  %v266 = vld [vmem:[%s6] sm:$0x1]
  %vm267 = vcmask 392192
  %v268 = vsel %vm267, %v257, 0.0
  %269 = vadd.xlane.f32.xlu0 %v268
  %v270 = vpop.xlane.xlu0 %269
  %vm271 = vcmask 386048
  %v272 = vsel %vm271, %v262, 0.0
  %273 = vadd.xlane.f32.xlu0 %v272
  %v274 = vpop.xlane.xlu0 %273
  %v275 = vmul.f32 %v270, 0.020833334
  %v276 = vmul.f32 %v274, 0.020833334
  %v277 = vsub.f32 %v257, %v275
  %v278 = vsub.f32 %v262, %v276
  %v279 = vmul.f32 %v277, %v277
  %v280 = vmul.f32 %v278, %v278
  %v281 = vsel %vm267, %v279, 0.0
  %282 = vadd.xlane.f32.xlu0 %v281
  %v283 = vpop.xlane.xlu0 %282
  %v284 = vsel %vm271, %v280, 0.0
  %285 = vadd.xlane.f32.xlu0 %v284
  %v286 = vpop.xlane.xlu0 %285
  %v287 = vmul.f32 %v283, 0.020833334
  %v288 = vmul.f32 %v286, 0.020833334
  %v289 = vadd.f32 %v287, 1e-05
  %v290 = vadd.f32 %v288, 1e-05
  %v291 = vrsqrt.pop %v289
  %v292 = vrsqrt.pop %v290
  %v293 = vmul.f32 %v277, %v291
  %v294 = vmul.f32 %v278, %v292
  %v296 = vlaneseq
  %v297 = vshrl.u32 %v296, 7
  %v298 = vsub.s32 0, %v297
  %v299 = vrot.slane %v265, %v298
  %v301 = vmul.f32 %v293, %v299
  %v302 = vmul.f32 %v294, %v299
  %v304 = vlaneseq
  %v305 = vshrl.u32 %v304, 7
  %v306 = vsub.s32 0, %v305
  %v307 = vrot.slane %v266, %v306
  %v309 = vadd.f32 %v301, %v307
  %v310 = vadd.f32 %v302, %v307
  %v311 = vld [vmem:[%s7] sm:$0xff]
  %v312 = vld [vmem:[%s7 + $0x8] sm:$0xff]
  %v313 = vld [vmem:[%s7 + $0x10] sm:$0xff]
  %v314 = vld [vmem:[%s7 + $0x18] sm:$0xff]
  %v315 = vld [vmem:[%s7 + $0x20] sm:$0xff]
  %v316 = vld [vmem:[%s7 + $0x28] sm:$0xff]
  %v317 = vld [vmem:[%s7 + $0x30] sm:$0xff]
  %v318 = vld [vmem:[%s7 + $0x38] sm:$0xff]
  %v319 = vld [vmem:[%s7 + $0x40] sm:$0xff]
  %v320 = vld [vmem:[%s7 + $0x48] sm:$0xff]
  %v321 = vld [vmem:[%s7 + $0x50] sm:$0xff]
  %v322 = vld [vmem:[%s7 + $0x58] sm:$0xff]
  %v323 = vld [vmem:[%s8] sm:$0x3]
  %v325 = vlaneseq
  %v326 = vshrl.u32 %v325, 7
  %v327 = vsub.s32 0, %v326
  %v328 = vrot.slane %v323, %v327
  %v329 = vlaneseq
  %v330 = vshrl.u32 %v329, 7
  %v331 = vsub.s32 1, %v330
  %v332 = vrot.slane %v323, %v331
  %v336 = vsel %vm267, %v309, 0
  %v339 = vsel %vm267, %v310, 0
  %341 = vmatprep.subr.mxu0 0.0
  %342 = vmatpush1.msra.mxu0 0.0
  %343 = vmatprep.subr.mxu0 0.0
  %344 = vmatpush1.msra.mxu0 0.0
  %345 = vmatprep.subr.mxu0 0.0
  %346 = vmatpush1.msra.mxu0 0.0
  %347 = vmatprep.subr.mxu0 0.0
  %348 = vmatpush1.msra.mxu0 0.0
  %349 = vmatprep.subr.mxu0 0.0
  %350 = vmatpush1.msra.mxu0 0.0
  %351 = vmatprep.subr.mxu0 0.0
  %352 = vmatpush1.msra.mxu0 0.0
  %353 = vmatprep.subr.mxu0 0.0
  %354 = vmatpush1.msra.mxu0 0.0
  %355 = vmatprep.subr.mxu0 0.0
  %356 = vmatpush1.msra.mxu0 0.0
  %357 = vmatprep.subr.mxu0 0.0
  %358 = vmatpush1.msra.mxu0 0.0
  %359 = vmatprep.subr.mxu0 0.0
  %360 = vmatpush1.msra.mxu0 0.0
  %361 = vmatprep.subr.mxu0 %v322
  %362 = vmatpush1.msra.mxu0 %v321
  %363 = vmatprep.subr.mxu0 %v320
  %364 = vmatpush1.msra.mxu0 %v319
  %365 = vmatprep.subr.mxu0 %v318
  %366 = vmatpush1.msra.mxu0 %v317
  %367 = vmatprep.subr.mxu0 %v316
  %368 = vmatpush1.msra.mxu0 %v315
  %369 = vmatprep.subr.mxu0 %v314
  %370 = vmatpush1.msra.mxu0 %v313
  %371 = vmatprep.subr.mxu0 %v312
  %372 = vmatpush1.msra.mxu0 %v311
  %373 = vmatprep.subr.mxu0 0.0
  %374 = vmatpush2.msra.mxu0 0.0
  %375 = vmatprep.subr.mxu0 0.0
  %376 = vmatpush2.msra.mxu0 0.0
  %377 = vmatprep.subr.mxu0 0.0
  %378 = vmatpush2.msra.mxu0 0.0
  %379 = vmatprep.subr.mxu0 0.0
  %380 = vmatpush2.msra.mxu0 0.0
  %381 = vmatprep.subr.mxu0 0.0
  %382 = vmatpush2.msra.mxu0 0.0
  %383 = vmatprep.subr.mxu0 0.0
  %384 = vmatpush2.msra.mxu0 0.0
  %385 = vmatprep.subr.mxu0 0.0
  %386 = vmatpush2.msra.mxu0 0.0
  %387 = vmatprep.subr.mxu0 0.0
  %388 = vmatpush2.msra.mxu0 0.0
  %389 = vmatprep.subr.mxu0 0.0
  %390 = vmatpush2.msra.mxu0 0.0
  %391 = vmatprep.subr.mxu0 0.0
  %392 = vmatpush2.msra.mxu0 0.0
  %393 = vmatprep.subr.mxu0 0.0
  %394 = vmatpush2.msra.mxu0 0.0
  %395 = vmatprep.subr.mxu0 0.0
  %396 = vmatpush2.msra.mxu0 0.0
  %397 = vmatprep.subr.mxu0 0.0
  %398 = vmatpush2.msra.mxu0 0.0
  %399 = vmatprep.subr.mxu0 0.0
  %400 = vmatpush2.msra.mxu0 0.0
  %401 = vmatprep.subr.mxu0 0.0
  %402 = vmatpush2.msra.mxu0 0.0
  %403 = vmatprep.subr.mxu0 0.0
  %404 = vmatpush2.msra.mxu0 0.0
  %405 = vmatprep.mubr.f32.mxu0 0.0
  %406 = vmatmul.mubr.f32.gmra.mxu0 %v336
  %v407 = vpop.f32.mrf.mxu0
  %v408 = vadd.f32 %v328, %v407
  %v409 = vpop.f32.mrf.mxu0
  %v410 = vadd.f32 %v332, %v409
  %411 = vmatprep.mubr.f32.mxu0 0.0
  %412 = vmatmul.mubr.f32.gmra.mxu0 %v339
  %v413 = vpop.f32.mrf.mxu0
  %v414 = vadd.f32 %v328, %v413
  %v415 = vpop.f32.mrf.mxu0
  %v416 = vadd.f32 %v332, %v415
  %417 = vdwg.mxu0
  %419 = vrot.lane.b32.xlu0 %v408, 80
  %v420 = vpop.permute.xlu0 %419
  %vm421 = vcmask 130048
  %v422 = vsel %vm421, %v408, 0
  %v424 = vsel %vm421, %v420, 0
  %426 = vmatprep.subr.mxu0 0.0
  %427 = vmatpush1.xpose.msra.mxu0 0.0
  %428 = vmatprep.subr.mxu0 0.0
  %429 = vmatpush1.xpose.msra.mxu0 0.0
  %430 = vmatprep.subr.mxu0 0.0
  %431 = vmatpush1.xpose.msra.mxu0 0.0
  %432 = vmatprep.subr.mxu0 0.0
  %433 = vmatpush1.xpose.msra.mxu0 0.0
  %434 = vmatprep.subr.mxu0 0.0
  %435 = vmatpush1.xpose.msra.mxu0 0.0
  %436 = vmatprep.subr.mxu0 0.0
  %437 = vmatpush1.xpose.msra.mxu0 0.0
  %438 = vmatprep.subr.mxu0 0.0
  %439 = vmatpush1.xpose.msra.mxu0 0.0
  %440 = vmatprep.subr.mxu0 0.0
  %441 = vmatpush1.xpose.msra.mxu0 0.0
  %442 = vmatprep.subr.mxu0 0.0
  %443 = vmatpush1.xpose.msra.mxu0 0.0
  %444 = vmatprep.subr.mxu0 0.0
  %445 = vmatpush1.xpose.msra.mxu0 0.0
  %446 = vmatprep.subr.mxu0 0.0
  %447 = vmatpush1.xpose.msra.mxu0 0.0
  %448 = vmatprep.subr.mxu0 0.0
  %449 = vmatpush1.xpose.msra.mxu0 0.0
  %450 = vmatprep.subr.mxu0 0.0
  %451 = vmatpush1.xpose.msra.mxu0 0.0
  %452 = vmatprep.subr.mxu0 0.0
  %453 = vmatpush1.xpose.msra.mxu0 0.0
  %454 = vmatprep.subr.mxu0 0.0
  %455 = vmatpush1.xpose.msra.mxu0 0.0
  %456 = vmatprep.subr.mxu0 0.0
  %457 = vmatpush1.xpose.msra.mxu0 %v424
  %458 = vmatprep.subr.mxu0 0.0
  %459 = vmatpush2.xpose.msra.mxu0 0.0
  %460 = vmatprep.subr.mxu0 0.0
  %461 = vmatpush2.xpose.msra.mxu0 0.0
  %462 = vmatprep.subr.mxu0 0.0
  %463 = vmatpush2.xpose.msra.mxu0 0.0
  %464 = vmatprep.subr.mxu0 0.0
  %465 = vmatpush2.xpose.msra.mxu0 0.0
  %466 = vmatprep.subr.mxu0 0.0
  %467 = vmatpush2.xpose.msra.mxu0 0.0
  %468 = vmatprep.subr.mxu0 0.0
  %469 = vmatpush2.xpose.msra.mxu0 0.0
  %470 = vmatprep.subr.mxu0 0.0
  %471 = vmatpush2.xpose.msra.mxu0 0.0
  %472 = vmatprep.subr.mxu0 0.0
  %473 = vmatpush2.xpose.msra.mxu0 0.0
  %474 = vmatprep.subr.mxu0 0.0
  %475 = vmatpush2.xpose.msra.mxu0 0.0
  %476 = vmatprep.subr.mxu0 0.0
  %477 = vmatpush2.xpose.msra.mxu0 0.0
  %478 = vmatprep.subr.mxu0 0.0
  %479 = vmatpush2.xpose.msra.mxu0 0.0
  %480 = vmatprep.subr.mxu0 0.0
  %481 = vmatpush2.xpose.msra.mxu0 0.0
  %482 = vmatprep.subr.mxu0 0.0
  %483 = vmatpush2.xpose.msra.mxu0 0.0
  %484 = vmatprep.subr.mxu0 0.0
  %485 = vmatpush2.xpose.msra.mxu0 0.0
  %486 = vmatprep.subr.mxu0 0.0
  %487 = vmatpush2.xpose.msra.mxu0 0.0
  %488 = vmatprep.subr.mxu0 0.0
  %489 = vmatpush2.xpose.msra.mxu0 0.0
  %490 = vmatprep.mubr.f32.mxu0 0.0
  %491 = vmatmul.mubr.f32.gmra.mxu0 %v422
  %v492 = vpop.f32.mrf.mxu0
  %v493 = vadd.f32 0.0, %v492
  %v494 = vpop.f32.mrf.mxu0
  %495 = vdwg.mxu0
  %v496 = vmul.f32 %v493, 0.25
  %vm497 = vcmask 36864
  %v498 = vsel %vm497, %v496, -inf
  %499 = vmax.xlane.f32.xlu0 %v498
  %v500 = vpop.xlane.xlu0 %499
  %v501 = vsub.f32 %v496, %v500
  %v502 = vmul.f32 %v501, 1.442695
  %v503 = vpow.pop %v502
  %v504 = vsel %vm497, %v503, 0.0
  %505 = vadd.xlane.f32.xlu0 %v504
  %v506 = vpop.xlane.xlu0 %505
  %v507 = vrcp.pop %v506
  %v508 = vmul.f32 %v503, %v507
  %509 = vrot.lane.b32.xlu0 %v408, 32
  %v510 = vpop.permute.xlu0 %509
  %vm511 = vcmask 39936
  %v513 = vsel %vm511, %v508, 0
  %vm515 = vcmask 1044480
  %v516 = vsel %vm515, %v510, 0
  %518 = vmatprep.subr.mxu0 0.0
  %519 = vmatpush1.msra.mxu0 0.0
  %520 = vmatprep.subr.mxu0 0.0
  %521 = vmatpush1.msra.mxu0 0.0
  %522 = vmatprep.subr.mxu0 0.0
  %523 = vmatpush1.msra.mxu0 0.0
  %524 = vmatprep.subr.mxu0 0.0
  %525 = vmatpush1.msra.mxu0 0.0
  %526 = vmatprep.subr.mxu0 0.0
  %527 = vmatpush1.msra.mxu0 0.0
  %528 = vmatprep.subr.mxu0 0.0
  %529 = vmatpush1.msra.mxu0 0.0
  %530 = vmatprep.subr.mxu0 0.0
  %531 = vmatpush1.msra.mxu0 0.0
  %532 = vmatprep.subr.mxu0 0.0
  %533 = vmatpush1.msra.mxu0 0.0
  %534 = vmatprep.subr.mxu0 0.0
  %535 = vmatpush1.msra.mxu0 0.0
  %536 = vmatprep.subr.mxu0 0.0
  %537 = vmatpush1.msra.mxu0 0.0
  %538 = vmatprep.subr.mxu0 0.0
  %539 = vmatpush1.msra.mxu0 0.0
  %540 = vmatprep.subr.mxu0 0.0
  %541 = vmatpush1.msra.mxu0 0.0
  %542 = vmatprep.subr.mxu0 0.0
  %543 = vmatpush1.msra.mxu0 0.0
  %544 = vmatprep.subr.mxu0 0.0
  %545 = vmatpush1.msra.mxu0 0.0
  %546 = vmatprep.subr.mxu0 0.0
  %547 = vmatpush1.msra.mxu0 0.0
  %548 = vmatprep.subr.mxu0 0.0
  %549 = vmatpush1.msra.mxu0 %v516
  %550 = vmatprep.subr.mxu0 0.0
  %551 = vmatpush2.msra.mxu0 0.0
  %552 = vmatprep.subr.mxu0 0.0
  %553 = vmatpush2.msra.mxu0 0.0
  %554 = vmatprep.subr.mxu0 0.0
  %555 = vmatpush2.msra.mxu0 0.0
  %556 = vmatprep.subr.mxu0 0.0
  %557 = vmatpush2.msra.mxu0 0.0
  %558 = vmatprep.subr.mxu0 0.0
  %559 = vmatpush2.msra.mxu0 0.0
  %560 = vmatprep.subr.mxu0 0.0
  %561 = vmatpush2.msra.mxu0 0.0
  %562 = vmatprep.subr.mxu0 0.0
  %563 = vmatpush2.msra.mxu0 0.0
  %564 = vmatprep.subr.mxu0 0.0
  %565 = vmatpush2.msra.mxu0 0.0
  %566 = vmatprep.subr.mxu0 0.0
  %567 = vmatpush2.msra.mxu0 0.0
  %568 = vmatprep.subr.mxu0 0.0
  %569 = vmatpush2.msra.mxu0 0.0
  %570 = vmatprep.subr.mxu0 0.0
  %571 = vmatpush2.msra.mxu0 0.0
  %572 = vmatprep.subr.mxu0 0.0
  %573 = vmatpush2.msra.mxu0 0.0
  %574 = vmatprep.subr.mxu0 0.0
  %575 = vmatpush2.msra.mxu0 0.0
  %576 = vmatprep.subr.mxu0 0.0
  %577 = vmatpush2.msra.mxu0 0.0
  %578 = vmatprep.subr.mxu0 0.0
  %579 = vmatpush2.msra.mxu0 0.0
  %580 = vmatprep.subr.mxu0 0.0
  %581 = vmatpush2.msra.mxu0 0.0
  %582 = vmatprep.mubr.f32.mxu0 0.0
  %583 = vmatmul.mubr.f32.gmra.mxu0 %v513
  %v584 = vpop.f32.mrf.mxu0
  %v585 = vadd.f32 0.0, %v584
  %v586 = vpop.f32.mrf.mxu0
  %587 = vdwg.mxu0
  %588 = vrot.lane.b32.xlu0 %v408, 112
  %v589 = vpop.permute.xlu0 %588
  %590 = vrot.lane.b32.xlu0 %v408, 64
  %v591 = vpop.permute.xlu0 %590
  %v592 = vsel %vm421, %v589, 0
  %v594 = vsel %vm421, %v591, 0
  %596 = vmatprep.subr.mxu0 0.0
  %597 = vmatpush1.xpose.msra.mxu0 0.0
  %598 = vmatprep.subr.mxu0 0.0
  %599 = vmatpush1.xpose.msra.mxu0 0.0
  %600 = vmatprep.subr.mxu0 0.0
  %601 = vmatpush1.xpose.msra.mxu0 0.0
  %602 = vmatprep.subr.mxu0 0.0
  %603 = vmatpush1.xpose.msra.mxu0 0.0
  %604 = vmatprep.subr.mxu0 0.0
  %605 = vmatpush1.xpose.msra.mxu0 0.0
  %606 = vmatprep.subr.mxu0 0.0
  %607 = vmatpush1.xpose.msra.mxu0 0.0
  %608 = vmatprep.subr.mxu0 0.0
  %609 = vmatpush1.xpose.msra.mxu0 0.0
  %610 = vmatprep.subr.mxu0 0.0
  %611 = vmatpush1.xpose.msra.mxu0 0.0
  %612 = vmatprep.subr.mxu0 0.0
  %613 = vmatpush1.xpose.msra.mxu0 0.0
  %614 = vmatprep.subr.mxu0 0.0
  %615 = vmatpush1.xpose.msra.mxu0 0.0
  %616 = vmatprep.subr.mxu0 0.0
  %617 = vmatpush1.xpose.msra.mxu0 0.0
  %618 = vmatprep.subr.mxu0 0.0
  %619 = vmatpush1.xpose.msra.mxu0 0.0
  %620 = vmatprep.subr.mxu0 0.0
  %621 = vmatpush1.xpose.msra.mxu0 0.0
  %622 = vmatprep.subr.mxu0 0.0
  %623 = vmatpush1.xpose.msra.mxu0 0.0
  %624 = vmatprep.subr.mxu0 0.0
  %625 = vmatpush1.xpose.msra.mxu0 0.0
  %626 = vmatprep.subr.mxu0 0.0
  %627 = vmatpush1.xpose.msra.mxu0 %v594
  %628 = vmatprep.subr.mxu0 0.0
  %629 = vmatpush2.xpose.msra.mxu0 0.0
  %630 = vmatprep.subr.mxu0 0.0
  %631 = vmatpush2.xpose.msra.mxu0 0.0
  %632 = vmatprep.subr.mxu0 0.0
  %633 = vmatpush2.xpose.msra.mxu0 0.0
  %634 = vmatprep.subr.mxu0 0.0
  %635 = vmatpush2.xpose.msra.mxu0 0.0
  %636 = vmatprep.subr.mxu0 0.0
  %637 = vmatpush2.xpose.msra.mxu0 0.0
  %638 = vmatprep.subr.mxu0 0.0
  %639 = vmatpush2.xpose.msra.mxu0 0.0
  %640 = vmatprep.subr.mxu0 0.0
  %641 = vmatpush2.xpose.msra.mxu0 0.0
  %642 = vmatprep.subr.mxu0 0.0
  %643 = vmatpush2.xpose.msra.mxu0 0.0
  %644 = vmatprep.subr.mxu0 0.0
  %645 = vmatpush2.xpose.msra.mxu0 0.0
  %646 = vmatprep.subr.mxu0 0.0
  %647 = vmatpush2.xpose.msra.mxu0 0.0
  %648 = vmatprep.subr.mxu0 0.0
  %649 = vmatpush2.xpose.msra.mxu0 0.0
  %650 = vmatprep.subr.mxu0 0.0
  %651 = vmatpush2.xpose.msra.mxu0 0.0
  %652 = vmatprep.subr.mxu0 0.0
  %653 = vmatpush2.xpose.msra.mxu0 0.0
  %654 = vmatprep.subr.mxu0 0.0
  %655 = vmatpush2.xpose.msra.mxu0 0.0
  %656 = vmatprep.subr.mxu0 0.0
  %657 = vmatpush2.xpose.msra.mxu0 0.0
  %658 = vmatprep.subr.mxu0 0.0
  %659 = vmatpush2.xpose.msra.mxu0 0.0
  %660 = vmatprep.mubr.f32.mxu0 0.0
  %661 = vmatmul.mubr.f32.gmra.mxu0 %v592
  %v662 = vpop.f32.mrf.mxu0
  %v663 = vadd.f32 0.0, %v662
  %v664 = vpop.f32.mrf.mxu0
  %665 = vdwg.mxu0
  %v666 = vmul.f32 %v663, 0.25
  %v667 = vsel %vm497, %v666, -inf
  %668 = vmax.xlane.f32.xlu0 %v667
  %v669 = vpop.xlane.xlu0 %668
  %v670 = vsub.f32 %v666, %v669
  %v671 = vmul.f32 %v670, 1.442695
  %v672 = vpow.pop %v671
  %v673 = vsel %vm497, %v672, 0.0
  %674 = vadd.xlane.f32.xlu0 %v673
  %v675 = vpop.xlane.xlu0 %674
  %v676 = vrcp.pop %v675
  %v677 = vmul.f32 %v672, %v676
  %678 = vrot.lane.b32.xlu0 %v408, 16
  %v679 = vpop.permute.xlu0 %678
  %v681 = vsel %vm511, %v677, 0
  %v683 = vsel %vm515, %v679, 0
  %685 = vmatprep.subr.mxu0 0.0
  %686 = vmatpush1.msra.mxu0 0.0
  %687 = vmatprep.subr.mxu0 0.0
  %688 = vmatpush1.msra.mxu0 0.0
  %689 = vmatprep.subr.mxu0 0.0
  %690 = vmatpush1.msra.mxu0 0.0
  %691 = vmatprep.subr.mxu0 0.0
  %692 = vmatpush1.msra.mxu0 0.0
  %693 = vmatprep.subr.mxu0 0.0
  %694 = vmatpush1.msra.mxu0 0.0
  %695 = vmatprep.subr.mxu0 0.0
  %696 = vmatpush1.msra.mxu0 0.0
  %697 = vmatprep.subr.mxu0 0.0
  %698 = vmatpush1.msra.mxu0 0.0
  %699 = vmatprep.subr.mxu0 0.0
  %700 = vmatpush1.msra.mxu0 0.0
  %701 = vmatprep.subr.mxu0 0.0
  %702 = vmatpush1.msra.mxu0 0.0
  %703 = vmatprep.subr.mxu0 0.0
  %704 = vmatpush1.msra.mxu0 0.0
  %705 = vmatprep.subr.mxu0 0.0
  %706 = vmatpush1.msra.mxu0 0.0
  %707 = vmatprep.subr.mxu0 0.0
  %708 = vmatpush1.msra.mxu0 0.0
  %709 = vmatprep.subr.mxu0 0.0
  %710 = vmatpush1.msra.mxu0 0.0
  %711 = vmatprep.subr.mxu0 0.0
  %712 = vmatpush1.msra.mxu0 0.0
  %713 = vmatprep.subr.mxu0 0.0
  %714 = vmatpush1.msra.mxu0 0.0
  %715 = vmatprep.subr.mxu0 0.0
  %716 = vmatpush1.msra.mxu0 %v683
  %717 = vmatprep.subr.mxu0 0.0
  %718 = vmatpush2.msra.mxu0 0.0
  %719 = vmatprep.subr.mxu0 0.0
  %720 = vmatpush2.msra.mxu0 0.0
  %721 = vmatprep.subr.mxu0 0.0
  %722 = vmatpush2.msra.mxu0 0.0
  %723 = vmatprep.subr.mxu0 0.0
  %724 = vmatpush2.msra.mxu0 0.0
  %725 = vmatprep.subr.mxu0 0.0
  %726 = vmatpush2.msra.mxu0 0.0
  %727 = vmatprep.subr.mxu0 0.0
  %728 = vmatpush2.msra.mxu0 0.0
  %729 = vmatprep.subr.mxu0 0.0
  %730 = vmatpush2.msra.mxu0 0.0
  %731 = vmatprep.subr.mxu0 0.0
  %732 = vmatpush2.msra.mxu0 0.0
  %733 = vmatprep.subr.mxu0 0.0
  %734 = vmatpush2.msra.mxu0 0.0
  %735 = vmatprep.subr.mxu0 0.0
  %736 = vmatpush2.msra.mxu0 0.0
  %737 = vmatprep.subr.mxu0 0.0
  %738 = vmatpush2.msra.mxu0 0.0
  %739 = vmatprep.subr.mxu0 0.0
  %740 = vmatpush2.msra.mxu0 0.0
  %741 = vmatprep.subr.mxu0 0.0
  %742 = vmatpush2.msra.mxu0 0.0
  %743 = vmatprep.subr.mxu0 0.0
  %744 = vmatpush2.msra.mxu0 0.0
  %745 = vmatprep.subr.mxu0 0.0
  %746 = vmatpush2.msra.mxu0 0.0
  %747 = vmatprep.subr.mxu0 0.0
  %748 = vmatpush2.msra.mxu0 0.0
  %749 = vmatprep.mubr.f32.mxu0 0.0
  %750 = vmatmul.mubr.f32.gmra.mxu0 %v681
  %v751 = vpop.f32.mrf.mxu0
  %v752 = vadd.f32 0.0, %v751
  %v753 = vpop.f32.mrf.mxu0
  %754 = vdwg.mxu0
  %755 = vrot.lane.b32.xlu0 %v408, 96
  %v756 = vpop.permute.xlu0 %755
  %757 = vrot.lane.b32.xlu0 %v408, 48
  %v758 = vpop.permute.xlu0 %757
  %v759 = vsel %vm421, %v756, 0
  %v761 = vsel %vm421, %v758, 0
  %763 = vmatprep.subr.mxu0 0.0
  %764 = vmatpush1.xpose.msra.mxu0 0.0
  %765 = vmatprep.subr.mxu0 0.0
  %766 = vmatpush1.xpose.msra.mxu0 0.0
  %767 = vmatprep.subr.mxu0 0.0
  %768 = vmatpush1.xpose.msra.mxu0 0.0
  %769 = vmatprep.subr.mxu0 0.0
  %770 = vmatpush1.xpose.msra.mxu0 0.0
  %771 = vmatprep.subr.mxu0 0.0
  %772 = vmatpush1.xpose.msra.mxu0 0.0
  %773 = vmatprep.subr.mxu0 0.0
  %774 = vmatpush1.xpose.msra.mxu0 0.0
  %775 = vmatprep.subr.mxu0 0.0
  %776 = vmatpush1.xpose.msra.mxu0 0.0
  %777 = vmatprep.subr.mxu0 0.0
  %778 = vmatpush1.xpose.msra.mxu0 0.0
  %779 = vmatprep.subr.mxu0 0.0
  %780 = vmatpush1.xpose.msra.mxu0 0.0
  %781 = vmatprep.subr.mxu0 0.0
  %782 = vmatpush1.xpose.msra.mxu0 0.0
  %783 = vmatprep.subr.mxu0 0.0
  %784 = vmatpush1.xpose.msra.mxu0 0.0
  %785 = vmatprep.subr.mxu0 0.0
  %786 = vmatpush1.xpose.msra.mxu0 0.0
  %787 = vmatprep.subr.mxu0 0.0
  %788 = vmatpush1.xpose.msra.mxu0 0.0
  %789 = vmatprep.subr.mxu0 0.0
  %790 = vmatpush1.xpose.msra.mxu0 0.0
  %791 = vmatprep.subr.mxu0 0.0
  %792 = vmatpush1.xpose.msra.mxu0 0.0
  %793 = vmatprep.subr.mxu0 0.0
  %794 = vmatpush1.xpose.msra.mxu0 %v761
  %795 = vmatprep.subr.mxu0 0.0
  %796 = vmatpush2.xpose.msra.mxu0 0.0
  %797 = vmatprep.subr.mxu0 0.0
  %798 = vmatpush2.xpose.msra.mxu0 0.0
  %799 = vmatprep.subr.mxu0 0.0
  %800 = vmatpush2.xpose.msra.mxu0 0.0
  %801 = vmatprep.subr.mxu0 0.0
  %802 = vmatpush2.xpose.msra.mxu0 0.0
  %803 = vmatprep.subr.mxu0 0.0
  %804 = vmatpush2.xpose.msra.mxu0 0.0
  %805 = vmatprep.subr.mxu0 0.0
  %806 = vmatpush2.xpose.msra.mxu0 0.0
  %807 = vmatprep.subr.mxu0 0.0
  %808 = vmatpush2.xpose.msra.mxu0 0.0
  %809 = vmatprep.subr.mxu0 0.0
  %810 = vmatpush2.xpose.msra.mxu0 0.0
  %811 = vmatprep.subr.mxu0 0.0
  %812 = vmatpush2.xpose.msra.mxu0 0.0
  %813 = vmatprep.subr.mxu0 0.0
  %814 = vmatpush2.xpose.msra.mxu0 0.0
  %815 = vmatprep.subr.mxu0 0.0
  %816 = vmatpush2.xpose.msra.mxu0 0.0
  %817 = vmatprep.subr.mxu0 0.0
  %818 = vmatpush2.xpose.msra.mxu0 0.0
  %819 = vmatprep.subr.mxu0 0.0
  %820 = vmatpush2.xpose.msra.mxu0 0.0
  %821 = vmatprep.subr.mxu0 0.0
  %822 = vmatpush2.xpose.msra.mxu0 0.0
  %823 = vmatprep.subr.mxu0 0.0
  %824 = vmatpush2.xpose.msra.mxu0 0.0
  %825 = vmatprep.subr.mxu0 0.0
  %826 = vmatpush2.xpose.msra.mxu0 0.0
  %827 = vmatprep.mubr.f32.mxu0 0.0
  %828 = vmatmul.mubr.f32.gmra.mxu0 %v759
  %v829 = vpop.f32.mrf.mxu0
  %v830 = vadd.f32 0.0, %v829
  %v831 = vpop.f32.mrf.mxu0
  %832 = vdwg.mxu0
  %v833 = vmul.f32 %v830, 0.25
  %v834 = vsel %vm497, %v833, -inf
  %835 = vmax.xlane.f32.xlu0 %v834
  %v836 = vpop.xlane.xlu0 %835
  %v837 = vsub.f32 %v833, %v836
  %v838 = vmul.f32 %v837, 1.442695
  %v839 = vpow.pop %v838
  %v840 = vsel %vm497, %v839, 0.0
  %841 = vadd.xlane.f32.xlu0 %v840
  %v842 = vpop.xlane.xlu0 %841
  %v843 = vrcp.pop %v842
  %v844 = vmul.f32 %v839, %v843
  %v846 = vsel %vm511, %v844, 0
  %v849 = vsel %vm515, %v410, 0
  %851 = vmatprep.subr.mxu0 0.0
  %852 = vmatpush1.msra.mxu0 0.0
  %853 = vmatprep.subr.mxu0 0.0
  %854 = vmatpush1.msra.mxu0 0.0
  %855 = vmatprep.subr.mxu0 0.0
  %856 = vmatpush1.msra.mxu0 0.0
  %857 = vmatprep.subr.mxu0 0.0
  %858 = vmatpush1.msra.mxu0 0.0
  %859 = vmatprep.subr.mxu0 0.0
  %860 = vmatpush1.msra.mxu0 0.0
  %861 = vmatprep.subr.mxu0 0.0
  %862 = vmatpush1.msra.mxu0 0.0
  %863 = vmatprep.subr.mxu0 0.0
  %864 = vmatpush1.msra.mxu0 0.0
  %865 = vmatprep.subr.mxu0 0.0
  %866 = vmatpush1.msra.mxu0 0.0
  %867 = vmatprep.subr.mxu0 0.0
  %868 = vmatpush1.msra.mxu0 0.0
  %869 = vmatprep.subr.mxu0 0.0
  %870 = vmatpush1.msra.mxu0 0.0
  %871 = vmatprep.subr.mxu0 0.0
  %872 = vmatpush1.msra.mxu0 0.0
  %873 = vmatprep.subr.mxu0 0.0
  %874 = vmatpush1.msra.mxu0 0.0
  %875 = vmatprep.subr.mxu0 0.0
  %876 = vmatpush1.msra.mxu0 0.0
  %877 = vmatprep.subr.mxu0 0.0
  %878 = vmatpush1.msra.mxu0 0.0
  %879 = vmatprep.subr.mxu0 0.0
  %880 = vmatpush1.msra.mxu0 0.0
  %881 = vmatprep.subr.mxu0 0.0
  %882 = vmatpush1.msra.mxu0 %v849
  %883 = vmatprep.subr.mxu0 0.0
  %884 = vmatpush2.msra.mxu0 0.0
  %885 = vmatprep.subr.mxu0 0.0
  %886 = vmatpush2.msra.mxu0 0.0
  %887 = vmatprep.subr.mxu0 0.0
  %888 = vmatpush2.msra.mxu0 0.0
  %889 = vmatprep.subr.mxu0 0.0
  %890 = vmatpush2.msra.mxu0 0.0
  %891 = vmatprep.subr.mxu0 0.0
  %892 = vmatpush2.msra.mxu0 0.0
  %893 = vmatprep.subr.mxu0 0.0
  %894 = vmatpush2.msra.mxu0 0.0
  %895 = vmatprep.subr.mxu0 0.0
  %896 = vmatpush2.msra.mxu0 0.0
  %897 = vmatprep.subr.mxu0 0.0
  %898 = vmatpush2.msra.mxu0 0.0
  %899 = vmatprep.subr.mxu0 0.0
  %900 = vmatpush2.msra.mxu0 0.0
  %901 = vmatprep.subr.mxu0 0.0
  %902 = vmatpush2.msra.mxu0 0.0
  %903 = vmatprep.subr.mxu0 0.0
  %904 = vmatpush2.msra.mxu0 0.0
  %905 = vmatprep.subr.mxu0 0.0
  %906 = vmatpush2.msra.mxu0 0.0
  %907 = vmatprep.subr.mxu0 0.0
  %908 = vmatpush2.msra.mxu0 0.0
  %909 = vmatprep.subr.mxu0 0.0
  %910 = vmatpush2.msra.mxu0 0.0
  %911 = vmatprep.subr.mxu0 0.0
  %912 = vmatpush2.msra.mxu0 0.0
  %913 = vmatprep.subr.mxu0 0.0
  %914 = vmatpush2.msra.mxu0 0.0
  %915 = vmatprep.mubr.f32.mxu0 0.0
  %916 = vmatmul.mubr.f32.gmra.mxu0 %v846
  %v917 = vpop.f32.mrf.mxu0
  %v918 = vadd.f32 0.0, %v917
  %v919 = vpop.f32.mrf.mxu0
  %920 = vdwg.mxu0
  %922 = vrot.lane.b32.xlu0 %v752, 16
  %v923 = vpop.permute.xlu0 %922
  %926 = vrot.lane.b32.xlu0 %v918, 32
  %v927 = vpop.permute.xlu0 %926
  %v929 = vsel %vm421, %v585, %v923
  %vm930 = vcmask 261120
  %v931 = vsel %vm930, %v929, %v927
  %vm933 = vcmask 1042432
  %v934 = vrot.slane %v408, 5
  %v935 = vrot.slane %v414, 5
  %v936 = vsel %vm933, %v934, %v935
  %937 = vrot.lane.b32.xlu0 %v936, 80
  %v938 = vpop.permute.xlu0 %937
  %v939 = vsel %vm421, %v936, 0
  %v941 = vsel %vm421, %v938, 0
  %943 = vmatprep.subr.mxu0 0.0
  %944 = vmatpush1.xpose.msra.mxu0 0.0
  %945 = vmatprep.subr.mxu0 0.0
  %946 = vmatpush1.xpose.msra.mxu0 0.0
  %947 = vmatprep.subr.mxu0 0.0
  %948 = vmatpush1.xpose.msra.mxu0 0.0
  %949 = vmatprep.subr.mxu0 0.0
  %950 = vmatpush1.xpose.msra.mxu0 0.0
  %951 = vmatprep.subr.mxu0 0.0
  %952 = vmatpush1.xpose.msra.mxu0 0.0
  %953 = vmatprep.subr.mxu0 0.0
  %954 = vmatpush1.xpose.msra.mxu0 0.0
  %955 = vmatprep.subr.mxu0 0.0
  %956 = vmatpush1.xpose.msra.mxu0 0.0
  %957 = vmatprep.subr.mxu0 0.0
  %958 = vmatpush1.xpose.msra.mxu0 0.0
  %959 = vmatprep.subr.mxu0 0.0
  %960 = vmatpush1.xpose.msra.mxu0 0.0
  %961 = vmatprep.subr.mxu0 0.0
  %962 = vmatpush1.xpose.msra.mxu0 0.0
  %963 = vmatprep.subr.mxu0 0.0
  %964 = vmatpush1.xpose.msra.mxu0 0.0
  %965 = vmatprep.subr.mxu0 0.0
  %966 = vmatpush1.xpose.msra.mxu0 0.0
  %967 = vmatprep.subr.mxu0 0.0
  %968 = vmatpush1.xpose.msra.mxu0 0.0
  %969 = vmatprep.subr.mxu0 0.0
  %970 = vmatpush1.xpose.msra.mxu0 0.0
  %971 = vmatprep.subr.mxu0 0.0
  %972 = vmatpush1.xpose.msra.mxu0 0.0
  %973 = vmatprep.subr.mxu0 0.0
  %974 = vmatpush1.xpose.msra.mxu0 %v941
  %975 = vmatprep.subr.mxu0 0.0
  %976 = vmatpush2.xpose.msra.mxu0 0.0
  %977 = vmatprep.subr.mxu0 0.0
  %978 = vmatpush2.xpose.msra.mxu0 0.0
  %979 = vmatprep.subr.mxu0 0.0
  %980 = vmatpush2.xpose.msra.mxu0 0.0
  %981 = vmatprep.subr.mxu0 0.0
  %982 = vmatpush2.xpose.msra.mxu0 0.0
  %983 = vmatprep.subr.mxu0 0.0
  %984 = vmatpush2.xpose.msra.mxu0 0.0
  %985 = vmatprep.subr.mxu0 0.0
  %986 = vmatpush2.xpose.msra.mxu0 0.0
  %987 = vmatprep.subr.mxu0 0.0
  %988 = vmatpush2.xpose.msra.mxu0 0.0
  %989 = vmatprep.subr.mxu0 0.0
  %990 = vmatpush2.xpose.msra.mxu0 0.0
  %991 = vmatprep.subr.mxu0 0.0
  %992 = vmatpush2.xpose.msra.mxu0 0.0
  %993 = vmatprep.subr.mxu0 0.0
  %994 = vmatpush2.xpose.msra.mxu0 0.0
  %995 = vmatprep.subr.mxu0 0.0
  %996 = vmatpush2.xpose.msra.mxu0 0.0
  %997 = vmatprep.subr.mxu0 0.0
  %998 = vmatpush2.xpose.msra.mxu0 0.0
  %999 = vmatprep.subr.mxu0 0.0
  %1000 = vmatpush2.xpose.msra.mxu0 0.0
  %1001 = vmatprep.subr.mxu0 0.0
  %1002 = vmatpush2.xpose.msra.mxu0 0.0
  %1003 = vmatprep.subr.mxu0 0.0
  %1004 = vmatpush2.xpose.msra.mxu0 0.0
  %1005 = vmatprep.subr.mxu0 0.0
  %1006 = vmatpush2.xpose.msra.mxu0 0.0
  %1007 = vmatprep.mubr.f32.mxu0 0.0
  %1008 = vmatmul.mubr.f32.gmra.mxu0 %v939
  %v1009 = vpop.f32.mrf.mxu0
  %v1010 = vadd.f32 0.0, %v1009
  %v1011 = vpop.f32.mrf.mxu0
  %1012 = vdwg.mxu0
  %v1013 = vmul.f32 %v1010, 0.25
  %v1014 = vsel %vm497, %v1013, -inf
  %1015 = vmax.xlane.f32.xlu0 %v1014
  %v1016 = vpop.xlane.xlu0 %1015
  %v1017 = vsub.f32 %v1013, %v1016
  %v1018 = vmul.f32 %v1017, 1.442695
  %v1019 = vpow.pop %v1018
  %v1020 = vsel %vm497, %v1019, 0.0
  %1021 = vadd.xlane.f32.xlu0 %v1020
  %v1022 = vpop.xlane.xlu0 %1021
  %v1023 = vrcp.pop %v1022
  %v1024 = vmul.f32 %v1019, %v1023
  %1025 = vrot.lane.b32.xlu0 %v936, 32
  %v1026 = vpop.permute.xlu0 %1025
  %v1028 = vsel %vm511, %v1024, 0
  %v1030 = vsel %vm515, %v1026, 0
  %1032 = vmatprep.subr.mxu0 0.0
  %1033 = vmatpush1.msra.mxu0 0.0
  %1034 = vmatprep.subr.mxu0 0.0
  %1035 = vmatpush1.msra.mxu0 0.0
  %1036 = vmatprep.subr.mxu0 0.0
  %1037 = vmatpush1.msra.mxu0 0.0
  %1038 = vmatprep.subr.mxu0 0.0
  %1039 = vmatpush1.msra.mxu0 0.0
  %1040 = vmatprep.subr.mxu0 0.0
  %1041 = vmatpush1.msra.mxu0 0.0
  %1042 = vmatprep.subr.mxu0 0.0
  %1043 = vmatpush1.msra.mxu0 0.0
  %1044 = vmatprep.subr.mxu0 0.0
  %1045 = vmatpush1.msra.mxu0 0.0
  %1046 = vmatprep.subr.mxu0 0.0
  %1047 = vmatpush1.msra.mxu0 0.0
  %1048 = vmatprep.subr.mxu0 0.0
  %1049 = vmatpush1.msra.mxu0 0.0
  %1050 = vmatprep.subr.mxu0 0.0
  %1051 = vmatpush1.msra.mxu0 0.0
  %1052 = vmatprep.subr.mxu0 0.0
  %1053 = vmatpush1.msra.mxu0 0.0
  %1054 = vmatprep.subr.mxu0 0.0
  %1055 = vmatpush1.msra.mxu0 0.0
  %1056 = vmatprep.subr.mxu0 0.0
  %1057 = vmatpush1.msra.mxu0 0.0
  %1058 = vmatprep.subr.mxu0 0.0
  %1059 = vmatpush1.msra.mxu0 0.0
  %1060 = vmatprep.subr.mxu0 0.0
  %1061 = vmatpush1.msra.mxu0 0.0
  %1062 = vmatprep.subr.mxu0 0.0
  %1063 = vmatpush1.msra.mxu0 %v1030
  %1064 = vmatprep.subr.mxu0 0.0
  %1065 = vmatpush2.msra.mxu0 0.0
  %1066 = vmatprep.subr.mxu0 0.0
  %1067 = vmatpush2.msra.mxu0 0.0
  %1068 = vmatprep.subr.mxu0 0.0
  %1069 = vmatpush2.msra.mxu0 0.0
  %1070 = vmatprep.subr.mxu0 0.0
  %1071 = vmatpush2.msra.mxu0 0.0
  %1072 = vmatprep.subr.mxu0 0.0
  %1073 = vmatpush2.msra.mxu0 0.0
  %1074 = vmatprep.subr.mxu0 0.0
  %1075 = vmatpush2.msra.mxu0 0.0
  %1076 = vmatprep.subr.mxu0 0.0
  %1077 = vmatpush2.msra.mxu0 0.0
  %1078 = vmatprep.subr.mxu0 0.0
  %1079 = vmatpush2.msra.mxu0 0.0
  %1080 = vmatprep.subr.mxu0 0.0
  %1081 = vmatpush2.msra.mxu0 0.0
  %1082 = vmatprep.subr.mxu0 0.0
  %1083 = vmatpush2.msra.mxu0 0.0
  %1084 = vmatprep.subr.mxu0 0.0
  %1085 = vmatpush2.msra.mxu0 0.0
  %1086 = vmatprep.subr.mxu0 0.0
  %1087 = vmatpush2.msra.mxu0 0.0
  %1088 = vmatprep.subr.mxu0 0.0
  %1089 = vmatpush2.msra.mxu0 0.0
  %1090 = vmatprep.subr.mxu0 0.0
  %1091 = vmatpush2.msra.mxu0 0.0
  %1092 = vmatprep.subr.mxu0 0.0
  %1093 = vmatpush2.msra.mxu0 0.0
  %1094 = vmatprep.subr.mxu0 0.0
  %1095 = vmatpush2.msra.mxu0 0.0
  %1096 = vmatprep.mubr.f32.mxu0 0.0
  %1097 = vmatmul.mubr.f32.gmra.mxu0 %v1028
  %v1098 = vpop.f32.mrf.mxu0
  %v1099 = vadd.f32 0.0, %v1098
  %v1100 = vpop.f32.mrf.mxu0
  %1101 = vdwg.mxu0
  %1102 = vrot.lane.b32.xlu0 %v936, 112
  %v1103 = vpop.permute.xlu0 %1102
  %1104 = vrot.lane.b32.xlu0 %v936, 64
  %v1105 = vpop.permute.xlu0 %1104
  %v1106 = vsel %vm421, %v1103, 0
  %v1108 = vsel %vm421, %v1105, 0
  %1110 = vmatprep.subr.mxu0 0.0
  %1111 = vmatpush1.xpose.msra.mxu0 0.0
  %1112 = vmatprep.subr.mxu0 0.0
  %1113 = vmatpush1.xpose.msra.mxu0 0.0
  %1114 = vmatprep.subr.mxu0 0.0
  %1115 = vmatpush1.xpose.msra.mxu0 0.0
  %1116 = vmatprep.subr.mxu0 0.0
  %1117 = vmatpush1.xpose.msra.mxu0 0.0
  %1118 = vmatprep.subr.mxu0 0.0
  %1119 = vmatpush1.xpose.msra.mxu0 0.0
  %1120 = vmatprep.subr.mxu0 0.0
  %1121 = vmatpush1.xpose.msra.mxu0 0.0
  %1122 = vmatprep.subr.mxu0 0.0
  %1123 = vmatpush1.xpose.msra.mxu0 0.0
  %1124 = vmatprep.subr.mxu0 0.0
  %1125 = vmatpush1.xpose.msra.mxu0 0.0
  %1126 = vmatprep.subr.mxu0 0.0
  %1127 = vmatpush1.xpose.msra.mxu0 0.0
  %1128 = vmatprep.subr.mxu0 0.0
  %1129 = vmatpush1.xpose.msra.mxu0 0.0
  %1130 = vmatprep.subr.mxu0 0.0
  %1131 = vmatpush1.xpose.msra.mxu0 0.0
  %1132 = vmatprep.subr.mxu0 0.0
  %1133 = vmatpush1.xpose.msra.mxu0 0.0
  %1134 = vmatprep.subr.mxu0 0.0
  %1135 = vmatpush1.xpose.msra.mxu0 0.0
  %1136 = vmatprep.subr.mxu0 0.0
  %1137 = vmatpush1.xpose.msra.mxu0 0.0
  %1138 = vmatprep.subr.mxu0 0.0
  %1139 = vmatpush1.xpose.msra.mxu0 0.0
  %1140 = vmatprep.subr.mxu0 0.0
  %1141 = vmatpush1.xpose.msra.mxu0 %v1108
  %1142 = vmatprep.subr.mxu0 0.0
  %1143 = vmatpush2.xpose.msra.mxu0 0.0
  %1144 = vmatprep.subr.mxu0 0.0
  %1145 = vmatpush2.xpose.msra.mxu0 0.0
  %1146 = vmatprep.subr.mxu0 0.0
  %1147 = vmatpush2.xpose.msra.mxu0 0.0
  %1148 = vmatprep.subr.mxu0 0.0
  %1149 = vmatpush2.xpose.msra.mxu0 0.0
  %1150 = vmatprep.subr.mxu0 0.0
  %1151 = vmatpush2.xpose.msra.mxu0 0.0
  %1152 = vmatprep.subr.mxu0 0.0
  %1153 = vmatpush2.xpose.msra.mxu0 0.0
  %1154 = vmatprep.subr.mxu0 0.0
  %1155 = vmatpush2.xpose.msra.mxu0 0.0
  %1156 = vmatprep.subr.mxu0 0.0
  %1157 = vmatpush2.xpose.msra.mxu0 0.0
  %1158 = vmatprep.subr.mxu0 0.0
  %1159 = vmatpush2.xpose.msra.mxu0 0.0
  %1160 = vmatprep.subr.mxu0 0.0
  %1161 = vmatpush2.xpose.msra.mxu0 0.0
  %1162 = vmatprep.subr.mxu0 0.0
  %1163 = vmatpush2.xpose.msra.mxu0 0.0
  %1164 = vmatprep.subr.mxu0 0.0
  %1165 = vmatpush2.xpose.msra.mxu0 0.0
  %1166 = vmatprep.subr.mxu0 0.0
  %1167 = vmatpush2.xpose.msra.mxu0 0.0
  %1168 = vmatprep.subr.mxu0 0.0
  %1169 = vmatpush2.xpose.msra.mxu0 0.0
  %1170 = vmatprep.subr.mxu0 0.0
  %1171 = vmatpush2.xpose.msra.mxu0 0.0
  %1172 = vmatprep.subr.mxu0 0.0
  %1173 = vmatpush2.xpose.msra.mxu0 0.0
  %1174 = vmatprep.mubr.f32.mxu0 0.0
  %1175 = vmatmul.mubr.f32.gmra.mxu0 %v1106
  %v1176 = vpop.f32.mrf.mxu0
  %v1177 = vadd.f32 0.0, %v1176
  %v1178 = vpop.f32.mrf.mxu0
  %1179 = vdwg.mxu0
  %v1180 = vmul.f32 %v1177, 0.25
  %v1181 = vsel %vm497, %v1180, -inf
  %1182 = vmax.xlane.f32.xlu0 %v1181
  %v1183 = vpop.xlane.xlu0 %1182
  %v1184 = vsub.f32 %v1180, %v1183
  %v1185 = vmul.f32 %v1184, 1.442695
  %v1186 = vpow.pop %v1185
  %v1187 = vsel %vm497, %v1186, 0.0
  %1188 = vadd.xlane.f32.xlu0 %v1187
  %v1189 = vpop.xlane.xlu0 %1188
  %v1190 = vrcp.pop %v1189
  %v1191 = vmul.f32 %v1186, %v1190
  %1192 = vrot.lane.b32.xlu0 %v936, 16
  %v1193 = vpop.permute.xlu0 %1192
  %v1195 = vsel %vm511, %v1191, 0
  %v1197 = vsel %vm515, %v1193, 0
  %1199 = vmatprep.subr.mxu0 0.0
  %1200 = vmatpush1.msra.mxu0 0.0
  %1201 = vmatprep.subr.mxu0 0.0
  %1202 = vmatpush1.msra.mxu0 0.0
  %1203 = vmatprep.subr.mxu0 0.0
  %1204 = vmatpush1.msra.mxu0 0.0
  %1205 = vmatprep.subr.mxu0 0.0
  %1206 = vmatpush1.msra.mxu0 0.0
  %1207 = vmatprep.subr.mxu0 0.0
  %1208 = vmatpush1.msra.mxu0 0.0
  %1209 = vmatprep.subr.mxu0 0.0
  %1210 = vmatpush1.msra.mxu0 0.0
  %1211 = vmatprep.subr.mxu0 0.0
  %1212 = vmatpush1.msra.mxu0 0.0
  %1213 = vmatprep.subr.mxu0 0.0
  %1214 = vmatpush1.msra.mxu0 0.0
  %1215 = vmatprep.subr.mxu0 0.0
  %1216 = vmatpush1.msra.mxu0 0.0
  %1217 = vmatprep.subr.mxu0 0.0
  %1218 = vmatpush1.msra.mxu0 0.0
  %1219 = vmatprep.subr.mxu0 0.0
  %1220 = vmatpush1.msra.mxu0 0.0
  %1221 = vmatprep.subr.mxu0 0.0
  %1222 = vmatpush1.msra.mxu0 0.0
  %1223 = vmatprep.subr.mxu0 0.0
  %1224 = vmatpush1.msra.mxu0 0.0
  %1225 = vmatprep.subr.mxu0 0.0
  %1226 = vmatpush1.msra.mxu0 0.0
  %1227 = vmatprep.subr.mxu0 0.0
  %1228 = vmatpush1.msra.mxu0 0.0
  %1229 = vmatprep.subr.mxu0 0.0
  %1230 = vmatpush1.msra.mxu0 %v1197
  %1231 = vmatprep.subr.mxu0 0.0
  %1232 = vmatpush2.msra.mxu0 0.0
  %1233 = vmatprep.subr.mxu0 0.0
  %1234 = vmatpush2.msra.mxu0 0.0
  %1235 = vmatprep.subr.mxu0 0.0
  %1236 = vmatpush2.msra.mxu0 0.0
  %1237 = vmatprep.subr.mxu0 0.0
  %1238 = vmatpush2.msra.mxu0 0.0
  %1239 = vmatprep.subr.mxu0 0.0
  %1240 = vmatpush2.msra.mxu0 0.0
  %1241 = vmatprep.subr.mxu0 0.0
  %1242 = vmatpush2.msra.mxu0 0.0
  %1243 = vmatprep.subr.mxu0 0.0
  %1244 = vmatpush2.msra.mxu0 0.0
  %1245 = vmatprep.subr.mxu0 0.0
  %1246 = vmatpush2.msra.mxu0 0.0
  %1247 = vmatprep.subr.mxu0 0.0
  %1248 = vmatpush2.msra.mxu0 0.0
  %1249 = vmatprep.subr.mxu0 0.0
  %1250 = vmatpush2.msra.mxu0 0.0
  %1251 = vmatprep.subr.mxu0 0.0
  %1252 = vmatpush2.msra.mxu0 0.0
  %1253 = vmatprep.subr.mxu0 0.0
  %1254 = vmatpush2.msra.mxu0 0.0
  %1255 = vmatprep.subr.mxu0 0.0
  %1256 = vmatpush2.msra.mxu0 0.0
  %1257 = vmatprep.subr.mxu0 0.0
  %1258 = vmatpush2.msra.mxu0 0.0
  %1259 = vmatprep.subr.mxu0 0.0
  %1260 = vmatpush2.msra.mxu0 0.0
  %1261 = vmatprep.subr.mxu0 0.0
  %1262 = vmatpush2.msra.mxu0 0.0
  %1263 = vmatprep.mubr.f32.mxu0 0.0
  %1264 = vmatmul.mubr.f32.gmra.mxu0 %v1195
  %v1265 = vpop.f32.mrf.mxu0
  %v1266 = vadd.f32 0.0, %v1265
  %v1267 = vpop.f32.mrf.mxu0
  %1268 = vdwg.mxu0
  %1269 = vrot.lane.b32.xlu0 %v936, 96
  %v1270 = vpop.permute.xlu0 %1269
  %1271 = vrot.lane.b32.xlu0 %v936, 48
  %v1272 = vpop.permute.xlu0 %1271
  %v1273 = vsel %vm421, %v1270, 0
  %v1275 = vsel %vm421, %v1272, 0
  %1277 = vmatprep.subr.mxu0 0.0
  %1278 = vmatpush1.xpose.msra.mxu0 0.0
  %1279 = vmatprep.subr.mxu0 0.0
  %1280 = vmatpush1.xpose.msra.mxu0 0.0
  %1281 = vmatprep.subr.mxu0 0.0
  %1282 = vmatpush1.xpose.msra.mxu0 0.0
  %1283 = vmatprep.subr.mxu0 0.0
  %1284 = vmatpush1.xpose.msra.mxu0 0.0
  %1285 = vmatprep.subr.mxu0 0.0
  %1286 = vmatpush1.xpose.msra.mxu0 0.0
  %1287 = vmatprep.subr.mxu0 0.0
  %1288 = vmatpush1.xpose.msra.mxu0 0.0
  %1289 = vmatprep.subr.mxu0 0.0
  %1290 = vmatpush1.xpose.msra.mxu0 0.0
  %1291 = vmatprep.subr.mxu0 0.0
  %1292 = vmatpush1.xpose.msra.mxu0 0.0
  %1293 = vmatprep.subr.mxu0 0.0
  %1294 = vmatpush1.xpose.msra.mxu0 0.0
  %1295 = vmatprep.subr.mxu0 0.0
  %1296 = vmatpush1.xpose.msra.mxu0 0.0
  %1297 = vmatprep.subr.mxu0 0.0
  %1298 = vmatpush1.xpose.msra.mxu0 0.0
  %1299 = vmatprep.subr.mxu0 0.0
  %1300 = vmatpush1.xpose.msra.mxu0 0.0
  %1301 = vmatprep.subr.mxu0 0.0
  %1302 = vmatpush1.xpose.msra.mxu0 0.0
  %1303 = vmatprep.subr.mxu0 0.0
  %1304 = vmatpush1.xpose.msra.mxu0 0.0
  %1305 = vmatprep.subr.mxu0 0.0
  %1306 = vmatpush1.xpose.msra.mxu0 0.0
  %1307 = vmatprep.subr.mxu0 0.0
  %1308 = vmatpush1.xpose.msra.mxu0 %v1275
  %1309 = vmatprep.subr.mxu0 0.0
  %1310 = vmatpush2.xpose.msra.mxu0 0.0
  %1311 = vmatprep.subr.mxu0 0.0
  %1312 = vmatpush2.xpose.msra.mxu0 0.0
  %1313 = vmatprep.subr.mxu0 0.0
  %1314 = vmatpush2.xpose.msra.mxu0 0.0
  %1315 = vmatprep.subr.mxu0 0.0
  %1316 = vmatpush2.xpose.msra.mxu0 0.0
  %1317 = vmatprep.subr.mxu0 0.0
  %1318 = vmatpush2.xpose.msra.mxu0 0.0
  %1319 = vmatprep.subr.mxu0 0.0
  %1320 = vmatpush2.xpose.msra.mxu0 0.0
  %1321 = vmatprep.subr.mxu0 0.0
  %1322 = vmatpush2.xpose.msra.mxu0 0.0
  %1323 = vmatprep.subr.mxu0 0.0
  %1324 = vmatpush2.xpose.msra.mxu0 0.0
  %1325 = vmatprep.subr.mxu0 0.0
  %1326 = vmatpush2.xpose.msra.mxu0 0.0
  %1327 = vmatprep.subr.mxu0 0.0
  %1328 = vmatpush2.xpose.msra.mxu0 0.0
  %1329 = vmatprep.subr.mxu0 0.0
  %1330 = vmatpush2.xpose.msra.mxu0 0.0
  %1331 = vmatprep.subr.mxu0 0.0
  %1332 = vmatpush2.xpose.msra.mxu0 0.0
  %1333 = vmatprep.subr.mxu0 0.0
  %1334 = vmatpush2.xpose.msra.mxu0 0.0
  %1335 = vmatprep.subr.mxu0 0.0
  %1336 = vmatpush2.xpose.msra.mxu0 0.0
  %1337 = vmatprep.subr.mxu0 0.0
  %1338 = vmatpush2.xpose.msra.mxu0 0.0
  %1339 = vmatprep.subr.mxu0 0.0
  %1340 = vmatpush2.xpose.msra.mxu0 0.0
  %1341 = vmatprep.mubr.f32.mxu0 0.0
  %1342 = vmatmul.mubr.f32.gmra.mxu0 %v1273
  %v1343 = vpop.f32.mrf.mxu0
  %v1344 = vadd.f32 0.0, %v1343
  %v1345 = vpop.f32.mrf.mxu0
  %1346 = vdwg.mxu0
  %v1347 = vmul.f32 %v1344, 0.25
  %v1348 = vsel %vm497, %v1347, -inf
  %1349 = vmax.xlane.f32.xlu0 %v1348
  %v1350 = vpop.xlane.xlu0 %1349
  %v1351 = vsub.f32 %v1347, %v1350
  %v1352 = vmul.f32 %v1351, 1.442695
  %v1353 = vpow.pop %v1352
  %v1354 = vsel %vm497, %v1353, 0.0
  %1355 = vadd.xlane.f32.xlu0 %v1354
  %v1356 = vpop.xlane.xlu0 %1355
  %v1357 = vrcp.pop %v1356
  %v1358 = vmul.f32 %v1353, %v1357
  %v1360 = vrot.slane %v410, 5
  %v1361 = vrot.slane %v416, 5
  %v1362 = vsel %vm933, %v1360, %v1361
  %v1364 = vsel %vm511, %v1358, 0
  %v1366 = vsel %vm515, %v1362, 0
  %1368 = vmatprep.subr.mxu0 0.0
  %1369 = vmatpush1.msra.mxu0 0.0
  %1370 = vmatprep.subr.mxu0 0.0
  %1371 = vmatpush1.msra.mxu0 0.0
  %1372 = vmatprep.subr.mxu0 0.0
  %1373 = vmatpush1.msra.mxu0 0.0
  %1374 = vmatprep.subr.mxu0 0.0
  %1375 = vmatpush1.msra.mxu0 0.0
  %1376 = vmatprep.subr.mxu0 0.0
  %1377 = vmatpush1.msra.mxu0 0.0
  %1378 = vmatprep.subr.mxu0 0.0
  %1379 = vmatpush1.msra.mxu0 0.0
  %1380 = vmatprep.subr.mxu0 0.0
  %1381 = vmatpush1.msra.mxu0 0.0
  %1382 = vmatprep.subr.mxu0 0.0
  %1383 = vmatpush1.msra.mxu0 0.0
  %1384 = vmatprep.subr.mxu0 0.0
  %1385 = vmatpush1.msra.mxu0 0.0
  %1386 = vmatprep.subr.mxu0 0.0
  %1387 = vmatpush1.msra.mxu0 0.0
  %1388 = vmatprep.subr.mxu0 0.0
  %1389 = vmatpush1.msra.mxu0 0.0
  %1390 = vmatprep.subr.mxu0 0.0
  %1391 = vmatpush1.msra.mxu0 0.0
  %1392 = vmatprep.subr.mxu0 0.0
  %1393 = vmatpush1.msra.mxu0 0.0
  %1394 = vmatprep.subr.mxu0 0.0
  %1395 = vmatpush1.msra.mxu0 0.0
  %1396 = vmatprep.subr.mxu0 0.0
  %1397 = vmatpush1.msra.mxu0 0.0
  %1398 = vmatprep.subr.mxu0 0.0
  %1399 = vmatpush1.msra.mxu0 %v1366
  %1400 = vmatprep.subr.mxu0 0.0
  %1401 = vmatpush2.msra.mxu0 0.0
  %1402 = vmatprep.subr.mxu0 0.0
  %1403 = vmatpush2.msra.mxu0 0.0
  %1404 = vmatprep.subr.mxu0 0.0
  %1405 = vmatpush2.msra.mxu0 0.0
  %1406 = vmatprep.subr.mxu0 0.0
  %1407 = vmatpush2.msra.mxu0 0.0
  %1408 = vmatprep.subr.mxu0 0.0
  %1409 = vmatpush2.msra.mxu0 0.0
  %1410 = vmatprep.subr.mxu0 0.0
  %1411 = vmatpush2.msra.mxu0 0.0
  %1412 = vmatprep.subr.mxu0 0.0
  %1413 = vmatpush2.msra.mxu0 0.0
  %1414 = vmatprep.subr.mxu0 0.0
  %1415 = vmatpush2.msra.mxu0 0.0
  %1416 = vmatprep.subr.mxu0 0.0
  %1417 = vmatpush2.msra.mxu0 0.0
  %1418 = vmatprep.subr.mxu0 0.0
  %1419 = vmatpush2.msra.mxu0 0.0
  %1420 = vmatprep.subr.mxu0 0.0
  %1421 = vmatpush2.msra.mxu0 0.0
  %1422 = vmatprep.subr.mxu0 0.0
  %1423 = vmatpush2.msra.mxu0 0.0
  %1424 = vmatprep.subr.mxu0 0.0
  %1425 = vmatpush2.msra.mxu0 0.0
  %1426 = vmatprep.subr.mxu0 0.0
  %1427 = vmatpush2.msra.mxu0 0.0
  %1428 = vmatprep.subr.mxu0 0.0
  %1429 = vmatpush2.msra.mxu0 0.0
  %1430 = vmatprep.subr.mxu0 0.0
  %1431 = vmatpush2.msra.mxu0 0.0
  %1432 = vmatprep.mubr.f32.mxu0 0.0
  %1433 = vmatmul.mubr.f32.gmra.mxu0 %v1364
  %v1434 = vpop.f32.mrf.mxu0
  %v1435 = vadd.f32 0.0, %v1434
  %v1436 = vpop.f32.mrf.mxu0
  %1437 = vdwg.mxu0
  %1439 = vrot.lane.b32.xlu0 %v1266, 16
  %v1440 = vpop.permute.xlu0 %1439
  %1443 = vrot.lane.b32.xlu0 %v1435, 32
  %v1444 = vpop.permute.xlu0 %1443
  %v1446 = vsel %vm421, %v1099, %v1440
  %v1447 = vsel %vm930, %v1446, %v1444
  %v1449 = vrot.slane %v1447, 3
  %v1451 = vsel %vm515, %v931, %v1449
  %v1452 = vld [vmem:[%s9] sm:$0xff]
  %v1453 = vld [vmem:[%s9 + $0x8] sm:$0xff]
  %v1454 = vld [vmem:[%s9 + $0x10] sm:$0xff]
  %v1455 = vld [vmem:[%s9 + $0x18] sm:$0xff]
  %v1456 = vld [vmem:[%s9 + $0x20] sm:$0xff]
  %v1457 = vld [vmem:[%s9 + $0x28] sm:$0xff]
  %v1459 = vsel %vm267, %v1451, 0
  %v1461 = vsel %vm267, %v1449, 0
  %1463 = vmatprep.subr.mxu0 0.0
  %1464 = vmatpush1.msra.mxu0 0.0
  %1465 = vmatprep.subr.mxu0 0.0
  %1466 = vmatpush1.msra.mxu0 0.0
  %1467 = vmatprep.subr.mxu0 0.0
  %1468 = vmatpush1.msra.mxu0 0.0
  %1469 = vmatprep.subr.mxu0 0.0
  %1470 = vmatpush1.msra.mxu0 0.0
  %1471 = vmatprep.subr.mxu0 0.0
  %1472 = vmatpush1.msra.mxu0 0.0
  %1473 = vmatprep.subr.mxu0 0.0
  %1474 = vmatpush1.msra.mxu0 0.0
  %1475 = vmatprep.subr.mxu0 0.0
  %1476 = vmatpush1.msra.mxu0 0.0
  %1477 = vmatprep.subr.mxu0 0.0
  %1478 = vmatpush1.msra.mxu0 0.0
  %1479 = vmatprep.subr.mxu0 0.0
  %1480 = vmatpush1.msra.mxu0 0.0
  %1481 = vmatprep.subr.mxu0 0.0
  %1482 = vmatpush1.msra.mxu0 0.0
  %1483 = vmatprep.subr.mxu0 0.0
  %1484 = vmatpush1.msra.mxu0 %v1457
  %1485 = vmatprep.subr.mxu0 0.0
  %1486 = vmatpush1.msra.mxu0 %v1456
  %1487 = vmatprep.subr.mxu0 0.0
  %1488 = vmatpush1.msra.mxu0 %v1455
  %1489 = vmatprep.subr.mxu0 0.0
  %1490 = vmatpush1.msra.mxu0 %v1454
  %1491 = vmatprep.subr.mxu0 0.0
  %1492 = vmatpush1.msra.mxu0 %v1453
  %1493 = vmatprep.subr.mxu0 0.0
  %1494 = vmatpush1.msra.mxu0 %v1452
  %1495 = vmatprep.subr.mxu0 0.0
  %1496 = vmatpush2.msra.mxu0 0.0
  %1497 = vmatprep.subr.mxu0 0.0
  %1498 = vmatpush2.msra.mxu0 0.0
  %1499 = vmatprep.subr.mxu0 0.0
  %1500 = vmatpush2.msra.mxu0 0.0
  %1501 = vmatprep.subr.mxu0 0.0
  %1502 = vmatpush2.msra.mxu0 0.0
  %1503 = vmatprep.subr.mxu0 0.0
  %1504 = vmatpush2.msra.mxu0 0.0
  %1505 = vmatprep.subr.mxu0 0.0
  %1506 = vmatpush2.msra.mxu0 0.0
  %1507 = vmatprep.subr.mxu0 0.0
  %1508 = vmatpush2.msra.mxu0 0.0
  %1509 = vmatprep.subr.mxu0 0.0
  %1510 = vmatpush2.msra.mxu0 0.0
  %1511 = vmatprep.subr.mxu0 0.0
  %1512 = vmatpush2.msra.mxu0 0.0
  %1513 = vmatprep.subr.mxu0 0.0
  %1514 = vmatpush2.msra.mxu0 0.0
  %1515 = vmatprep.subr.mxu0 0.0
  %1516 = vmatpush2.msra.mxu0 0.0
  %1517 = vmatprep.subr.mxu0 0.0
  %1518 = vmatpush2.msra.mxu0 0.0
  %1519 = vmatprep.subr.mxu0 0.0
  %1520 = vmatpush2.msra.mxu0 0.0
  %1521 = vmatprep.subr.mxu0 0.0
  %1522 = vmatpush2.msra.mxu0 0.0
  %1523 = vmatprep.subr.mxu0 0.0
  %1524 = vmatpush2.msra.mxu0 0.0
  %1525 = vmatprep.subr.mxu0 0.0
  %1526 = vmatpush2.msra.mxu0 0.0
  %1527 = vmatprep.mubr.f32.mxu0 0.0
  %1528 = vmatmul.mubr.f32.gmra.mxu0 %v1459
  %v1529 = vpop.f32.mrf.mxu0
  %v1530 = vadd.f32 0.0, %v1529
  %v1531 = vpop.f32.mrf.mxu0
  %1532 = vmatprep.mubr.f32.mxu0 0.0
  %1533 = vmatmul.mubr.f32.gmra.mxu0 %v1461
  %v1534 = vpop.f32.mrf.mxu0
  %v1535 = vadd.f32 0.0, %v1534
  %v1536 = vpop.f32.mrf.mxu0
  %1537 = vdwg.mxu0
  %v1538 = vadd.f32 %v257, %v1530
  %v1539 = vadd.f32 %v262, %v1535
  %v1540 = vld [vmem:[%s10] sm:$0x1]
  %v1542 = vlaneseq
  %v1543 = vshrl.u32 %v1542, 7
  %v1544 = vsub.s32 0, %v1543
  %v1545 = vrot.slane %v1540, %v1544
  %v1547 = vadd.f32 %v1538, %v1545
  %v1548 = vadd.f32 %v1539, %v1545
  %v1549 = vld [vmem:[%s11] sm:$0x1]
  %v1550 = vld [vmem:[%s12] sm:$0x1]
  %v1551 = vsel %vm267, %v1547, 0.0
  %1552 = vadd.xlane.f32.xlu0 %v1551
  %v1553 = vpop.xlane.xlu0 %1552
  %v1554 = vsel %vm271, %v1548, 0.0
  %1555 = vadd.xlane.f32.xlu0 %v1554
  %v1556 = vpop.xlane.xlu0 %1555
  %v1557 = vmul.f32 %v1553, 0.020833334
  %v1558 = vmul.f32 %v1556, 0.020833334
  %v1559 = vsub.f32 %v1547, %v1557
  %v1560 = vsub.f32 %v1548, %v1558
  %v1561 = vmul.f32 %v1559, %v1559
  %v1562 = vmul.f32 %v1560, %v1560
  %v1563 = vsel %vm267, %v1561, 0.0
  %1564 = vadd.xlane.f32.xlu0 %v1563
  %v1565 = vpop.xlane.xlu0 %1564
  %v1566 = vsel %vm271, %v1562, 0.0
  %1567 = vadd.xlane.f32.xlu0 %v1566
  %v1568 = vpop.xlane.xlu0 %1567
  %v1569 = vmul.f32 %v1565, 0.020833334
  %v1570 = vmul.f32 %v1568, 0.020833334
  %v1571 = vadd.f32 %v1569, 1e-05
  %v1572 = vadd.f32 %v1570, 1e-05
  %v1573 = vrsqrt.pop %v1571
  %v1574 = vrsqrt.pop %v1572
  %v1575 = vmul.f32 %v1559, %v1573
  %v1576 = vmul.f32 %v1560, %v1574
  %v1578 = vlaneseq
  %v1579 = vshrl.u32 %v1578, 7
  %v1580 = vsub.s32 0, %v1579
  %v1581 = vrot.slane %v1549, %v1580
  %v1583 = vmul.f32 %v1575, %v1581
  %v1584 = vmul.f32 %v1576, %v1581
  %v1586 = vlaneseq
  %v1587 = vshrl.u32 %v1586, 7
  %v1588 = vsub.s32 0, %v1587
  %v1589 = vrot.slane %v1550, %v1588
  %v1591 = vadd.f32 %v1583, %v1589
  %v1592 = vadd.f32 %v1584, %v1589
  %v1593 = vld [vmem:[%s13] sm:$0xff]
  %v1594 = vld [vmem:[%s13 + $0x8] sm:$0xff]
  %v1595 = vld [vmem:[%s13 + $0x10] sm:$0xff]
  %v1596 = vld [vmem:[%s13 + $0x18] sm:$0xff]
  %v1597 = vld [vmem:[%s13 + $0x20] sm:$0xff]
  %v1598 = vld [vmem:[%s13 + $0x28] sm:$0xff]
  %v1599 = vld [vmem:[%s13 + $0x30] sm:$0xff]
  %v1600 = vld [vmem:[%s13 + $0x38] sm:$0xff]
  %v1601 = vld [vmem:[%s13 + $0x40] sm:$0xff]
  %v1602 = vld [vmem:[%s13 + $0x48] sm:$0xff]
  %v1603 = vld [vmem:[%s13 + $0x50] sm:$0xff]
  %v1604 = vld [vmem:[%s13 + $0x58] sm:$0xff]
  %v1605 = vld [vmem:[%s14] sm:$0x3]
  %v1607 = vlaneseq
  %v1608 = vshrl.u32 %v1607, 7
  %v1609 = vsub.s32 0, %v1608
  %v1610 = vrot.slane %v1605, %v1609
  %v1611 = vlaneseq
  %v1612 = vshrl.u32 %v1611, 7
  %v1613 = vsub.s32 1, %v1612
  %v1614 = vrot.slane %v1605, %v1613
  %v1618 = vsel %vm267, %v1591, 0
  %v1621 = vsel %vm267, %v1592, 0
  %1623 = vmatprep.subr.mxu0 0.0
  %1624 = vmatpush1.msra.mxu0 0.0
  %1625 = vmatprep.subr.mxu0 0.0
  %1626 = vmatpush1.msra.mxu0 0.0
  %1627 = vmatprep.subr.mxu0 0.0
  %1628 = vmatpush1.msra.mxu0 0.0
  %1629 = vmatprep.subr.mxu0 0.0
  %1630 = vmatpush1.msra.mxu0 0.0
  %1631 = vmatprep.subr.mxu0 0.0
  %1632 = vmatpush1.msra.mxu0 0.0
  %1633 = vmatprep.subr.mxu0 0.0
  %1634 = vmatpush1.msra.mxu0 0.0
  %1635 = vmatprep.subr.mxu0 0.0
  %1636 = vmatpush1.msra.mxu0 0.0
  %1637 = vmatprep.subr.mxu0 0.0
  %1638 = vmatpush1.msra.mxu0 0.0
  %1639 = vmatprep.subr.mxu0 0.0
  %1640 = vmatpush1.msra.mxu0 0.0
  %1641 = vmatprep.subr.mxu0 0.0
  %1642 = vmatpush1.msra.mxu0 0.0
  %1643 = vmatprep.subr.mxu0 %v1604
  %1644 = vmatpush1.msra.mxu0 %v1603
  %1645 = vmatprep.subr.mxu0 %v1602
  %1646 = vmatpush1.msra.mxu0 %v1601
  %1647 = vmatprep.subr.mxu0 %v1600
  %1648 = vmatpush1.msra.mxu0 %v1599
  %1649 = vmatprep.subr.mxu0 %v1598
  %1650 = vmatpush1.msra.mxu0 %v1597
  %1651 = vmatprep.subr.mxu0 %v1596
  %1652 = vmatpush1.msra.mxu0 %v1595
  %1653 = vmatprep.subr.mxu0 %v1594
  %1654 = vmatpush1.msra.mxu0 %v1593
  %1655 = vmatprep.subr.mxu0 0.0
  %1656 = vmatpush2.msra.mxu0 0.0
  %1657 = vmatprep.subr.mxu0 0.0
  %1658 = vmatpush2.msra.mxu0 0.0
  %1659 = vmatprep.subr.mxu0 0.0
  %1660 = vmatpush2.msra.mxu0 0.0
  %1661 = vmatprep.subr.mxu0 0.0
  %1662 = vmatpush2.msra.mxu0 0.0
  %1663 = vmatprep.subr.mxu0 0.0
  %1664 = vmatpush2.msra.mxu0 0.0
  %1665 = vmatprep.subr.mxu0 0.0
  %1666 = vmatpush2.msra.mxu0 0.0
  %1667 = vmatprep.subr.mxu0 0.0
  %1668 = vmatpush2.msra.mxu0 0.0
  %1669 = vmatprep.subr.mxu0 0.0
  %1670 = vmatpush2.msra.mxu0 0.0
  %1671 = vmatprep.subr.mxu0 0.0
  %1672 = vmatpush2.msra.mxu0 0.0
  %1673 = vmatprep.subr.mxu0 0.0
  %1674 = vmatpush2.msra.mxu0 0.0
  %1675 = vmatprep.subr.mxu0 0.0
  %1676 = vmatpush2.msra.mxu0 0.0
  %1677 = vmatprep.subr.mxu0 0.0
  %1678 = vmatpush2.msra.mxu0 0.0
  %1679 = vmatprep.subr.mxu0 0.0
  %1680 = vmatpush2.msra.mxu0 0.0
  %1681 = vmatprep.subr.mxu0 0.0
  %1682 = vmatpush2.msra.mxu0 0.0
  %1683 = vmatprep.subr.mxu0 0.0
  %1684 = vmatpush2.msra.mxu0 0.0
  %1685 = vmatprep.subr.mxu0 0.0
  %1686 = vmatpush2.msra.mxu0 0.0
  %1687 = vmatprep.mubr.f32.mxu0 0.0
  %1688 = vmatmul.mubr.f32.gmra.mxu0 %v1618
  %v1689 = vpop.f32.mrf.mxu0
  %v1690 = vadd.f32 %v1610, %v1689
  %v1691 = vpop.f32.mrf.mxu0
  %v1692 = vadd.f32 %v1614, %v1691
  %1693 = vmatprep.mubr.f32.mxu0 0.0
  %1694 = vmatmul.mubr.f32.gmra.mxu0 %v1621
  %v1695 = vpop.f32.mrf.mxu0
  %v1696 = vadd.f32 %v1610, %v1695
  %v1697 = vpop.f32.mrf.mxu0
  %v1698 = vadd.f32 %v1614, %v1697
  %1699 = vdwg.mxu0
  %v1700 = vmul.f32 %v1690, 0.5
  %v1701 = vmul.f32 %v1692, 0.5
  %v1702 = vmul.f32 %v1696, 0.5
  %v1703 = vmul.f32 %v1698, 0.5
  %v1704 = vmul.f32 %v1690, 0.044715
  %v1705 = vmul.f32 %v1692, 0.044715
  %v1706 = vmul.f32 %v1696, 0.044715
  %v1707 = vmul.f32 %v1698, 0.044715
  %v1708 = vmul.f32 %v1704, %v1690
  %v1709 = vmul.f32 %v1705, %v1692
  %v1710 = vmul.f32 %v1706, %v1696
  %v1711 = vmul.f32 %v1707, %v1698
  %v1712 = vmul.f32 %v1708, %v1690
  %v1713 = vmul.f32 %v1709, %v1692
  %v1714 = vmul.f32 %v1710, %v1696
  %v1715 = vmul.f32 %v1711, %v1698
  %v1716 = vadd.f32 %v1690, %v1712
  %v1717 = vadd.f32 %v1692, %v1713
  %v1718 = vadd.f32 %v1696, %v1714
  %v1719 = vadd.f32 %v1698, %v1715
  %v1720 = vmul.f32 %v1716, 0.7978846
  %v1721 = vmul.f32 %v1717, 0.7978846
  %v1722 = vmul.f32 %v1718, 0.7978846
  %v1723 = vmul.f32 %v1719, 0.7978846
  %v1724 = vtanh.pop %v1720
  %v1725 = vtanh.pop %v1721
  %v1726 = vtanh.pop %v1722
  %v1727 = vtanh.pop %v1723
  %v1728 = vadd.f32 %v1724, 1.0
  %v1729 = vadd.f32 %v1725, 1.0
  %v1730 = vadd.f32 %v1726, 1.0
  %v1731 = vadd.f32 %v1727, 1.0
  %v1732 = vmul.f32 %v1700, %v1728
  %v1733 = vmul.f32 %v1701, %v1729
  %v1734 = vmul.f32 %v1702, %v1730
  %v1735 = vmul.f32 %v1703, %v1731
  %v1736 = vld [vmem:[%s15] sm:$0xff]
  %v1737 = vld [vmem:[%s15 + $0x8] sm:$0xff]
  %v1738 = vld [vmem:[%s15 + $0x10] sm:$0xff]
  %v1739 = vld [vmem:[%s15 + $0x18] sm:$0xff]
  %v1740 = vld [vmem:[%s15 + $0x20] sm:$0xff]
  %v1741 = vld [vmem:[%s15 + $0x28] sm:$0xff]
  %v1742 = vld [vmem:[%s15 + $0x30] sm:$0xff]
  %v1743 = vld [vmem:[%s15 + $0x38] sm:$0xff]
  %v1744 = vld [vmem:[%s15 + $0x40] sm:$0xff]
  %v1745 = vld [vmem:[%s15 + $0x48] sm:$0xff]
  %v1746 = vld [vmem:[%s15 + $0x50] sm:$0xff]
  %v1747 = vld [vmem:[%s15 + $0x58] sm:$0xff]
  %v1748 = vld [vmem:[%s15 + $0x60] sm:$0xff]
  %v1749 = vld [vmem:[%s15 + $0x68] sm:$0xff]
  %v1750 = vld [vmem:[%s15 + $0x70] sm:$0xff]
  %v1751 = vld [vmem:[%s15 + $0x78] sm:$0xff]
  %v1752 = vld [vmem:[%s15 + $0x80] sm:$0xff]
  %v1753 = vld [vmem:[%s15 + $0x88] sm:$0xff]
  %v1754 = vld [vmem:[%s15 + $0x90] sm:$0xff]
  %v1755 = vld [vmem:[%s15 + $0x98] sm:$0xff]
  %v1756 = vld [vmem:[%s15 + $0xa0] sm:$0xff]
  %v1757 = vld [vmem:[%s15 + $0xa8] sm:$0xff]
  %v1758 = vld [vmem:[%s15 + $0xb0] sm:$0xff]
  %v1759 = vld [vmem:[%s15 + $0xb8] sm:$0xff]
  %v1761 = vsel %vm78, %v1733, 0
  %v1764 = vsel %vm78, %v1735, 0
  %1766 = vmatprep.subr.mxu0 0.0
  %1767 = vmatpush1.msra.mxu0 %v1751
  %1768 = vmatprep.subr.mxu0 0.0
  %1769 = vmatpush1.msra.mxu0 %v1750
  %1770 = vmatprep.subr.mxu0 0.0
  %1771 = vmatpush1.msra.mxu0 %v1749
  %1772 = vmatprep.subr.mxu0 0.0
  %1773 = vmatpush1.msra.mxu0 %v1748
  %1774 = vmatprep.subr.mxu0 0.0
  %1775 = vmatpush1.msra.mxu0 %v1747
  %1776 = vmatprep.subr.mxu0 0.0
  %1777 = vmatpush1.msra.mxu0 %v1746
  %1778 = vmatprep.subr.mxu0 0.0
  %1779 = vmatpush1.msra.mxu0 %v1745
  %1780 = vmatprep.subr.mxu0 0.0
  %1781 = vmatpush1.msra.mxu0 %v1744
  %1782 = vmatprep.subr.mxu0 0.0
  %1783 = vmatpush1.msra.mxu0 %v1743
  %1784 = vmatprep.subr.mxu0 0.0
  %1785 = vmatpush1.msra.mxu0 %v1742
  %1786 = vmatprep.subr.mxu0 0.0
  %1787 = vmatpush1.msra.mxu0 %v1741
  %1788 = vmatprep.subr.mxu0 0.0
  %1789 = vmatpush1.msra.mxu0 %v1740
  %1790 = vmatprep.subr.mxu0 0.0
  %1791 = vmatpush1.msra.mxu0 %v1739
  %1792 = vmatprep.subr.mxu0 0.0
  %1793 = vmatpush1.msra.mxu0 %v1738
  %1794 = vmatprep.subr.mxu0 0.0
  %1795 = vmatpush1.msra.mxu0 %v1737
  %1796 = vmatprep.subr.mxu0 0.0
  %1797 = vmatpush1.msra.mxu0 %v1736
  %1798 = vmatprep.subr.mxu0 0.0
  %1799 = vmatpush2.msra.mxu0 0.0
  %1800 = vmatprep.subr.mxu0 0.0
  %1801 = vmatpush2.msra.mxu0 0.0
  %1802 = vmatprep.subr.mxu0 0.0
  %1803 = vmatpush2.msra.mxu0 0.0
  %1804 = vmatprep.subr.mxu0 0.0
  %1805 = vmatpush2.msra.mxu0 0.0
  %1806 = vmatprep.subr.mxu0 0.0
  %1807 = vmatpush2.msra.mxu0 0.0
  %1808 = vmatprep.subr.mxu0 0.0
  %1809 = vmatpush2.msra.mxu0 0.0
  %1810 = vmatprep.subr.mxu0 0.0
  %1811 = vmatpush2.msra.mxu0 0.0
  %1812 = vmatprep.subr.mxu0 0.0
  %1813 = vmatpush2.msra.mxu0 0.0
  %1814 = vmatprep.subr.mxu0 0.0
  %1815 = vmatpush2.msra.mxu0 %v1759
  %1816 = vmatprep.subr.mxu0 0.0
  %1817 = vmatpush2.msra.mxu0 %v1758
  %1818 = vmatprep.subr.mxu0 0.0
  %1819 = vmatpush2.msra.mxu0 %v1757
  %1820 = vmatprep.subr.mxu0 0.0
  %1821 = vmatpush2.msra.mxu0 %v1756
  %1822 = vmatprep.subr.mxu0 0.0
  %1823 = vmatpush2.msra.mxu0 %v1755
  %1824 = vmatprep.subr.mxu0 0.0
  %1825 = vmatpush2.msra.mxu0 %v1754
  %1826 = vmatprep.subr.mxu0 0.0
  %1827 = vmatpush2.msra.mxu0 %v1753
  %1828 = vmatprep.subr.mxu0 0.0
  %1829 = vmatpush2.msra.mxu0 %v1752
  %1830 = vmatprep.mubr.f32.mxu0 %v1761
  %1831 = vmatmul.mubr.f32.gmra.mxu0 %v1732
  %v1832 = vpop.f32.mrf.mxu0
  %v1833 = vadd.f32 0.0, %v1832
  %v1834 = vpop.f32.mrf.mxu0
  %1835 = vmatprep.mubr.f32.mxu0 %v1764
  %1836 = vmatmul.mubr.f32.gmra.mxu0 %v1734
  %v1837 = vpop.f32.mrf.mxu0
  %v1838 = vadd.f32 0.0, %v1837
  %v1839 = vpop.f32.mrf.mxu0
  %1840 = vdwg.mxu0
  %v1841 = vadd.f32 %v1547, %v1833
  %v1842 = vadd.f32 %v1548, %v1838
  %v1843 = vld [vmem:[%s16] sm:$0x1]
  %v1845 = vlaneseq
  %v1846 = vshrl.u32 %v1845, 7
  %v1847 = vsub.s32 0, %v1846
  %v1848 = vrot.slane %v1843, %v1847
  %v1850 = vadd.f32 %v1841, %v1848
  %v1851 = vadd.f32 %v1842, %v1848
  %s1852 = scalar_lea.vmem %s5, 1
  %v1853 = vld [vmem:[%s1852] sm:$0x1]
  %s1854 = scalar_lea.vmem %s6, 1
  %v1855 = vld [vmem:[%s1854] sm:$0x1]
  %v1856 = vsel %vm267, %v1850, 0.0
  %1857 = vadd.xlane.f32.xlu0 %v1856
  %v1858 = vpop.xlane.xlu0 %1857
  %v1859 = vsel %vm271, %v1851, 0.0
  %1860 = vadd.xlane.f32.xlu0 %v1859
  %v1861 = vpop.xlane.xlu0 %1860
  %v1862 = vmul.f32 %v1858, 0.020833334
  %v1863 = vmul.f32 %v1861, 0.020833334
  %v1864 = vsub.f32 %v1850, %v1862
  %v1865 = vsub.f32 %v1851, %v1863
  %v1866 = vmul.f32 %v1864, %v1864
  %v1867 = vmul.f32 %v1865, %v1865
  %v1868 = vsel %vm267, %v1866, 0.0
  %1869 = vadd.xlane.f32.xlu0 %v1868
  %v1870 = vpop.xlane.xlu0 %1869
  %v1871 = vsel %vm271, %v1867, 0.0
  %1872 = vadd.xlane.f32.xlu0 %v1871
  %v1873 = vpop.xlane.xlu0 %1872
  %v1874 = vmul.f32 %v1870, 0.020833334
  %v1875 = vmul.f32 %v1873, 0.020833334
  %v1876 = vadd.f32 %v1874, 1e-05
  %v1877 = vadd.f32 %v1875, 1e-05
  %v1878 = vrsqrt.pop %v1876
  %v1879 = vrsqrt.pop %v1877
  %v1880 = vmul.f32 %v1864, %v1878
  %v1881 = vmul.f32 %v1865, %v1879
  %v1883 = vlaneseq
  %v1884 = vshrl.u32 %v1883, 7
  %v1885 = vsub.s32 0, %v1884
  %v1886 = vrot.slane %v1853, %v1885
  %v1888 = vmul.f32 %v1880, %v1886
  %v1889 = vmul.f32 %v1881, %v1886
  %v1891 = vlaneseq
  %v1892 = vshrl.u32 %v1891, 7
  %v1893 = vsub.s32 0, %v1892
  %v1894 = vrot.slane %v1855, %v1893
  %v1896 = vadd.f32 %v1888, %v1894
  %v1897 = vadd.f32 %v1889, %v1894
  %s1898 = scalar_lea.vmem %s7, 96
  %v1899 = vld [vmem:[%s1898] sm:$0xff]
  %v1900 = vld [vmem:[%s1898 + $0x8] sm:$0xff]
  %v1901 = vld [vmem:[%s1898 + $0x10] sm:$0xff]
  %v1902 = vld [vmem:[%s1898 + $0x18] sm:$0xff]
  %v1903 = vld [vmem:[%s1898 + $0x20] sm:$0xff]
  %v1904 = vld [vmem:[%s1898 + $0x28] sm:$0xff]
  %v1905 = vld [vmem:[%s1898 + $0x30] sm:$0xff]
  %v1906 = vld [vmem:[%s1898 + $0x38] sm:$0xff]
  %v1907 = vld [vmem:[%s1898 + $0x40] sm:$0xff]
  %v1908 = vld [vmem:[%s1898 + $0x48] sm:$0xff]
  %v1909 = vld [vmem:[%s1898 + $0x50] sm:$0xff]
  %v1910 = vld [vmem:[%s1898 + $0x58] sm:$0xff]
  %s1911 = scalar_lea.vmem %s8, 2
  %v1912 = vld [vmem:[%s1911] sm:$0x3]
  %v1914 = vlaneseq
  %v1915 = vshrl.u32 %v1914, 7
  %v1916 = vsub.s32 0, %v1915
  %v1917 = vrot.slane %v1912, %v1916
  %v1918 = vlaneseq
  %v1919 = vshrl.u32 %v1918, 7
  %v1920 = vsub.s32 1, %v1919
  %v1921 = vrot.slane %v1912, %v1920
  %v1925 = vsel %vm267, %v1896, 0
  %v1928 = vsel %vm267, %v1897, 0
  %1930 = vmatprep.subr.mxu0 0.0
  %1931 = vmatpush1.msra.mxu0 0.0
  %1932 = vmatprep.subr.mxu0 0.0
  %1933 = vmatpush1.msra.mxu0 0.0
  %1934 = vmatprep.subr.mxu0 0.0
  %1935 = vmatpush1.msra.mxu0 0.0
  %1936 = vmatprep.subr.mxu0 0.0
  %1937 = vmatpush1.msra.mxu0 0.0
  %1938 = vmatprep.subr.mxu0 0.0
  %1939 = vmatpush1.msra.mxu0 0.0
  %1940 = vmatprep.subr.mxu0 0.0
  %1941 = vmatpush1.msra.mxu0 0.0
  %1942 = vmatprep.subr.mxu0 0.0
  %1943 = vmatpush1.msra.mxu0 0.0
  %1944 = vmatprep.subr.mxu0 0.0
  %1945 = vmatpush1.msra.mxu0 0.0
  %1946 = vmatprep.subr.mxu0 0.0
  %1947 = vmatpush1.msra.mxu0 0.0
  %1948 = vmatprep.subr.mxu0 0.0
  %1949 = vmatpush1.msra.mxu0 0.0
  %1950 = vmatprep.subr.mxu0 %v1910
  %1951 = vmatpush1.msra.mxu0 %v1909
  %1952 = vmatprep.subr.mxu0 %v1908
  %1953 = vmatpush1.msra.mxu0 %v1907
  %1954 = vmatprep.subr.mxu0 %v1906
  %1955 = vmatpush1.msra.mxu0 %v1905
  %1956 = vmatprep.subr.mxu0 %v1904
  %1957 = vmatpush1.msra.mxu0 %v1903
  %1958 = vmatprep.subr.mxu0 %v1902
  %1959 = vmatpush1.msra.mxu0 %v1901
  %1960 = vmatprep.subr.mxu0 %v1900
  %1961 = vmatpush1.msra.mxu0 %v1899
  %1962 = vmatprep.subr.mxu0 0.0
  %1963 = vmatpush2.msra.mxu0 0.0
  %1964 = vmatprep.subr.mxu0 0.0
  %1965 = vmatpush2.msra.mxu0 0.0
  %1966 = vmatprep.subr.mxu0 0.0
  %1967 = vmatpush2.msra.mxu0 0.0
  %1968 = vmatprep.subr.mxu0 0.0
  %1969 = vmatpush2.msra.mxu0 0.0
  %1970 = vmatprep.subr.mxu0 0.0
  %1971 = vmatpush2.msra.mxu0 0.0
  %1972 = vmatprep.subr.mxu0 0.0
  %1973 = vmatpush2.msra.mxu0 0.0
  %1974 = vmatprep.subr.mxu0 0.0
  %1975 = vmatpush2.msra.mxu0 0.0
  %1976 = vmatprep.subr.mxu0 0.0
  %1977 = vmatpush2.msra.mxu0 0.0
  %1978 = vmatprep.subr.mxu0 0.0
  %1979 = vmatpush2.msra.mxu0 0.0
  %1980 = vmatprep.subr.mxu0 0.0
  %1981 = vmatpush2.msra.mxu0 0.0
  %1982 = vmatprep.subr.mxu0 0.0
  %1983 = vmatpush2.msra.mxu0 0.0
  %1984 = vmatprep.subr.mxu0 0.0
  %1985 = vmatpush2.msra.mxu0 0.0
  %1986 = vmatprep.subr.mxu0 0.0
  %1987 = vmatpush2.msra.mxu0 0.0
  %1988 = vmatprep.subr.mxu0 0.0
  %1989 = vmatpush2.msra.mxu0 0.0
  %1990 = vmatprep.subr.mxu0 0.0
  %1991 = vmatpush2.msra.mxu0 0.0
  %1992 = vmatprep.subr.mxu0 0.0
  %1993 = vmatpush2.msra.mxu0 0.0
  %1994 = vmatprep.mubr.f32.mxu0 0.0
  %1995 = vmatmul.mubr.f32.gmra.mxu0 %v1925
  %v1996 = vpop.f32.mrf.mxu0
  %v1997 = vadd.f32 %v1917, %v1996
  %v1998 = vpop.f32.mrf.mxu0
  %v1999 = vadd.f32 %v1921, %v1998
  %2000 = vmatprep.mubr.f32.mxu0 0.0
  %2001 = vmatmul.mubr.f32.gmra.mxu0 %v1928
  %v2002 = vpop.f32.mrf.mxu0
  %v2003 = vadd.f32 %v1917, %v2002
  %v2004 = vpop.f32.mrf.mxu0
  %v2005 = vadd.f32 %v1921, %v2004
  %2006 = vdwg.mxu0
  %2008 = vrot.lane.b32.xlu0 %v1997, 80
  %v2009 = vpop.permute.xlu0 %2008
  %v2010 = vsel %vm421, %v1997, 0
  %v2012 = vsel %vm421, %v2009, 0
  %2014 = vmatprep.subr.mxu0 0.0
  %2015 = vmatpush1.xpose.msra.mxu0 0.0
  %2016 = vmatprep.subr.mxu0 0.0
  %2017 = vmatpush1.xpose.msra.mxu0 0.0
  %2018 = vmatprep.subr.mxu0 0.0
  %2019 = vmatpush1.xpose.msra.mxu0 0.0
  %2020 = vmatprep.subr.mxu0 0.0
  %2021 = vmatpush1.xpose.msra.mxu0 0.0
  %2022 = vmatprep.subr.mxu0 0.0
  %2023 = vmatpush1.xpose.msra.mxu0 0.0
  %2024 = vmatprep.subr.mxu0 0.0
  %2025 = vmatpush1.xpose.msra.mxu0 0.0
  %2026 = vmatprep.subr.mxu0 0.0
  %2027 = vmatpush1.xpose.msra.mxu0 0.0
  %2028 = vmatprep.subr.mxu0 0.0
  %2029 = vmatpush1.xpose.msra.mxu0 0.0
  %2030 = vmatprep.subr.mxu0 0.0
  %2031 = vmatpush1.xpose.msra.mxu0 0.0
  %2032 = vmatprep.subr.mxu0 0.0
  %2033 = vmatpush1.xpose.msra.mxu0 0.0
  %2034 = vmatprep.subr.mxu0 0.0
  %2035 = vmatpush1.xpose.msra.mxu0 0.0
  %2036 = vmatprep.subr.mxu0 0.0
  %2037 = vmatpush1.xpose.msra.mxu0 0.0
  %2038 = vmatprep.subr.mxu0 0.0
  %2039 = vmatpush1.xpose.msra.mxu0 0.0
  %2040 = vmatprep.subr.mxu0 0.0
  %2041 = vmatpush1.xpose.msra.mxu0 0.0
  %2042 = vmatprep.subr.mxu0 0.0
  %2043 = vmatpush1.xpose.msra.mxu0 0.0
  %2044 = vmatprep.subr.mxu0 0.0
  %2045 = vmatpush1.xpose.msra.mxu0 %v2012
  %2046 = vmatprep.subr.mxu0 0.0
  %2047 = vmatpush2.xpose.msra.mxu0 0.0
  %2048 = vmatprep.subr.mxu0 0.0
  %2049 = vmatpush2.xpose.msra.mxu0 0.0
  %2050 = vmatprep.subr.mxu0 0.0
  %2051 = vmatpush2.xpose.msra.mxu0 0.0
  %2052 = vmatprep.subr.mxu0 0.0
  %2053 = vmatpush2.xpose.msra.mxu0 0.0
  %2054 = vmatprep.subr.mxu0 0.0
  %2055 = vmatpush2.xpose.msra.mxu0 0.0
  %2056 = vmatprep.subr.mxu0 0.0
  %2057 = vmatpush2.xpose.msra.mxu0 0.0
  %2058 = vmatprep.subr.mxu0 0.0
  %2059 = vmatpush2.xpose.msra.mxu0 0.0
  %2060 = vmatprep.subr.mxu0 0.0
  %2061 = vmatpush2.xpose.msra.mxu0 0.0
  %2062 = vmatprep.subr.mxu0 0.0
  %2063 = vmatpush2.xpose.msra.mxu0 0.0
  %2064 = vmatprep.subr.mxu0 0.0
  %2065 = vmatpush2.xpose.msra.mxu0 0.0
  %2066 = vmatprep.subr.mxu0 0.0
  %2067 = vmatpush2.xpose.msra.mxu0 0.0
  %2068 = vmatprep.subr.mxu0 0.0
  %2069 = vmatpush2.xpose.msra.mxu0 0.0
  %2070 = vmatprep.subr.mxu0 0.0
  %2071 = vmatpush2.xpose.msra.mxu0 0.0
  %2072 = vmatprep.subr.mxu0 0.0
  %2073 = vmatpush2.xpose.msra.mxu0 0.0
  %2074 = vmatprep.subr.mxu0 0.0
  %2075 = vmatpush2.xpose.msra.mxu0 0.0
  %2076 = vmatprep.subr.mxu0 0.0
  %2077 = vmatpush2.xpose.msra.mxu0 0.0
  %2078 = vmatprep.mubr.f32.mxu0 0.0
  %2079 = vmatmul.mubr.f32.gmra.mxu0 %v2010
  %v2080 = vpop.f32.mrf.mxu0
  %v2081 = vadd.f32 0.0, %v2080
  %v2082 = vpop.f32.mrf.mxu0
  %2083 = vdwg.mxu0
  %v2084 = vmul.f32 %v2081, 0.25
  %v2085 = vsel %vm497, %v2084, -inf
  %2086 = vmax.xlane.f32.xlu0 %v2085
  %v2087 = vpop.xlane.xlu0 %2086
  %v2088 = vsub.f32 %v2084, %v2087
  %v2089 = vmul.f32 %v2088, 1.442695
  %v2090 = vpow.pop %v2089
  %v2091 = vsel %vm497, %v2090, 0.0
  %2092 = vadd.xlane.f32.xlu0 %v2091
  %v2093 = vpop.xlane.xlu0 %2092
  %v2094 = vrcp.pop %v2093
  %v2095 = vmul.f32 %v2090, %v2094
  %2096 = vrot.lane.b32.xlu0 %v1997, 32
  %v2097 = vpop.permute.xlu0 %2096
  %v2099 = vsel %vm511, %v2095, 0
  %v2101 = vsel %vm515, %v2097, 0
  %2103 = vmatprep.subr.mxu0 0.0
  %2104 = vmatpush1.msra.mxu0 0.0
  %2105 = vmatprep.subr.mxu0 0.0
  %2106 = vmatpush1.msra.mxu0 0.0
  %2107 = vmatprep.subr.mxu0 0.0
  %2108 = vmatpush1.msra.mxu0 0.0
  %2109 = vmatprep.subr.mxu0 0.0
  %2110 = vmatpush1.msra.mxu0 0.0
  %2111 = vmatprep.subr.mxu0 0.0
  %2112 = vmatpush1.msra.mxu0 0.0
  %2113 = vmatprep.subr.mxu0 0.0
  %2114 = vmatpush1.msra.mxu0 0.0
  %2115 = vmatprep.subr.mxu0 0.0
  %2116 = vmatpush1.msra.mxu0 0.0
  %2117 = vmatprep.subr.mxu0 0.0
  %2118 = vmatpush1.msra.mxu0 0.0
  %2119 = vmatprep.subr.mxu0 0.0
  %2120 = vmatpush1.msra.mxu0 0.0
  %2121 = vmatprep.subr.mxu0 0.0
  %2122 = vmatpush1.msra.mxu0 0.0
  %2123 = vmatprep.subr.mxu0 0.0
  %2124 = vmatpush1.msra.mxu0 0.0
  %2125 = vmatprep.subr.mxu0 0.0
  %2126 = vmatpush1.msra.mxu0 0.0
  %2127 = vmatprep.subr.mxu0 0.0
  %2128 = vmatpush1.msra.mxu0 0.0
  %2129 = vmatprep.subr.mxu0 0.0
  %2130 = vmatpush1.msra.mxu0 0.0
  %2131 = vmatprep.subr.mxu0 0.0
  %2132 = vmatpush1.msra.mxu0 0.0
  %2133 = vmatprep.subr.mxu0 0.0
  %2134 = vmatpush1.msra.mxu0 %v2101
  %2135 = vmatprep.subr.mxu0 0.0
  %2136 = vmatpush2.msra.mxu0 0.0
  %2137 = vmatprep.subr.mxu0 0.0
  %2138 = vmatpush2.msra.mxu0 0.0
  %2139 = vmatprep.subr.mxu0 0.0
  %2140 = vmatpush2.msra.mxu0 0.0
  %2141 = vmatprep.subr.mxu0 0.0
  %2142 = vmatpush2.msra.mxu0 0.0
  %2143 = vmatprep.subr.mxu0 0.0
  %2144 = vmatpush2.msra.mxu0 0.0
  %2145 = vmatprep.subr.mxu0 0.0
  %2146 = vmatpush2.msra.mxu0 0.0
  %2147 = vmatprep.subr.mxu0 0.0
  %2148 = vmatpush2.msra.mxu0 0.0
  %2149 = vmatprep.subr.mxu0 0.0
  %2150 = vmatpush2.msra.mxu0 0.0
  %2151 = vmatprep.subr.mxu0 0.0
  %2152 = vmatpush2.msra.mxu0 0.0
  %2153 = vmatprep.subr.mxu0 0.0
  %2154 = vmatpush2.msra.mxu0 0.0
  %2155 = vmatprep.subr.mxu0 0.0
  %2156 = vmatpush2.msra.mxu0 0.0
  %2157 = vmatprep.subr.mxu0 0.0
  %2158 = vmatpush2.msra.mxu0 0.0
  %2159 = vmatprep.subr.mxu0 0.0
  %2160 = vmatpush2.msra.mxu0 0.0
  %2161 = vmatprep.subr.mxu0 0.0
  %2162 = vmatpush2.msra.mxu0 0.0
  %2163 = vmatprep.subr.mxu0 0.0
  %2164 = vmatpush2.msra.mxu0 0.0
  %2165 = vmatprep.subr.mxu0 0.0
  %2166 = vmatpush2.msra.mxu0 0.0
  %2167 = vmatprep.mubr.f32.mxu0 0.0
  %2168 = vmatmul.mubr.f32.gmra.mxu0 %v2099
  %v2169 = vpop.f32.mrf.mxu0
  %v2170 = vadd.f32 0.0, %v2169
  %v2171 = vpop.f32.mrf.mxu0
  %2172 = vdwg.mxu0
  %2173 = vrot.lane.b32.xlu0 %v1997, 112
  %v2174 = vpop.permute.xlu0 %2173
  %2175 = vrot.lane.b32.xlu0 %v1997, 64
  %v2176 = vpop.permute.xlu0 %2175
  %v2177 = vsel %vm421, %v2174, 0
  %v2179 = vsel %vm421, %v2176, 0
  %2181 = vmatprep.subr.mxu0 0.0
  %2182 = vmatpush1.xpose.msra.mxu0 0.0
  %2183 = vmatprep.subr.mxu0 0.0
  %2184 = vmatpush1.xpose.msra.mxu0 0.0
  %2185 = vmatprep.subr.mxu0 0.0
  %2186 = vmatpush1.xpose.msra.mxu0 0.0
  %2187 = vmatprep.subr.mxu0 0.0
  %2188 = vmatpush1.xpose.msra.mxu0 0.0
  %2189 = vmatprep.subr.mxu0 0.0
  %2190 = vmatpush1.xpose.msra.mxu0 0.0
  %2191 = vmatprep.subr.mxu0 0.0
  %2192 = vmatpush1.xpose.msra.mxu0 0.0
  %2193 = vmatprep.subr.mxu0 0.0
  %2194 = vmatpush1.xpose.msra.mxu0 0.0
  %2195 = vmatprep.subr.mxu0 0.0
  %2196 = vmatpush1.xpose.msra.mxu0 0.0
  %2197 = vmatprep.subr.mxu0 0.0
  %2198 = vmatpush1.xpose.msra.mxu0 0.0
  %2199 = vmatprep.subr.mxu0 0.0
  %2200 = vmatpush1.xpose.msra.mxu0 0.0
  %2201 = vmatprep.subr.mxu0 0.0
  %2202 = vmatpush1.xpose.msra.mxu0 0.0
  %2203 = vmatprep.subr.mxu0 0.0
  %2204 = vmatpush1.xpose.msra.mxu0 0.0
  %2205 = vmatprep.subr.mxu0 0.0
  %2206 = vmatpush1.xpose.msra.mxu0 0.0
  %2207 = vmatprep.subr.mxu0 0.0
  %2208 = vmatpush1.xpose.msra.mxu0 0.0
  %2209 = vmatprep.subr.mxu0 0.0
  %2210 = vmatpush1.xpose.msra.mxu0 0.0
  %2211 = vmatprep.subr.mxu0 0.0
  %2212 = vmatpush1.xpose.msra.mxu0 %v2179
  %2213 = vmatprep.subr.mxu0 0.0
  %2214 = vmatpush2.xpose.msra.mxu0 0.0
  %2215 = vmatprep.subr.mxu0 0.0
  %2216 = vmatpush2.xpose.msra.mxu0 0.0
  %2217 = vmatprep.subr.mxu0 0.0
  %2218 = vmatpush2.xpose.msra.mxu0 0.0
  %2219 = vmatprep.subr.mxu0 0.0
  %2220 = vmatpush2.xpose.msra.mxu0 0.0
  %2221 = vmatprep.subr.mxu0 0.0
  %2222 = vmatpush2.xpose.msra.mxu0 0.0
  %2223 = vmatprep.subr.mxu0 0.0
  %2224 = vmatpush2.xpose.msra.mxu0 0.0
  %2225 = vmatprep.subr.mxu0 0.0
  %2226 = vmatpush2.xpose.msra.mxu0 0.0
  %2227 = vmatprep.subr.mxu0 0.0
  %2228 = vmatpush2.xpose.msra.mxu0 0.0
  %2229 = vmatprep.subr.mxu0 0.0
  %2230 = vmatpush2.xpose.msra.mxu0 0.0
  %2231 = vmatprep.subr.mxu0 0.0
  %2232 = vmatpush2.xpose.msra.mxu0 0.0
  %2233 = vmatprep.subr.mxu0 0.0
  %2234 = vmatpush2.xpose.msra.mxu0 0.0
  %2235 = vmatprep.subr.mxu0 0.0
  %2236 = vmatpush2.xpose.msra.mxu0 0.0
  %2237 = vmatprep.subr.mxu0 0.0
  %2238 = vmatpush2.xpose.msra.mxu0 0.0
  %2239 = vmatprep.subr.mxu0 0.0
  %2240 = vmatpush2.xpose.msra.mxu0 0.0
  %2241 = vmatprep.subr.mxu0 0.0
  %2242 = vmatpush2.xpose.msra.mxu0 0.0
  %2243 = vmatprep.subr.mxu0 0.0
  %2244 = vmatpush2.xpose.msra.mxu0 0.0
  %2245 = vmatprep.mubr.f32.mxu0 0.0
  %2246 = vmatmul.mubr.f32.gmra.mxu0 %v2177
  %v2247 = vpop.f32.mrf.mxu0
  %v2248 = vadd.f32 0.0, %v2247
  %v2249 = vpop.f32.mrf.mxu0
  %2250 = vdwg.mxu0
  %v2251 = vmul.f32 %v2248, 0.25
  %v2252 = vsel %vm497, %v2251, -inf
  %2253 = vmax.xlane.f32.xlu0 %v2252
  %v2254 = vpop.xlane.xlu0 %2253
  %v2255 = vsub.f32 %v2251, %v2254
  %v2256 = vmul.f32 %v2255, 1.442695
  %v2257 = vpow.pop %v2256
  %v2258 = vsel %vm497, %v2257, 0.0
  %2259 = vadd.xlane.f32.xlu0 %v2258
  %v2260 = vpop.xlane.xlu0 %2259
  %v2261 = vrcp.pop %v2260
  %v2262 = vmul.f32 %v2257, %v2261
  %2263 = vrot.lane.b32.xlu0 %v1997, 16
  %v2264 = vpop.permute.xlu0 %2263
  %v2266 = vsel %vm511, %v2262, 0
  %v2268 = vsel %vm515, %v2264, 0
  %2270 = vmatprep.subr.mxu0 0.0
  %2271 = vmatpush1.msra.mxu0 0.0
  %2272 = vmatprep.subr.mxu0 0.0
  %2273 = vmatpush1.msra.mxu0 0.0
  %2274 = vmatprep.subr.mxu0 0.0
  %2275 = vmatpush1.msra.mxu0 0.0
  %2276 = vmatprep.subr.mxu0 0.0
  %2277 = vmatpush1.msra.mxu0 0.0
  %2278 = vmatprep.subr.mxu0 0.0
  %2279 = vmatpush1.msra.mxu0 0.0
  %2280 = vmatprep.subr.mxu0 0.0
  %2281 = vmatpush1.msra.mxu0 0.0
  %2282 = vmatprep.subr.mxu0 0.0
  %2283 = vmatpush1.msra.mxu0 0.0
  %2284 = vmatprep.subr.mxu0 0.0
  %2285 = vmatpush1.msra.mxu0 0.0
  %2286 = vmatprep.subr.mxu0 0.0
  %2287 = vmatpush1.msra.mxu0 0.0
  %2288 = vmatprep.subr.mxu0 0.0
  %2289 = vmatpush1.msra.mxu0 0.0
  %2290 = vmatprep.subr.mxu0 0.0
  %2291 = vmatpush1.msra.mxu0 0.0
  %2292 = vmatprep.subr.mxu0 0.0
  %2293 = vmatpush1.msra.mxu0 0.0
  %2294 = vmatprep.subr.mxu0 0.0
  %2295 = vmatpush1.msra.mxu0 0.0
  %2296 = vmatprep.subr.mxu0 0.0
  %2297 = vmatpush1.msra.mxu0 0.0
  %2298 = vmatprep.subr.mxu0 0.0
  %2299 = vmatpush1.msra.mxu0 0.0
  %2300 = vmatprep.subr.mxu0 0.0
  %2301 = vmatpush1.msra.mxu0 %v2268
  %2302 = vmatprep.subr.mxu0 0.0
  %2303 = vmatpush2.msra.mxu0 0.0
  %2304 = vmatprep.subr.mxu0 0.0
  %2305 = vmatpush2.msra.mxu0 0.0
  %2306 = vmatprep.subr.mxu0 0.0
  %2307 = vmatpush2.msra.mxu0 0.0
  %2308 = vmatprep.subr.mxu0 0.0
  %2309 = vmatpush2.msra.mxu0 0.0
  %2310 = vmatprep.subr.mxu0 0.0
  %2311 = vmatpush2.msra.mxu0 0.0
  %2312 = vmatprep.subr.mxu0 0.0
  %2313 = vmatpush2.msra.mxu0 0.0
  %2314 = vmatprep.subr.mxu0 0.0
  %2315 = vmatpush2.msra.mxu0 0.0
  %2316 = vmatprep.subr.mxu0 0.0
  %2317 = vmatpush2.msra.mxu0 0.0
  %2318 = vmatprep.subr.mxu0 0.0
  %2319 = vmatpush2.msra.mxu0 0.0
  %2320 = vmatprep.subr.mxu0 0.0
  %2321 = vmatpush2.msra.mxu0 0.0
  %2322 = vmatprep.subr.mxu0 0.0
  %2323 = vmatpush2.msra.mxu0 0.0
  %2324 = vmatprep.subr.mxu0 0.0
  %2325 = vmatpush2.msra.mxu0 0.0
  %2326 = vmatprep.subr.mxu0 0.0
  %2327 = vmatpush2.msra.mxu0 0.0
  %2328 = vmatprep.subr.mxu0 0.0
  %2329 = vmatpush2.msra.mxu0 0.0
  %2330 = vmatprep.subr.mxu0 0.0
  %2331 = vmatpush2.msra.mxu0 0.0
  %2332 = vmatprep.subr.mxu0 0.0
  %2333 = vmatpush2.msra.mxu0 0.0
  %2334 = vmatprep.mubr.f32.mxu0 0.0
  %2335 = vmatmul.mubr.f32.gmra.mxu0 %v2266
  %v2336 = vpop.f32.mrf.mxu0
  %v2337 = vadd.f32 0.0, %v2336
  %v2338 = vpop.f32.mrf.mxu0
  %2339 = vdwg.mxu0
  %2340 = vrot.lane.b32.xlu0 %v1997, 96
  %v2341 = vpop.permute.xlu0 %2340
  %2342 = vrot.lane.b32.xlu0 %v1997, 48
  %v2343 = vpop.permute.xlu0 %2342
  %v2344 = vsel %vm421, %v2341, 0
  %v2346 = vsel %vm421, %v2343, 0
  %2348 = vmatprep.subr.mxu0 0.0
  %2349 = vmatpush1.xpose.msra.mxu0 0.0
  %2350 = vmatprep.subr.mxu0 0.0
  %2351 = vmatpush1.xpose.msra.mxu0 0.0
  %2352 = vmatprep.subr.mxu0 0.0
  %2353 = vmatpush1.xpose.msra.mxu0 0.0
  %2354 = vmatprep.subr.mxu0 0.0
  %2355 = vmatpush1.xpose.msra.mxu0 0.0
  %2356 = vmatprep.subr.mxu0 0.0
  %2357 = vmatpush1.xpose.msra.mxu0 0.0
  %2358 = vmatprep.subr.mxu0 0.0
  %2359 = vmatpush1.xpose.msra.mxu0 0.0
  %2360 = vmatprep.subr.mxu0 0.0
  %2361 = vmatpush1.xpose.msra.mxu0 0.0
  %2362 = vmatprep.subr.mxu0 0.0
  %2363 = vmatpush1.xpose.msra.mxu0 0.0
  %2364 = vmatprep.subr.mxu0 0.0
  %2365 = vmatpush1.xpose.msra.mxu0 0.0
  %2366 = vmatprep.subr.mxu0 0.0
  %2367 = vmatpush1.xpose.msra.mxu0 0.0
  %2368 = vmatprep.subr.mxu0 0.0
  %2369 = vmatpush1.xpose.msra.mxu0 0.0
  %2370 = vmatprep.subr.mxu0 0.0
  %2371 = vmatpush1.xpose.msra.mxu0 0.0
  %2372 = vmatprep.subr.mxu0 0.0
  %2373 = vmatpush1.xpose.msra.mxu0 0.0
  %2374 = vmatprep.subr.mxu0 0.0
  %2375 = vmatpush1.xpose.msra.mxu0 0.0
  %2376 = vmatprep.subr.mxu0 0.0
  %2377 = vmatpush1.xpose.msra.mxu0 0.0
  %2378 = vmatprep.subr.mxu0 0.0
  %2379 = vmatpush1.xpose.msra.mxu0 %v2346
  %2380 = vmatprep.subr.mxu0 0.0
  %2381 = vmatpush2.xpose.msra.mxu0 0.0
  %2382 = vmatprep.subr.mxu0 0.0
  %2383 = vmatpush2.xpose.msra.mxu0 0.0
  %2384 = vmatprep.subr.mxu0 0.0
  %2385 = vmatpush2.xpose.msra.mxu0 0.0
  %2386 = vmatprep.subr.mxu0 0.0
  %2387 = vmatpush2.xpose.msra.mxu0 0.0
  %2388 = vmatprep.subr.mxu0 0.0
  %2389 = vmatpush2.xpose.msra.mxu0 0.0
  %2390 = vmatprep.subr.mxu0 0.0
  %2391 = vmatpush2.xpose.msra.mxu0 0.0
  %2392 = vmatprep.subr.mxu0 0.0
  %2393 = vmatpush2.xpose.msra.mxu0 0.0
  %2394 = vmatprep.subr.mxu0 0.0
  %2395 = vmatpush2.xpose.msra.mxu0 0.0
  %2396 = vmatprep.subr.mxu0 0.0
  %2397 = vmatpush2.xpose.msra.mxu0 0.0
  %2398 = vmatprep.subr.mxu0 0.0
  %2399 = vmatpush2.xpose.msra.mxu0 0.0
  %2400 = vmatprep.subr.mxu0 0.0
  %2401 = vmatpush2.xpose.msra.mxu0 0.0
  %2402 = vmatprep.subr.mxu0 0.0
  %2403 = vmatpush2.xpose.msra.mxu0 0.0
  %2404 = vmatprep.subr.mxu0 0.0
  %2405 = vmatpush2.xpose.msra.mxu0 0.0
  %2406 = vmatprep.subr.mxu0 0.0
  %2407 = vmatpush2.xpose.msra.mxu0 0.0
  %2408 = vmatprep.subr.mxu0 0.0
  %2409 = vmatpush2.xpose.msra.mxu0 0.0
  %2410 = vmatprep.subr.mxu0 0.0
  %2411 = vmatpush2.xpose.msra.mxu0 0.0
  %2412 = vmatprep.mubr.f32.mxu0 0.0
  %2413 = vmatmul.mubr.f32.gmra.mxu0 %v2344
  %v2414 = vpop.f32.mrf.mxu0
  %v2415 = vadd.f32 0.0, %v2414
  %v2416 = vpop.f32.mrf.mxu0
  %2417 = vdwg.mxu0
  %v2418 = vmul.f32 %v2415, 0.25
  %v2419 = vsel %vm497, %v2418, -inf
  %2420 = vmax.xlane.f32.xlu0 %v2419
  %v2421 = vpop.xlane.xlu0 %2420
  %v2422 = vsub.f32 %v2418, %v2421
  %v2423 = vmul.f32 %v2422, 1.442695
  %v2424 = vpow.pop %v2423
  %v2425 = vsel %vm497, %v2424, 0.0
  %2426 = vadd.xlane.f32.xlu0 %v2425
  %v2427 = vpop.xlane.xlu0 %2426
  %v2428 = vrcp.pop %v2427
  %v2429 = vmul.f32 %v2424, %v2428
  %v2431 = vsel %vm511, %v2429, 0
  %v2434 = vsel %vm515, %v1999, 0
  %2436 = vmatprep.subr.mxu0 0.0
  %2437 = vmatpush1.msra.mxu0 0.0
  %2438 = vmatprep.subr.mxu0 0.0
  %2439 = vmatpush1.msra.mxu0 0.0
  %2440 = vmatprep.subr.mxu0 0.0
  %2441 = vmatpush1.msra.mxu0 0.0
  %2442 = vmatprep.subr.mxu0 0.0
  %2443 = vmatpush1.msra.mxu0 0.0
  %2444 = vmatprep.subr.mxu0 0.0
  %2445 = vmatpush1.msra.mxu0 0.0
  %2446 = vmatprep.subr.mxu0 0.0
  %2447 = vmatpush1.msra.mxu0 0.0
  %2448 = vmatprep.subr.mxu0 0.0
  %2449 = vmatpush1.msra.mxu0 0.0
  %2450 = vmatprep.subr.mxu0 0.0
  %2451 = vmatpush1.msra.mxu0 0.0
  %2452 = vmatprep.subr.mxu0 0.0
  %2453 = vmatpush1.msra.mxu0 0.0
  %2454 = vmatprep.subr.mxu0 0.0
  %2455 = vmatpush1.msra.mxu0 0.0
  %2456 = vmatprep.subr.mxu0 0.0
  %2457 = vmatpush1.msra.mxu0 0.0
  %2458 = vmatprep.subr.mxu0 0.0
  %2459 = vmatpush1.msra.mxu0 0.0
  %2460 = vmatprep.subr.mxu0 0.0
  %2461 = vmatpush1.msra.mxu0 0.0
  %2462 = vmatprep.subr.mxu0 0.0
  %2463 = vmatpush1.msra.mxu0 0.0
  %2464 = vmatprep.subr.mxu0 0.0
  %2465 = vmatpush1.msra.mxu0 0.0
  %2466 = vmatprep.subr.mxu0 0.0
  %2467 = vmatpush1.msra.mxu0 %v2434
  %2468 = vmatprep.subr.mxu0 0.0
  %2469 = vmatpush2.msra.mxu0 0.0
  %2470 = vmatprep.subr.mxu0 0.0
  %2471 = vmatpush2.msra.mxu0 0.0
  %2472 = vmatprep.subr.mxu0 0.0
  %2473 = vmatpush2.msra.mxu0 0.0
  %2474 = vmatprep.subr.mxu0 0.0
  %2475 = vmatpush2.msra.mxu0 0.0
  %2476 = vmatprep.subr.mxu0 0.0
  %2477 = vmatpush2.msra.mxu0 0.0
  %2478 = vmatprep.subr.mxu0 0.0
  %2479 = vmatpush2.msra.mxu0 0.0
  %2480 = vmatprep.subr.mxu0 0.0
  %2481 = vmatpush2.msra.mxu0 0.0
  %2482 = vmatprep.subr.mxu0 0.0
  %2483 = vmatpush2.msra.mxu0 0.0
  %2484 = vmatprep.subr.mxu0 0.0
  %2485 = vmatpush2.msra.mxu0 0.0
  %2486 = vmatprep.subr.mxu0 0.0
  %2487 = vmatpush2.msra.mxu0 0.0
  %2488 = vmatprep.subr.mxu0 0.0
  %2489 = vmatpush2.msra.mxu0 0.0
  %2490 = vmatprep.subr.mxu0 0.0
  %2491 = vmatpush2.msra.mxu0 0.0
  %2492 = vmatprep.subr.mxu0 0.0
  %2493 = vmatpush2.msra.mxu0 0.0
  %2494 = vmatprep.subr.mxu0 0.0
  %2495 = vmatpush2.msra.mxu0 0.0
  %2496 = vmatprep.subr.mxu0 0.0
  %2497 = vmatpush2.msra.mxu0 0.0
  %2498 = vmatprep.subr.mxu0 0.0
  %2499 = vmatpush2.msra.mxu0 0.0
  %2500 = vmatprep.mubr.f32.mxu0 0.0
  %2501 = vmatmul.mubr.f32.gmra.mxu0 %v2431
  %v2502 = vpop.f32.mrf.mxu0
  %v2503 = vadd.f32 0.0, %v2502
  %v2504 = vpop.f32.mrf.mxu0
  %2505 = vdwg.mxu0
  %2507 = vrot.lane.b32.xlu0 %v2337, 16
  %v2508 = vpop.permute.xlu0 %2507
  %2511 = vrot.lane.b32.xlu0 %v2503, 32
  %v2512 = vpop.permute.xlu0 %2511
  %v2514 = vsel %vm421, %v2170, %v2508
  %v2515 = vsel %vm930, %v2514, %v2512
  %v2517 = vrot.slane %v1997, 5
  %v2518 = vrot.slane %v2003, 5
  %v2519 = vsel %vm933, %v2517, %v2518
  %2520 = vrot.lane.b32.xlu0 %v2519, 80
  %v2521 = vpop.permute.xlu0 %2520
  %v2522 = vsel %vm421, %v2519, 0
  %v2524 = vsel %vm421, %v2521, 0
  %2526 = vmatprep.subr.mxu0 0.0
  %2527 = vmatpush1.xpose.msra.mxu0 0.0
  %2528 = vmatprep.subr.mxu0 0.0
  %2529 = vmatpush1.xpose.msra.mxu0 0.0
  %2530 = vmatprep.subr.mxu0 0.0
  %2531 = vmatpush1.xpose.msra.mxu0 0.0
  %2532 = vmatprep.subr.mxu0 0.0
  %2533 = vmatpush1.xpose.msra.mxu0 0.0
  %2534 = vmatprep.subr.mxu0 0.0
  %2535 = vmatpush1.xpose.msra.mxu0 0.0
  %2536 = vmatprep.subr.mxu0 0.0
  %2537 = vmatpush1.xpose.msra.mxu0 0.0
  %2538 = vmatprep.subr.mxu0 0.0
  %2539 = vmatpush1.xpose.msra.mxu0 0.0
  %2540 = vmatprep.subr.mxu0 0.0
  %2541 = vmatpush1.xpose.msra.mxu0 0.0
  %2542 = vmatprep.subr.mxu0 0.0
  %2543 = vmatpush1.xpose.msra.mxu0 0.0
  %2544 = vmatprep.subr.mxu0 0.0
  %2545 = vmatpush1.xpose.msra.mxu0 0.0
  %2546 = vmatprep.subr.mxu0 0.0
  %2547 = vmatpush1.xpose.msra.mxu0 0.0
  %2548 = vmatprep.subr.mxu0 0.0
  %2549 = vmatpush1.xpose.msra.mxu0 0.0
  %2550 = vmatprep.subr.mxu0 0.0
  %2551 = vmatpush1.xpose.msra.mxu0 0.0
  %2552 = vmatprep.subr.mxu0 0.0
  %2553 = vmatpush1.xpose.msra.mxu0 0.0
  %2554 = vmatprep.subr.mxu0 0.0
  %2555 = vmatpush1.xpose.msra.mxu0 0.0
  %2556 = vmatprep.subr.mxu0 0.0
  %2557 = vmatpush1.xpose.msra.mxu0 %v2524
  %2558 = vmatprep.subr.mxu0 0.0
  %2559 = vmatpush2.xpose.msra.mxu0 0.0
  %2560 = vmatprep.subr.mxu0 0.0
  %2561 = vmatpush2.xpose.msra.mxu0 0.0
  %2562 = vmatprep.subr.mxu0 0.0
  %2563 = vmatpush2.xpose.msra.mxu0 0.0
  %2564 = vmatprep.subr.mxu0 0.0
  %2565 = vmatpush2.xpose.msra.mxu0 0.0
  %2566 = vmatprep.subr.mxu0 0.0
  %2567 = vmatpush2.xpose.msra.mxu0 0.0
  %2568 = vmatprep.subr.mxu0 0.0
  %2569 = vmatpush2.xpose.msra.mxu0 0.0
  %2570 = vmatprep.subr.mxu0 0.0
  %2571 = vmatpush2.xpose.msra.mxu0 0.0
  %2572 = vmatprep.subr.mxu0 0.0
  %2573 = vmatpush2.xpose.msra.mxu0 0.0
  %2574 = vmatprep.subr.mxu0 0.0
  %2575 = vmatpush2.xpose.msra.mxu0 0.0
  %2576 = vmatprep.subr.mxu0 0.0
  %2577 = vmatpush2.xpose.msra.mxu0 0.0
  %2578 = vmatprep.subr.mxu0 0.0
  %2579 = vmatpush2.xpose.msra.mxu0 0.0
  %2580 = vmatprep.subr.mxu0 0.0
  %2581 = vmatpush2.xpose.msra.mxu0 0.0
  %2582 = vmatprep.subr.mxu0 0.0
  %2583 = vmatpush2.xpose.msra.mxu0 0.0
  %2584 = vmatprep.subr.mxu0 0.0
  %2585 = vmatpush2.xpose.msra.mxu0 0.0
  %2586 = vmatprep.subr.mxu0 0.0
  %2587 = vmatpush2.xpose.msra.mxu0 0.0
  %2588 = vmatprep.subr.mxu0 0.0
  %2589 = vmatpush2.xpose.msra.mxu0 0.0
  %2590 = vmatprep.mubr.f32.mxu0 0.0
  %2591 = vmatmul.mubr.f32.gmra.mxu0 %v2522
  %v2592 = vpop.f32.mrf.mxu0
  %v2593 = vadd.f32 0.0, %v2592
  %v2594 = vpop.f32.mrf.mxu0
  %2595 = vdwg.mxu0
  %v2596 = vmul.f32 %v2593, 0.25
  %v2597 = vsel %vm497, %v2596, -inf
  %2598 = vmax.xlane.f32.xlu0 %v2597
  %v2599 = vpop.xlane.xlu0 %2598
  %v2600 = vsub.f32 %v2596, %v2599
  %v2601 = vmul.f32 %v2600, 1.442695
  %v2602 = vpow.pop %v2601
  %v2603 = vsel %vm497, %v2602, 0.0
  %2604 = vadd.xlane.f32.xlu0 %v2603
  %v2605 = vpop.xlane.xlu0 %2604
  %v2606 = vrcp.pop %v2605
  %v2607 = vmul.f32 %v2602, %v2606
  %2608 = vrot.lane.b32.xlu0 %v2519, 32
  %v2609 = vpop.permute.xlu0 %2608
  %v2611 = vsel %vm511, %v2607, 0
  %v2613 = vsel %vm515, %v2609, 0
  %2615 = vmatprep.subr.mxu0 0.0
  %2616 = vmatpush1.msra.mxu0 0.0
  %2617 = vmatprep.subr.mxu0 0.0
  %2618 = vmatpush1.msra.mxu0 0.0
  %2619 = vmatprep.subr.mxu0 0.0
  %2620 = vmatpush1.msra.mxu0 0.0
  %2621 = vmatprep.subr.mxu0 0.0
  %2622 = vmatpush1.msra.mxu0 0.0
  %2623 = vmatprep.subr.mxu0 0.0
  %2624 = vmatpush1.msra.mxu0 0.0
  %2625 = vmatprep.subr.mxu0 0.0
  %2626 = vmatpush1.msra.mxu0 0.0
  %2627 = vmatprep.subr.mxu0 0.0
  %2628 = vmatpush1.msra.mxu0 0.0
  %2629 = vmatprep.subr.mxu0 0.0
  %2630 = vmatpush1.msra.mxu0 0.0
  %2631 = vmatprep.subr.mxu0 0.0
  %2632 = vmatpush1.msra.mxu0 0.0
  %2633 = vmatprep.subr.mxu0 0.0
  %2634 = vmatpush1.msra.mxu0 0.0
  %2635 = vmatprep.subr.mxu0 0.0
  %2636 = vmatpush1.msra.mxu0 0.0
  %2637 = vmatprep.subr.mxu0 0.0
  %2638 = vmatpush1.msra.mxu0 0.0
  %2639 = vmatprep.subr.mxu0 0.0
  %2640 = vmatpush1.msra.mxu0 0.0
  %2641 = vmatprep.subr.mxu0 0.0
  %2642 = vmatpush1.msra.mxu0 0.0
  %2643 = vmatprep.subr.mxu0 0.0
  %2644 = vmatpush1.msra.mxu0 0.0
  %2645 = vmatprep.subr.mxu0 0.0
  %2646 = vmatpush1.msra.mxu0 %v2613
  %2647 = vmatprep.subr.mxu0 0.0
  %2648 = vmatpush2.msra.mxu0 0.0
  %2649 = vmatprep.subr.mxu0 0.0
  %2650 = vmatpush2.msra.mxu0 0.0
  %2651 = vmatprep.subr.mxu0 0.0
  %2652 = vmatpush2.msra.mxu0 0.0
  %2653 = vmatprep.subr.mxu0 0.0
  %2654 = vmatpush2.msra.mxu0 0.0
  %2655 = vmatprep.subr.mxu0 0.0
  %2656 = vmatpush2.msra.mxu0 0.0
  %2657 = vmatprep.subr.mxu0 0.0
  %2658 = vmatpush2.msra.mxu0 0.0
  %2659 = vmatprep.subr.mxu0 0.0
  %2660 = vmatpush2.msra.mxu0 0.0
  %2661 = vmatprep.subr.mxu0 0.0
  %2662 = vmatpush2.msra.mxu0 0.0
  %2663 = vmatprep.subr.mxu0 0.0
  %2664 = vmatpush2.msra.mxu0 0.0
  %2665 = vmatprep.subr.mxu0 0.0
  %2666 = vmatpush2.msra.mxu0 0.0
  %2667 = vmatprep.subr.mxu0 0.0
  %2668 = vmatpush2.msra.mxu0 0.0
  %2669 = vmatprep.subr.mxu0 0.0
  %2670 = vmatpush2.msra.mxu0 0.0
  %2671 = vmatprep.subr.mxu0 0.0
  %2672 = vmatpush2.msra.mxu0 0.0
  %2673 = vmatprep.subr.mxu0 0.0
  %2674 = vmatpush2.msra.mxu0 0.0
  %2675 = vmatprep.subr.mxu0 0.0
  %2676 = vmatpush2.msra.mxu0 0.0
  %2677 = vmatprep.subr.mxu0 0.0
  %2678 = vmatpush2.msra.mxu0 0.0
  %2679 = vmatprep.mubr.f32.mxu0 0.0
  %2680 = vmatmul.mubr.f32.gmra.mxu0 %v2611
  %v2681 = vpop.f32.mrf.mxu0
  %v2682 = vadd.f32 0.0, %v2681
  %v2683 = vpop.f32.mrf.mxu0
  %2684 = vdwg.mxu0
  %2685 = vrot.lane.b32.xlu0 %v2519, 112
  %v2686 = vpop.permute.xlu0 %2685
  %2687 = vrot.lane.b32.xlu0 %v2519, 64
  %v2688 = vpop.permute.xlu0 %2687
  %v2689 = vsel %vm421, %v2686, 0
  %v2691 = vsel %vm421, %v2688, 0
  %2693 = vmatprep.subr.mxu0 0.0
  %2694 = vmatpush1.xpose.msra.mxu0 0.0
  %2695 = vmatprep.subr.mxu0 0.0
  %2696 = vmatpush1.xpose.msra.mxu0 0.0
  %2697 = vmatprep.subr.mxu0 0.0
  %2698 = vmatpush1.xpose.msra.mxu0 0.0
  %2699 = vmatprep.subr.mxu0 0.0
  %2700 = vmatpush1.xpose.msra.mxu0 0.0
  %2701 = vmatprep.subr.mxu0 0.0
  %2702 = vmatpush1.xpose.msra.mxu0 0.0
  %2703 = vmatprep.subr.mxu0 0.0
  %2704 = vmatpush1.xpose.msra.mxu0 0.0
  %2705 = vmatprep.subr.mxu0 0.0
  %2706 = vmatpush1.xpose.msra.mxu0 0.0
  %2707 = vmatprep.subr.mxu0 0.0
  %2708 = vmatpush1.xpose.msra.mxu0 0.0
  %2709 = vmatprep.subr.mxu0 0.0
  %2710 = vmatpush1.xpose.msra.mxu0 0.0
  %2711 = vmatprep.subr.mxu0 0.0
  %2712 = vmatpush1.xpose.msra.mxu0 0.0
  %2713 = vmatprep.subr.mxu0 0.0
  %2714 = vmatpush1.xpose.msra.mxu0 0.0
  %2715 = vmatprep.subr.mxu0 0.0
  %2716 = vmatpush1.xpose.msra.mxu0 0.0
  %2717 = vmatprep.subr.mxu0 0.0
  %2718 = vmatpush1.xpose.msra.mxu0 0.0
  %2719 = vmatprep.subr.mxu0 0.0
  %2720 = vmatpush1.xpose.msra.mxu0 0.0
  %2721 = vmatprep.subr.mxu0 0.0
  %2722 = vmatpush1.xpose.msra.mxu0 0.0
  %2723 = vmatprep.subr.mxu0 0.0
  %2724 = vmatpush1.xpose.msra.mxu0 %v2691
  %2725 = vmatprep.subr.mxu0 0.0
  %2726 = vmatpush2.xpose.msra.mxu0 0.0
  %2727 = vmatprep.subr.mxu0 0.0
  %2728 = vmatpush2.xpose.msra.mxu0 0.0
  %2729 = vmatprep.subr.mxu0 0.0
  %2730 = vmatpush2.xpose.msra.mxu0 0.0
  %2731 = vmatprep.subr.mxu0 0.0
  %2732 = vmatpush2.xpose.msra.mxu0 0.0
  %2733 = vmatprep.subr.mxu0 0.0
  %2734 = vmatpush2.xpose.msra.mxu0 0.0
  %2735 = vmatprep.subr.mxu0 0.0
  %2736 = vmatpush2.xpose.msra.mxu0 0.0
  %2737 = vmatprep.subr.mxu0 0.0
  %2738 = vmatpush2.xpose.msra.mxu0 0.0
  %2739 = vmatprep.subr.mxu0 0.0
  %2740 = vmatpush2.xpose.msra.mxu0 0.0
  %2741 = vmatprep.subr.mxu0 0.0
  %2742 = vmatpush2.xpose.msra.mxu0 0.0
  %2743 = vmatprep.subr.mxu0 0.0
  %2744 = vmatpush2.xpose.msra.mxu0 0.0
  %2745 = vmatprep.subr.mxu0 0.0
  %2746 = vmatpush2.xpose.msra.mxu0 0.0
  %2747 = vmatprep.subr.mxu0 0.0
  %2748 = vmatpush2.xpose.msra.mxu0 0.0
  %2749 = vmatprep.subr.mxu0 0.0
  %2750 = vmatpush2.xpose.msra.mxu0 0.0
  %2751 = vmatprep.subr.mxu0 0.0
  %2752 = vmatpush2.xpose.msra.mxu0 0.0
  %2753 = vmatprep.subr.mxu0 0.0
  %2754 = vmatpush2.xpose.msra.mxu0 0.0
  %2755 = vmatprep.subr.mxu0 0.0
  %2756 = vmatpush2.xpose.msra.mxu0 0.0
  %2757 = vmatprep.mubr.f32.mxu0 0.0
  %2758 = vmatmul.mubr.f32.gmra.mxu0 %v2689
  %v2759 = vpop.f32.mrf.mxu0
  %v2760 = vadd.f32 0.0, %v2759
  %v2761 = vpop.f32.mrf.mxu0
  %2762 = vdwg.mxu0
  %v2763 = vmul.f32 %v2760, 0.25
  %v2764 = vsel %vm497, %v2763, -inf
  %2765 = vmax.xlane.f32.xlu0 %v2764
  %v2766 = vpop.xlane.xlu0 %2765
  %v2767 = vsub.f32 %v2763, %v2766
  %v2768 = vmul.f32 %v2767, 1.442695
  %v2769 = vpow.pop %v2768
  %v2770 = vsel %vm497, %v2769, 0.0
  %2771 = vadd.xlane.f32.xlu0 %v2770
  %v2772 = vpop.xlane.xlu0 %2771
  %v2773 = vrcp.pop %v2772
  %v2774 = vmul.f32 %v2769, %v2773
  %2775 = vrot.lane.b32.xlu0 %v2519, 16
  %v2776 = vpop.permute.xlu0 %2775
  %v2778 = vsel %vm511, %v2774, 0
  %v2780 = vsel %vm515, %v2776, 0
  %2782 = vmatprep.subr.mxu0 0.0
  %2783 = vmatpush1.msra.mxu0 0.0
  %2784 = vmatprep.subr.mxu0 0.0
  %2785 = vmatpush1.msra.mxu0 0.0
  %2786 = vmatprep.subr.mxu0 0.0
  %2787 = vmatpush1.msra.mxu0 0.0
  %2788 = vmatprep.subr.mxu0 0.0
  %2789 = vmatpush1.msra.mxu0 0.0
  %2790 = vmatprep.subr.mxu0 0.0
  %2791 = vmatpush1.msra.mxu0 0.0
  %2792 = vmatprep.subr.mxu0 0.0
  %2793 = vmatpush1.msra.mxu0 0.0
  %2794 = vmatprep.subr.mxu0 0.0
  %2795 = vmatpush1.msra.mxu0 0.0
  %2796 = vmatprep.subr.mxu0 0.0
  %2797 = vmatpush1.msra.mxu0 0.0
  %2798 = vmatprep.subr.mxu0 0.0
  %2799 = vmatpush1.msra.mxu0 0.0
  %2800 = vmatprep.subr.mxu0 0.0
  %2801 = vmatpush1.msra.mxu0 0.0
  %2802 = vmatprep.subr.mxu0 0.0
  %2803 = vmatpush1.msra.mxu0 0.0
  %2804 = vmatprep.subr.mxu0 0.0
  %2805 = vmatpush1.msra.mxu0 0.0
  %2806 = vmatprep.subr.mxu0 0.0
  %2807 = vmatpush1.msra.mxu0 0.0
  %2808 = vmatprep.subr.mxu0 0.0
  %2809 = vmatpush1.msra.mxu0 0.0
  %2810 = vmatprep.subr.mxu0 0.0
  %2811 = vmatpush1.msra.mxu0 0.0
  %2812 = vmatprep.subr.mxu0 0.0
  %2813 = vmatpush1.msra.mxu0 %v2780
  %2814 = vmatprep.subr.mxu0 0.0
  %2815 = vmatpush2.msra.mxu0 0.0
  %2816 = vmatprep.subr.mxu0 0.0
  %2817 = vmatpush2.msra.mxu0 0.0
  %2818 = vmatprep.subr.mxu0 0.0
  %2819 = vmatpush2.msra.mxu0 0.0
  %2820 = vmatprep.subr.mxu0 0.0
  %2821 = vmatpush2.msra.mxu0 0.0
  %2822 = vmatprep.subr.mxu0 0.0
  %2823 = vmatpush2.msra.mxu0 0.0
  %2824 = vmatprep.subr.mxu0 0.0
  %2825 = vmatpush2.msra.mxu0 0.0
  %2826 = vmatprep.subr.mxu0 0.0
  %2827 = vmatpush2.msra.mxu0 0.0
  %2828 = vmatprep.subr.mxu0 0.0
  %2829 = vmatpush2.msra.mxu0 0.0
  %2830 = vmatprep.subr.mxu0 0.0
  %2831 = vmatpush2.msra.mxu0 0.0
  %2832 = vmatprep.subr.mxu0 0.0
  %2833 = vmatpush2.msra.mxu0 0.0
  %2834 = vmatprep.subr.mxu0 0.0
  %2835 = vmatpush2.msra.mxu0 0.0
  %2836 = vmatprep.subr.mxu0 0.0
  %2837 = vmatpush2.msra.mxu0 0.0
  %2838 = vmatprep.subr.mxu0 0.0
  %2839 = vmatpush2.msra.mxu0 0.0
  %2840 = vmatprep.subr.mxu0 0.0
  %2841 = vmatpush2.msra.mxu0 0.0
  %2842 = vmatprep.subr.mxu0 0.0
  %2843 = vmatpush2.msra.mxu0 0.0
  %2844 = vmatprep.subr.mxu0 0.0
  %2845 = vmatpush2.msra.mxu0 0.0
  %2846 = vmatprep.mubr.f32.mxu0 0.0
  %2847 = vmatmul.mubr.f32.gmra.mxu0 %v2778
  %v2848 = vpop.f32.mrf.mxu0
  %v2849 = vadd.f32 0.0, %v2848
  %v2850 = vpop.f32.mrf.mxu0
  %2851 = vdwg.mxu0
  %2852 = vrot.lane.b32.xlu0 %v2519, 96
  %v2853 = vpop.permute.xlu0 %2852
  %2854 = vrot.lane.b32.xlu0 %v2519, 48
  %v2855 = vpop.permute.xlu0 %2854
  %v2856 = vsel %vm421, %v2853, 0
  %v2858 = vsel %vm421, %v2855, 0
  %2860 = vmatprep.subr.mxu0 0.0
  %2861 = vmatpush1.xpose.msra.mxu0 0.0
  %2862 = vmatprep.subr.mxu0 0.0
  %2863 = vmatpush1.xpose.msra.mxu0 0.0
  %2864 = vmatprep.subr.mxu0 0.0
  %2865 = vmatpush1.xpose.msra.mxu0 0.0
  %2866 = vmatprep.subr.mxu0 0.0
  %2867 = vmatpush1.xpose.msra.mxu0 0.0
  %2868 = vmatprep.subr.mxu0 0.0
  %2869 = vmatpush1.xpose.msra.mxu0 0.0
  %2870 = vmatprep.subr.mxu0 0.0
  %2871 = vmatpush1.xpose.msra.mxu0 0.0
  %2872 = vmatprep.subr.mxu0 0.0
  %2873 = vmatpush1.xpose.msra.mxu0 0.0
  %2874 = vmatprep.subr.mxu0 0.0
  %2875 = vmatpush1.xpose.msra.mxu0 0.0
  %2876 = vmatprep.subr.mxu0 0.0
  %2877 = vmatpush1.xpose.msra.mxu0 0.0
  %2878 = vmatprep.subr.mxu0 0.0
  %2879 = vmatpush1.xpose.msra.mxu0 0.0
  %2880 = vmatprep.subr.mxu0 0.0
  %2881 = vmatpush1.xpose.msra.mxu0 0.0
  %2882 = vmatprep.subr.mxu0 0.0
  %2883 = vmatpush1.xpose.msra.mxu0 0.0
  %2884 = vmatprep.subr.mxu0 0.0
  %2885 = vmatpush1.xpose.msra.mxu0 0.0
  %2886 = vmatprep.subr.mxu0 0.0
  %2887 = vmatpush1.xpose.msra.mxu0 0.0
  %2888 = vmatprep.subr.mxu0 0.0
  %2889 = vmatpush1.xpose.msra.mxu0 0.0
  %2890 = vmatprep.subr.mxu0 0.0
  %2891 = vmatpush1.xpose.msra.mxu0 %v2858
  %2892 = vmatprep.subr.mxu0 0.0
  %2893 = vmatpush2.xpose.msra.mxu0 0.0
  %2894 = vmatprep.subr.mxu0 0.0
  %2895 = vmatpush2.xpose.msra.mxu0 0.0
  %2896 = vmatprep.subr.mxu0 0.0
  %2897 = vmatpush2.xpose.msra.mxu0 0.0
  %2898 = vmatprep.subr.mxu0 0.0
  %2899 = vmatpush2.xpose.msra.mxu0 0.0
  %2900 = vmatprep.subr.mxu0 0.0
  %2901 = vmatpush2.xpose.msra.mxu0 0.0
  %2902 = vmatprep.subr.mxu0 0.0
  %2903 = vmatpush2.xpose.msra.mxu0 0.0
  %2904 = vmatprep.subr.mxu0 0.0
  %2905 = vmatpush2.xpose.msra.mxu0 0.0
  %2906 = vmatprep.subr.mxu0 0.0
  %2907 = vmatpush2.xpose.msra.mxu0 0.0
  %2908 = vmatprep.subr.mxu0 0.0
  %2909 = vmatpush2.xpose.msra.mxu0 0.0
  %2910 = vmatprep.subr.mxu0 0.0
  %2911 = vmatpush2.xpose.msra.mxu0 0.0
  %2912 = vmatprep.subr.mxu0 0.0
  %2913 = vmatpush2.xpose.msra.mxu0 0.0
  %2914 = vmatprep.subr.mxu0 0.0
  %2915 = vmatpush2.xpose.msra.mxu0 0.0
  %2916 = vmatprep.subr.mxu0 0.0
  %2917 = vmatpush2.xpose.msra.mxu0 0.0
  %2918 = vmatprep.subr.mxu0 0.0
  %2919 = vmatpush2.xpose.msra.mxu0 0.0
  %2920 = vmatprep.subr.mxu0 0.0
  %2921 = vmatpush2.xpose.msra.mxu0 0.0
  %2922 = vmatprep.subr.mxu0 0.0
  %2923 = vmatpush2.xpose.msra.mxu0 0.0
  %2924 = vmatprep.mubr.f32.mxu0 0.0
  %2925 = vmatmul.mubr.f32.gmra.mxu0 %v2856
  %v2926 = vpop.f32.mrf.mxu0
  %v2927 = vadd.f32 0.0, %v2926
  %v2928 = vpop.f32.mrf.mxu0
  %2929 = vdwg.mxu0
  %v2930 = vmul.f32 %v2927, 0.25
  %v2931 = vsel %vm497, %v2930, -inf
  %2932 = vmax.xlane.f32.xlu0 %v2931
  %v2933 = vpop.xlane.xlu0 %2932
  %v2934 = vsub.f32 %v2930, %v2933
  %v2935 = vmul.f32 %v2934, 1.442695
  %v2936 = vpow.pop %v2935
  %v2937 = vsel %vm497, %v2936, 0.0
  %2938 = vadd.xlane.f32.xlu0 %v2937
  %v2939 = vpop.xlane.xlu0 %2938
  %v2940 = vrcp.pop %v2939
  %v2941 = vmul.f32 %v2936, %v2940
  %v2943 = vrot.slane %v1999, 5
  %v2944 = vrot.slane %v2005, 5
  %v2945 = vsel %vm933, %v2943, %v2944
  %v2947 = vsel %vm511, %v2941, 0
  %v2949 = vsel %vm515, %v2945, 0
  %2951 = vmatprep.subr.mxu0 0.0
  %2952 = vmatpush1.msra.mxu0 0.0
  %2953 = vmatprep.subr.mxu0 0.0
  %2954 = vmatpush1.msra.mxu0 0.0
  %2955 = vmatprep.subr.mxu0 0.0
  %2956 = vmatpush1.msra.mxu0 0.0
  %2957 = vmatprep.subr.mxu0 0.0
  %2958 = vmatpush1.msra.mxu0 0.0
  %2959 = vmatprep.subr.mxu0 0.0
  %2960 = vmatpush1.msra.mxu0 0.0
  %2961 = vmatprep.subr.mxu0 0.0
  %2962 = vmatpush1.msra.mxu0 0.0
  %2963 = vmatprep.subr.mxu0 0.0
  %2964 = vmatpush1.msra.mxu0 0.0
  %2965 = vmatprep.subr.mxu0 0.0
  %2966 = vmatpush1.msra.mxu0 0.0
  %2967 = vmatprep.subr.mxu0 0.0
  %2968 = vmatpush1.msra.mxu0 0.0
  %2969 = vmatprep.subr.mxu0 0.0
  %2970 = vmatpush1.msra.mxu0 0.0
  %2971 = vmatprep.subr.mxu0 0.0
  %2972 = vmatpush1.msra.mxu0 0.0
  %2973 = vmatprep.subr.mxu0 0.0
  %2974 = vmatpush1.msra.mxu0 0.0
  %2975 = vmatprep.subr.mxu0 0.0
  %2976 = vmatpush1.msra.mxu0 0.0
  %2977 = vmatprep.subr.mxu0 0.0
  %2978 = vmatpush1.msra.mxu0 0.0
  %2979 = vmatprep.subr.mxu0 0.0
  %2980 = vmatpush1.msra.mxu0 0.0
  %2981 = vmatprep.subr.mxu0 0.0
  %2982 = vmatpush1.msra.mxu0 %v2949
  %2983 = vmatprep.subr.mxu0 0.0
  %2984 = vmatpush2.msra.mxu0 0.0
  %2985 = vmatprep.subr.mxu0 0.0
  %2986 = vmatpush2.msra.mxu0 0.0
  %2987 = vmatprep.subr.mxu0 0.0
  %2988 = vmatpush2.msra.mxu0 0.0
  %2989 = vmatprep.subr.mxu0 0.0
  %2990 = vmatpush2.msra.mxu0 0.0
  %2991 = vmatprep.subr.mxu0 0.0
  %2992 = vmatpush2.msra.mxu0 0.0
  %2993 = vmatprep.subr.mxu0 0.0
  %2994 = vmatpush2.msra.mxu0 0.0
  %2995 = vmatprep.subr.mxu0 0.0
  %2996 = vmatpush2.msra.mxu0 0.0
  %2997 = vmatprep.subr.mxu0 0.0
  %2998 = vmatpush2.msra.mxu0 0.0
  %2999 = vmatprep.subr.mxu0 0.0
  %3000 = vmatpush2.msra.mxu0 0.0
  %3001 = vmatprep.subr.mxu0 0.0
  %3002 = vmatpush2.msra.mxu0 0.0
  %3003 = vmatprep.subr.mxu0 0.0
  %3004 = vmatpush2.msra.mxu0 0.0
  %3005 = vmatprep.subr.mxu0 0.0
  %3006 = vmatpush2.msra.mxu0 0.0
  %3007 = vmatprep.subr.mxu0 0.0
  %3008 = vmatpush2.msra.mxu0 0.0
  %3009 = vmatprep.subr.mxu0 0.0
  %3010 = vmatpush2.msra.mxu0 0.0
  %3011 = vmatprep.subr.mxu0 0.0
  %3012 = vmatpush2.msra.mxu0 0.0
  %3013 = vmatprep.subr.mxu0 0.0
  %3014 = vmatpush2.msra.mxu0 0.0
  %3015 = vmatprep.mubr.f32.mxu0 0.0
  %3016 = vmatmul.mubr.f32.gmra.mxu0 %v2947
  %v3017 = vpop.f32.mrf.mxu0
  %v3018 = vadd.f32 0.0, %v3017
  %v3019 = vpop.f32.mrf.mxu0
  %3020 = vdwg.mxu0
  %3022 = vrot.lane.b32.xlu0 %v2849, 16
  %v3023 = vpop.permute.xlu0 %3022
  %3026 = vrot.lane.b32.xlu0 %v3018, 32
  %v3027 = vpop.permute.xlu0 %3026
  %v3029 = vsel %vm421, %v2682, %v3023
  %v3030 = vsel %vm930, %v3029, %v3027
  %v3032 = vrot.slane %v3030, 3
  %v3034 = vsel %vm515, %v2515, %v3032
  %s3035 = scalar_lea.vmem %s9, 48
  %v3036 = vld [vmem:[%s3035] sm:$0xff]
  %v3037 = vld [vmem:[%s3035 + $0x8] sm:$0xff]
  %v3038 = vld [vmem:[%s3035 + $0x10] sm:$0xff]
  %v3039 = vld [vmem:[%s3035 + $0x18] sm:$0xff]
  %v3040 = vld [vmem:[%s3035 + $0x20] sm:$0xff]
  %v3041 = vld [vmem:[%s3035 + $0x28] sm:$0xff]
  %v3043 = vsel %vm267, %v3034, 0
  %v3045 = vsel %vm267, %v3032, 0
  %3047 = vmatprep.subr.mxu0 0.0
  %3048 = vmatpush1.msra.mxu0 0.0
  %3049 = vmatprep.subr.mxu0 0.0
  %3050 = vmatpush1.msra.mxu0 0.0
  %3051 = vmatprep.subr.mxu0 0.0
  %3052 = vmatpush1.msra.mxu0 0.0
  %3053 = vmatprep.subr.mxu0 0.0
  %3054 = vmatpush1.msra.mxu0 0.0
  %3055 = vmatprep.subr.mxu0 0.0
  %3056 = vmatpush1.msra.mxu0 0.0
  %3057 = vmatprep.subr.mxu0 0.0
  %3058 = vmatpush1.msra.mxu0 0.0
  %3059 = vmatprep.subr.mxu0 0.0
  %3060 = vmatpush1.msra.mxu0 0.0
  %3061 = vmatprep.subr.mxu0 0.0
  %3062 = vmatpush1.msra.mxu0 0.0
  %3063 = vmatprep.subr.mxu0 0.0
  %3064 = vmatpush1.msra.mxu0 0.0
  %3065 = vmatprep.subr.mxu0 0.0
  %3066 = vmatpush1.msra.mxu0 0.0
  %3067 = vmatprep.subr.mxu0 0.0
  %3068 = vmatpush1.msra.mxu0 %v3041
  %3069 = vmatprep.subr.mxu0 0.0
  %3070 = vmatpush1.msra.mxu0 %v3040
  %3071 = vmatprep.subr.mxu0 0.0
  %3072 = vmatpush1.msra.mxu0 %v3039
  %3073 = vmatprep.subr.mxu0 0.0
  %3074 = vmatpush1.msra.mxu0 %v3038
  %3075 = vmatprep.subr.mxu0 0.0
  %3076 = vmatpush1.msra.mxu0 %v3037
  %3077 = vmatprep.subr.mxu0 0.0
  %3078 = vmatpush1.msra.mxu0 %v3036
  %3079 = vmatprep.subr.mxu0 0.0
  %3080 = vmatpush2.msra.mxu0 0.0
  %3081 = vmatprep.subr.mxu0 0.0
  %3082 = vmatpush2.msra.mxu0 0.0
  %3083 = vmatprep.subr.mxu0 0.0
  %3084 = vmatpush2.msra.mxu0 0.0
  %3085 = vmatprep.subr.mxu0 0.0
  %3086 = vmatpush2.msra.mxu0 0.0
  %3087 = vmatprep.subr.mxu0 0.0
  %3088 = vmatpush2.msra.mxu0 0.0
  %3089 = vmatprep.subr.mxu0 0.0
  %3090 = vmatpush2.msra.mxu0 0.0
  %3091 = vmatprep.subr.mxu0 0.0
  %3092 = vmatpush2.msra.mxu0 0.0
  %3093 = vmatprep.subr.mxu0 0.0
  %3094 = vmatpush2.msra.mxu0 0.0
  %3095 = vmatprep.subr.mxu0 0.0
  %3096 = vmatpush2.msra.mxu0 0.0
  %3097 = vmatprep.subr.mxu0 0.0
  %3098 = vmatpush2.msra.mxu0 0.0
  %3099 = vmatprep.subr.mxu0 0.0
  %3100 = vmatpush2.msra.mxu0 0.0
  %3101 = vmatprep.subr.mxu0 0.0
  %3102 = vmatpush2.msra.mxu0 0.0
  %3103 = vmatprep.subr.mxu0 0.0
  %3104 = vmatpush2.msra.mxu0 0.0
  %3105 = vmatprep.subr.mxu0 0.0
  %3106 = vmatpush2.msra.mxu0 0.0
  %3107 = vmatprep.subr.mxu0 0.0
  %3108 = vmatpush2.msra.mxu0 0.0
  %3109 = vmatprep.subr.mxu0 0.0
  %3110 = vmatpush2.msra.mxu0 0.0
  %3111 = vmatprep.mubr.f32.mxu0 0.0
  %3112 = vmatmul.mubr.f32.gmra.mxu0 %v3043
  %v3113 = vpop.f32.mrf.mxu0
  %v3114 = vadd.f32 0.0, %v3113
  %v3115 = vpop.f32.mrf.mxu0
  %3116 = vmatprep.mubr.f32.mxu0 0.0
  %3117 = vmatmul.mubr.f32.gmra.mxu0 %v3045
  %v3118 = vpop.f32.mrf.mxu0
  %v3119 = vadd.f32 0.0, %v3118
  %v3120 = vpop.f32.mrf.mxu0
  %3121 = vdwg.mxu0
  %v3122 = vadd.f32 %v1850, %v3114
  %v3123 = vadd.f32 %v1851, %v3119
  %s3124 = scalar_lea.vmem %s10, 1
  %v3125 = vld [vmem:[%s3124] sm:$0x1]
  %v3127 = vlaneseq
  %v3128 = vshrl.u32 %v3127, 7
  %v3129 = vsub.s32 0, %v3128
  %v3130 = vrot.slane %v3125, %v3129
  %v3132 = vadd.f32 %v3122, %v3130
  %v3133 = vadd.f32 %v3123, %v3130
  %s3134 = scalar_lea.vmem %s11, 1
  %v3135 = vld [vmem:[%s3134] sm:$0x1]
  %s3136 = scalar_lea.vmem %s12, 1
  %v3137 = vld [vmem:[%s3136] sm:$0x1]
  %v3138 = vsel %vm267, %v3132, 0.0
  %3139 = vadd.xlane.f32.xlu0 %v3138
  %v3140 = vpop.xlane.xlu0 %3139
  %v3141 = vsel %vm271, %v3133, 0.0
  %3142 = vadd.xlane.f32.xlu0 %v3141
  %v3143 = vpop.xlane.xlu0 %3142
  %v3144 = vmul.f32 %v3140, 0.020833334
  %v3145 = vmul.f32 %v3143, 0.020833334
  %v3146 = vsub.f32 %v3132, %v3144
  %v3147 = vsub.f32 %v3133, %v3145
  %v3148 = vmul.f32 %v3146, %v3146
  %v3149 = vmul.f32 %v3147, %v3147
  %v3150 = vsel %vm267, %v3148, 0.0
  %3151 = vadd.xlane.f32.xlu0 %v3150
  %v3152 = vpop.xlane.xlu0 %3151
  %v3153 = vsel %vm271, %v3149, 0.0
  %3154 = vadd.xlane.f32.xlu0 %v3153
  %v3155 = vpop.xlane.xlu0 %3154
  %v3156 = vmul.f32 %v3152, 0.020833334
  %v3157 = vmul.f32 %v3155, 0.020833334
  %v3158 = vadd.f32 %v3156, 1e-05
  %v3159 = vadd.f32 %v3157, 1e-05
  %v3160 = vrsqrt.pop %v3158
  %v3161 = vrsqrt.pop %v3159
  %v3162 = vmul.f32 %v3146, %v3160
  %v3163 = vmul.f32 %v3147, %v3161
  %v3165 = vlaneseq
  %v3166 = vshrl.u32 %v3165, 7
  %v3167 = vsub.s32 0, %v3166
  %v3168 = vrot.slane %v3135, %v3167
  %v3170 = vmul.f32 %v3162, %v3168
  %v3171 = vmul.f32 %v3163, %v3168
  %v3173 = vlaneseq
  %v3174 = vshrl.u32 %v3173, 7
  %v3175 = vsub.s32 0, %v3174
  %v3176 = vrot.slane %v3137, %v3175
  %v3178 = vadd.f32 %v3170, %v3176
  %v3179 = vadd.f32 %v3171, %v3176
  %s3180 = scalar_lea.vmem %s13, 96
  %v3181 = vld [vmem:[%s3180] sm:$0xff]
  %v3182 = vld [vmem:[%s3180 + $0x8] sm:$0xff]
  %v3183 = vld [vmem:[%s3180 + $0x10] sm:$0xff]
  %v3184 = vld [vmem:[%s3180 + $0x18] sm:$0xff]
  %v3185 = vld [vmem:[%s3180 + $0x20] sm:$0xff]
  %v3186 = vld [vmem:[%s3180 + $0x28] sm:$0xff]
  %v3187 = vld [vmem:[%s3180 + $0x30] sm:$0xff]
  %v3188 = vld [vmem:[%s3180 + $0x38] sm:$0xff]
  %v3189 = vld [vmem:[%s3180 + $0x40] sm:$0xff]
  %v3190 = vld [vmem:[%s3180 + $0x48] sm:$0xff]
  %v3191 = vld [vmem:[%s3180 + $0x50] sm:$0xff]
  %v3192 = vld [vmem:[%s3180 + $0x58] sm:$0xff]
  %s3193 = scalar_lea.vmem %s14, 2
  %v3194 = vld [vmem:[%s3193] sm:$0x3]
  %v3196 = vlaneseq
  %v3197 = vshrl.u32 %v3196, 7
  %v3198 = vsub.s32 0, %v3197
  %v3199 = vrot.slane %v3194, %v3198
  %v3200 = vlaneseq
  %v3201 = vshrl.u32 %v3200, 7
  %v3202 = vsub.s32 1, %v3201
  %v3203 = vrot.slane %v3194, %v3202
  %v3207 = vsel %vm267, %v3178, 0
  %v3210 = vsel %vm267, %v3179, 0
  %3212 = vmatprep.subr.mxu0 0.0
  %3213 = vmatpush1.msra.mxu0 0.0
  %3214 = vmatprep.subr.mxu0 0.0
  %3215 = vmatpush1.msra.mxu0 0.0
  %3216 = vmatprep.subr.mxu0 0.0
  %3217 = vmatpush1.msra.mxu0 0.0
  %3218 = vmatprep.subr.mxu0 0.0
  %3219 = vmatpush1.msra.mxu0 0.0
  %3220 = vmatprep.subr.mxu0 0.0
  %3221 = vmatpush1.msra.mxu0 0.0
  %3222 = vmatprep.subr.mxu0 0.0
  %3223 = vmatpush1.msra.mxu0 0.0
  %3224 = vmatprep.subr.mxu0 0.0
  %3225 = vmatpush1.msra.mxu0 0.0
  %3226 = vmatprep.subr.mxu0 0.0
  %3227 = vmatpush1.msra.mxu0 0.0
  %3228 = vmatprep.subr.mxu0 0.0
  %3229 = vmatpush1.msra.mxu0 0.0
  %3230 = vmatprep.subr.mxu0 0.0
  %3231 = vmatpush1.msra.mxu0 0.0
  %3232 = vmatprep.subr.mxu0 %v3192
  %3233 = vmatpush1.msra.mxu0 %v3191
  %3234 = vmatprep.subr.mxu0 %v3190
  %3235 = vmatpush1.msra.mxu0 %v3189
  %3236 = vmatprep.subr.mxu0 %v3188
  %3237 = vmatpush1.msra.mxu0 %v3187
  %3238 = vmatprep.subr.mxu0 %v3186
  %3239 = vmatpush1.msra.mxu0 %v3185
  %3240 = vmatprep.subr.mxu0 %v3184
  %3241 = vmatpush1.msra.mxu0 %v3183
  %3242 = vmatprep.subr.mxu0 %v3182
  %3243 = vmatpush1.msra.mxu0 %v3181
  %3244 = vmatprep.subr.mxu0 0.0
  %3245 = vmatpush2.msra.mxu0 0.0
  %3246 = vmatprep.subr.mxu0 0.0
  %3247 = vmatpush2.msra.mxu0 0.0
  %3248 = vmatprep.subr.mxu0 0.0
  %3249 = vmatpush2.msra.mxu0 0.0
  %3250 = vmatprep.subr.mxu0 0.0
  %3251 = vmatpush2.msra.mxu0 0.0
  %3252 = vmatprep.subr.mxu0 0.0
  %3253 = vmatpush2.msra.mxu0 0.0
  %3254 = vmatprep.subr.mxu0 0.0
  %3255 = vmatpush2.msra.mxu0 0.0
  %3256 = vmatprep.subr.mxu0 0.0
  %3257 = vmatpush2.msra.mxu0 0.0
  %3258 = vmatprep.subr.mxu0 0.0
  %3259 = vmatpush2.msra.mxu0 0.0
  %3260 = vmatprep.subr.mxu0 0.0
  %3261 = vmatpush2.msra.mxu0 0.0
  %3262 = vmatprep.subr.mxu0 0.0
  %3263 = vmatpush2.msra.mxu0 0.0
  %3264 = vmatprep.subr.mxu0 0.0
  %3265 = vmatpush2.msra.mxu0 0.0
  %3266 = vmatprep.subr.mxu0 0.0
  %3267 = vmatpush2.msra.mxu0 0.0
  %3268 = vmatprep.subr.mxu0 0.0
  %3269 = vmatpush2.msra.mxu0 0.0
  %3270 = vmatprep.subr.mxu0 0.0
  %3271 = vmatpush2.msra.mxu0 0.0
  %3272 = vmatprep.subr.mxu0 0.0
  %3273 = vmatpush2.msra.mxu0 0.0
  %3274 = vmatprep.subr.mxu0 0.0
  %3275 = vmatpush2.msra.mxu0 0.0
  %3276 = vmatprep.mubr.f32.mxu0 0.0
  %3277 = vmatmul.mubr.f32.gmra.mxu0 %v3207
  %v3278 = vpop.f32.mrf.mxu0
  %v3279 = vadd.f32 %v3199, %v3278
  %v3280 = vpop.f32.mrf.mxu0
  %v3281 = vadd.f32 %v3203, %v3280
  %3282 = vmatprep.mubr.f32.mxu0 0.0
  %3283 = vmatmul.mubr.f32.gmra.mxu0 %v3210
  %v3284 = vpop.f32.mrf.mxu0
  %v3285 = vadd.f32 %v3199, %v3284
  %v3286 = vpop.f32.mrf.mxu0
  %v3287 = vadd.f32 %v3203, %v3286
  %3288 = vdwg.mxu0
  %v3289 = vmul.f32 %v3279, 0.5
  %v3290 = vmul.f32 %v3281, 0.5
  %v3291 = vmul.f32 %v3285, 0.5
  %v3292 = vmul.f32 %v3287, 0.5
  %v3293 = vmul.f32 %v3279, 0.044715
  %v3294 = vmul.f32 %v3281, 0.044715
  %v3295 = vmul.f32 %v3285, 0.044715
  %v3296 = vmul.f32 %v3287, 0.044715
  %v3297 = vmul.f32 %v3293, %v3279
  %v3298 = vmul.f32 %v3294, %v3281
  %v3299 = vmul.f32 %v3295, %v3285
  %v3300 = vmul.f32 %v3296, %v3287
  %v3301 = vmul.f32 %v3297, %v3279
  %v3302 = vmul.f32 %v3298, %v3281
  %v3303 = vmul.f32 %v3299, %v3285
  %v3304 = vmul.f32 %v3300, %v3287
  %v3305 = vadd.f32 %v3279, %v3301
  %v3306 = vadd.f32 %v3281, %v3302
  %v3307 = vadd.f32 %v3285, %v3303
  %v3308 = vadd.f32 %v3287, %v3304
  %v3309 = vmul.f32 %v3305, 0.7978846
  %v3310 = vmul.f32 %v3306, 0.7978846
  %v3311 = vmul.f32 %v3307, 0.7978846
  %v3312 = vmul.f32 %v3308, 0.7978846
  %v3313 = vtanh.pop %v3309
  %v3314 = vtanh.pop %v3310
  %v3315 = vtanh.pop %v3311
  %v3316 = vtanh.pop %v3312
  %v3317 = vadd.f32 %v3313, 1.0
  %v3318 = vadd.f32 %v3314, 1.0
  %v3319 = vadd.f32 %v3315, 1.0
  %v3320 = vadd.f32 %v3316, 1.0
  %v3321 = vmul.f32 %v3289, %v3317
  %v3322 = vmul.f32 %v3290, %v3318
  %v3323 = vmul.f32 %v3291, %v3319
  %v3324 = vmul.f32 %v3292, %v3320
  %s3325 = scalar_lea.vmem %s15, 192
  %v3326 = vld [vmem:[%s3325] sm:$0xff]
  %v3327 = vld [vmem:[%s3325 + $0x8] sm:$0xff]
  %v3328 = vld [vmem:[%s3325 + $0x10] sm:$0xff]
  %v3329 = vld [vmem:[%s3325 + $0x18] sm:$0xff]
  %v3330 = vld [vmem:[%s3325 + $0x20] sm:$0xff]
  %v3331 = vld [vmem:[%s3325 + $0x28] sm:$0xff]
  %v3332 = vld [vmem:[%s3325 + $0x30] sm:$0xff]
  %v3333 = vld [vmem:[%s3325 + $0x38] sm:$0xff]
  %v3334 = vld [vmem:[%s3325 + $0x40] sm:$0xff]
  %v3335 = vld [vmem:[%s3325 + $0x48] sm:$0xff]
  %v3336 = vld [vmem:[%s3325 + $0x50] sm:$0xff]
  %v3337 = vld [vmem:[%s3325 + $0x58] sm:$0xff]
  %v3338 = vld [vmem:[%s3325 + $0x60] sm:$0xff]
  %v3339 = vld [vmem:[%s3325 + $0x68] sm:$0xff]
  %v3340 = vld [vmem:[%s3325 + $0x70] sm:$0xff]
  %v3341 = vld [vmem:[%s3325 + $0x78] sm:$0xff]
  %v3342 = vld [vmem:[%s3325 + $0x80] sm:$0xff]
  %v3343 = vld [vmem:[%s3325 + $0x88] sm:$0xff]
  %v3344 = vld [vmem:[%s3325 + $0x90] sm:$0xff]
  %v3345 = vld [vmem:[%s3325 + $0x98] sm:$0xff]
  %v3346 = vld [vmem:[%s3325 + $0xa0] sm:$0xff]
  %v3347 = vld [vmem:[%s3325 + $0xa8] sm:$0xff]
  %v3348 = vld [vmem:[%s3325 + $0xb0] sm:$0xff]
  %v3349 = vld [vmem:[%s3325 + $0xb8] sm:$0xff]
  %v3351 = vsel %vm78, %v3322, 0
  %v3354 = vsel %vm78, %v3324, 0
  %3356 = vmatprep.subr.mxu0 0.0
  %3357 = vmatpush1.msra.mxu0 %v3341
  %3358 = vmatprep.subr.mxu0 0.0
  %3359 = vmatpush1.msra.mxu0 %v3340
  %3360 = vmatprep.subr.mxu0 0.0
  %3361 = vmatpush1.msra.mxu0 %v3339
  %3362 = vmatprep.subr.mxu0 0.0
  %3363 = vmatpush1.msra.mxu0 %v3338
  %3364 = vmatprep.subr.mxu0 0.0
  %3365 = vmatpush1.msra.mxu0 %v3337
  %3366 = vmatprep.subr.mxu0 0.0
  %3367 = vmatpush1.msra.mxu0 %v3336
  %3368 = vmatprep.subr.mxu0 0.0
  %3369 = vmatpush1.msra.mxu0 %v3335
  %3370 = vmatprep.subr.mxu0 0.0
  %3371 = vmatpush1.msra.mxu0 %v3334
  %3372 = vmatprep.subr.mxu0 0.0
  %3373 = vmatpush1.msra.mxu0 %v3333
  %3374 = vmatprep.subr.mxu0 0.0
  %3375 = vmatpush1.msra.mxu0 %v3332
  %3376 = vmatprep.subr.mxu0 0.0
  %3377 = vmatpush1.msra.mxu0 %v3331
  %3378 = vmatprep.subr.mxu0 0.0
  %3379 = vmatpush1.msra.mxu0 %v3330
  %3380 = vmatprep.subr.mxu0 0.0
  %3381 = vmatpush1.msra.mxu0 %v3329
  %3382 = vmatprep.subr.mxu0 0.0
  %3383 = vmatpush1.msra.mxu0 %v3328
  %3384 = vmatprep.subr.mxu0 0.0
  %3385 = vmatpush1.msra.mxu0 %v3327
  %3386 = vmatprep.subr.mxu0 0.0
  %3387 = vmatpush1.msra.mxu0 %v3326
  %3388 = vmatprep.subr.mxu0 0.0
  %3389 = vmatpush2.msra.mxu0 0.0
  %3390 = vmatprep.subr.mxu0 0.0
  %3391 = vmatpush2.msra.mxu0 0.0
  %3392 = vmatprep.subr.mxu0 0.0
  %3393 = vmatpush2.msra.mxu0 0.0
  %3394 = vmatprep.subr.mxu0 0.0
  %3395 = vmatpush2.msra.mxu0 0.0
  %3396 = vmatprep.subr.mxu0 0.0
  %3397 = vmatpush2.msra.mxu0 0.0
  %3398 = vmatprep.subr.mxu0 0.0
  %3399 = vmatpush2.msra.mxu0 0.0
  %3400 = vmatprep.subr.mxu0 0.0
  %3401 = vmatpush2.msra.mxu0 0.0
  %3402 = vmatprep.subr.mxu0 0.0
  %3403 = vmatpush2.msra.mxu0 0.0
  %3404 = vmatprep.subr.mxu0 0.0
  %3405 = vmatpush2.msra.mxu0 %v3349
  %3406 = vmatprep.subr.mxu0 0.0
  %3407 = vmatpush2.msra.mxu0 %v3348
  %3408 = vmatprep.subr.mxu0 0.0
  %3409 = vmatpush2.msra.mxu0 %v3347
  %3410 = vmatprep.subr.mxu0 0.0
  %3411 = vmatpush2.msra.mxu0 %v3346
  %3412 = vmatprep.subr.mxu0 0.0
  %3413 = vmatpush2.msra.mxu0 %v3345
  %3414 = vmatprep.subr.mxu0 0.0
  %3415 = vmatpush2.msra.mxu0 %v3344
  %3416 = vmatprep.subr.mxu0 0.0
  %3417 = vmatpush2.msra.mxu0 %v3343
  %3418 = vmatprep.subr.mxu0 0.0
  %3419 = vmatpush2.msra.mxu0 %v3342
  %3420 = vmatprep.mubr.f32.mxu0 %v3351
  %3421 = vmatmul.mubr.f32.gmra.mxu0 %v3321
  %v3422 = vpop.f32.mrf.mxu0
  %v3423 = vadd.f32 0.0, %v3422
  %v3424 = vpop.f32.mrf.mxu0
  %3425 = vmatprep.mubr.f32.mxu0 %v3354
  %3426 = vmatmul.mubr.f32.gmra.mxu0 %v3323
  %v3427 = vpop.f32.mrf.mxu0
  %v3428 = vadd.f32 0.0, %v3427
  %v3429 = vpop.f32.mrf.mxu0
  %3430 = vdwg.mxu0
  %v3431 = vadd.f32 %v3132, %v3423
  %v3432 = vadd.f32 %v3133, %v3428
  %s3433 = scalar_lea.vmem %s16, 1
  %v3434 = vld [vmem:[%s3433] sm:$0x1]
  %v3436 = vlaneseq
  %v3437 = vshrl.u32 %v3436, 7
  %v3438 = vsub.s32 0, %v3437
  %v3439 = vrot.slane %v3434, %v3438
  %v3441 = vadd.f32 %v3431, %v3439
  %v3442 = vadd.f32 %v3432, %v3439
  %v3443 = vld [vmem:[%s17] sm:$0x1]
  %v3444 = vld [vmem:[%s18] sm:$0x1]
  %v3445 = vsel %vm267, %v3441, 0.0
  %3446 = vadd.xlane.f32.xlu0 %v3445
  %v3447 = vpop.xlane.xlu0 %3446
  %v3448 = vsel %vm271, %v3442, 0.0
  %3449 = vadd.xlane.f32.xlu0 %v3448
  %v3450 = vpop.xlane.xlu0 %3449
  %v3451 = vmul.f32 %v3447, 0.020833334
  %v3452 = vmul.f32 %v3450, 0.020833334
  %v3453 = vsub.f32 %v3441, %v3451
  %v3454 = vsub.f32 %v3442, %v3452
  %v3455 = vmul.f32 %v3453, %v3453
  %v3456 = vmul.f32 %v3454, %v3454
  %v3457 = vsel %vm267, %v3455, 0.0
  %3458 = vadd.xlane.f32.xlu0 %v3457
  %v3459 = vpop.xlane.xlu0 %3458
  %v3460 = vsel %vm271, %v3456, 0.0
  %3461 = vadd.xlane.f32.xlu0 %v3460
  %v3462 = vpop.xlane.xlu0 %3461
  %v3463 = vmul.f32 %v3459, 0.020833334
  %v3464 = vmul.f32 %v3462, 0.020833334
  %v3465 = vadd.f32 %v3463, 1e-05
  %v3466 = vadd.f32 %v3464, 1e-05
  %v3467 = vrsqrt.pop %v3465
  %v3468 = vrsqrt.pop %v3466
  %v3469 = vmul.f32 %v3453, %v3467
  %v3470 = vmul.f32 %v3454, %v3468
  %v3472 = vlaneseq
  %v3473 = vshrl.u32 %v3472, 7
  %v3474 = vsub.s32 0, %v3473
  %v3475 = vrot.slane %v3443, %v3474
  %v3477 = vmul.f32 %v3469, %v3475
  %v3478 = vmul.f32 %v3470, %v3475
  %v3480 = vlaneseq
  %v3481 = vshrl.u32 %v3480, 7
  %v3482 = vsub.s32 0, %v3481
  %v3483 = vrot.slane %v3444, %v3482
  %v3485 = vadd.f32 %v3477, %v3483
  %v3486 = vadd.f32 %v3478, %v3483
  %v3489 = vrot.slane %v3485, 5
  %v3490 = vrot.slane %v3486, 5
  %v3491 = vsel %vm933, %v3489, %v3490
  %3492 = vrot.lane.b32.xlu0 %v3491, 48
  %v3493 = vpop.permute.xlu0 %3492
  %v3495 = vsel %vm267, %v3485, %v3493
  %vm3496 = vcmask 782336
  %3497 = vst.msk [vmem:[%s19] sm:$0x1f] %vm3496, %v3495
  // Predicated region
  $region78: #{mae_encoder_forward.1} parent=0 // pred_check
    _
  $region79: #{mae_encoder_forward.1} parent=0 // pred_check_branch
    %3499 = sbr.rel (0) target = $region81
  $region80: #{mae_encoder_forward.1} parent=0 // pred_region
    _
  $region81: #{mae_encoder_forward.1} parent=0 // pred_fallthru
    _
  // Predicated region
  $region82: #{mae_encoder_forward.1} parent=0 // pred_check
    _
  $region83: #{mae_encoder_forward.1} parent=0 // pred_check_branch
    %3501 = sbr.rel (0) target = $region85
  $region84: #{mae_encoder_forward.1} parent=0 // pred_region
    _
  $region85: #{mae_encoder_forward.1} parent=0 // pred_fallthru
    _

</llo_original>
